<compile_context>
chip_gen: v7x
topology: tpu7x:2x2x1
jax: 0.10.0
libtpu: 0.0.40
codegen_flags: <defaults>
</compile_context>

<pallas_src>
import functools

import jax
import jax.numpy as jnp
from jax.experimental import pallas as pl
from jax.experimental.pallas import tpu as pltpu

PAD = 128  # lane padding on each side of the flattened spatial axis (needs PAD >= W + 4)


def _make_kernel(*, H, W, CG, CIp, Cout, G, shift):
    P = H * W
    s = shift  # static python int, +/-1

    def kernel(mm_ref, mw_ref, w2f_ref, w1f_ref, x_ref, o_ref,
               a_ref, c_ref, im_ref, im2_ref):
        # Zero the lane-padding slabs (every grid step; cheap and megacore-safe).
        # They provide the zero padding for the W-conv edge/wrap reads and the
        # H-conv first/last-row taps, and make multiply-by-mask NaN-safe.
        a_ref[:, :PAD] = jnp.zeros((CG, PAD), jnp.float32)
        a_ref[:, PAD + P:] = jnp.zeros((CG, PAD), jnp.float32)
        c_ref[:, :PAD] = jnp.zeros((CIp, PAD), jnp.float32)
        c_ref[:, PAD + P:] = jnp.zeros((CIp, PAD), jnp.float32)

        mm = mm_ref[...]      # (7, P) f32 0/1 masks: tap valid & main read in-row
        mw = mw_ref[...]      # (7, P) f32 0/1 masks: tap valid & needs wrap read
        w2f = w2f_ref[...]    # (CIp, 7*CG)
        w1f = w1f_ref[...]    # (Cout, 3*CIp)

        for g in range(G):
            # ---- channel-group reduction: (2, CG, P) -> (CG, P) -------------
            a_ref[:, PAD:PAD + P] = x_ref[g, 0] + x_ref[g, 1]

            # ---- im2col along W with the circular roll folded into the lane
            #      offsets (tap k of the rolled signal at column wid + k - 3) --
            for k in range(7):
                d = k - 3
                off_m = PAD + d - s            # main read: t3[p + d - s]
                off_w = off_m + s * W          # wrap read: same row, other edge
                main = a_ref[:, off_m:off_m + P]
                wrap = a_ref[:, off_w:off_w + P]
                im_ref[k * CG:(k + 1) * CG, :] = (
                    main * mm[k:k + 1, :] + wrap * mw[k:k + 1, :])

            # ---- W-conv (kernel 7, pad 3), CG -> 21: ONE MXU matmul ---------
            c_ref[:, PAD:PAD + P] = jnp.dot(
                w2f, im_ref[...], preferred_element_type=jnp.float32)

            # ---- im2col along H: 3 row-shifted copies (zero slabs = padding) -
            for k in range(3):
                off = PAD + (k - 1) * W
                im2_ref[k * CIp:(k + 1) * CIp, :] = c_ref[:, off:off + P]

            # ---- H-conv (kernel 3, pad 1), 21 -> Cout: ONE MXU matmul -------
            o_ref[g] = jnp.dot(
                w1f, im2_ref[...],
                preferred_element_type=jnp.float32).astype(o_ref.dtype)

    return kernel


@functools.partial(jax.jit, static_argnames=("shift",))
def forward(x, w1, w2, shift=1):
    """x: (B, 2*CG, H, W) f32, w1: (Cout, 3, 21), w2: (CG, 7, 21) -> (B, Cout, H, W)."""
    B, C, H, W = x.shape
    assert C % 2 == 0
    CG = C // 2
    Cout, KH, CI = w1.shape
    CG2, KW, CI2 = w2.shape
    assert CG2 == CG and CI2 == CI and KH == 3 and KW == 7
    assert shift in (1, -1)
    assert W + 4 <= PAD, "lane padding must cover one image row plus conv reach"
    P = H * W
    CIp = ((CI + 7) // 8) * 8           # intermediate channels padded to sublane multiple
    G = 2 if B % 2 == 0 else 1          # images per grid step

    x_flat = x.reshape(B, 2, CG, P).astype(jnp.float32)

    # Weights reshaped for the fused im2col matmuls.
    #   w2f[i, k*CG + j] = w2[j, k, i]   (rows CI..CIp-1 are zero)
    #   w1f[o, k*CIp + i] = w1[o, k, i]  (cols with i >= CI are zero)
    w2f = jnp.pad(jnp.transpose(w2, (2, 1, 0)).reshape(CI, KW * CG),
                  ((0, CIp - CI), (0, 0))).astype(jnp.float32)
    w1f = jnp.pad(w1, ((0, 0), (0, 0), (0, CIp - CI))
                  ).reshape(Cout, KH * CIp).astype(jnp.float32)

    # Precomputed 0/1 masks: conv zero-padding + circular-roll wrap column.
    wid = (jnp.arange(P, dtype=jnp.int32) % W)[None, :]         # (1, P)
    d = jnp.arange(KW, dtype=jnp.int32)[:, None] - (KW // 2)    # (7, 1)
    col = wid + d
    valid = (col >= 0) & (col < W)
    in_main = (col - shift >= 0) & (col - shift < W)
    mask_main = (valid & in_main).astype(jnp.float32)           # (7, P)
    mask_wrap = (valid & jnp.logical_not(in_main)).astype(jnp.float32)

    kernel = _make_kernel(H=H, W=W, CG=CG, CIp=CIp, Cout=Cout, G=G, shift=shift)

    grid_spec = pltpu.PrefetchScalarGridSpec(
        num_scalar_prefetch=0,
        grid=(B // G,),
        in_specs=[
            pl.BlockSpec((KW, P), lambda i: (0, 0)),               # mask_main
            pl.BlockSpec((KW, P), lambda i: (0, 0)),               # mask_wrap
            pl.BlockSpec((CIp, KW * CG), lambda i: (0, 0)),        # w2f
            pl.BlockSpec((Cout, KH * CIp), lambda i: (0, 0)),      # w1f
            pl.BlockSpec((G, 2, CG, P), lambda i: (i, 0, 0, 0)),   # x (G images)
        ],
        out_specs=pl.BlockSpec((G, Cout, P), lambda i: (i, 0, 0)),
        scratch_shapes=[
            pltpu.VMEM((CG, P + 2 * PAD), jnp.float32),    # staged group-sum t3
            pltpu.VMEM((CIp, P + 2 * PAD), jnp.float32),   # staged W-conv output t5
            pltpu.VMEM((KW * CG, P), jnp.float32),         # W-conv im2col (7*CG, P)
            pltpu.VMEM((KH * CIp, P), jnp.float32),        # H-conv im2col (3*CIp, P)
        ],
    )
    out = pl.pallas_call(
        kernel,
        out_shape=jax.ShapeDtypeStruct((B, Cout, P), jnp.float32),
        grid_spec=grid_spec,
        compiler_params=pltpu.CompilerParams(
            dimension_semantics=("parallel",),
            vmem_limit_bytes=32 * 1024 * 1024,
        ),
    )(mask_main, mask_wrap, w2f, w1f, x_flat)
    return out.reshape(B, Cout, H, W)


def reference(x, w1, w2, shift=1):
    """Pure-JAX mirror of the PyTorch forward (for verification)."""
    B, C, H, W = x.shape
    CG = C // 2
    t3 = x.reshape(B, 2, CG, H, W).sum(axis=1)
    t3r = jnp.roll(t3, shift, axis=3)
    t3p = jnp.pad(t3r, ((0, 0), (0, 0), (0, 0), (3, 3)))
    t4 = jnp.stack([t3p[..., k:k + W] for k in range(7)], axis=3)   # (B,CG,H,7,W)
    t5 = jnp.einsum('ljnkm,jki->lnmi', t4, w2, precision='highest')  # (B,H,W,21)
    t5p = jnp.pad(t5, ((0, 0), (1, 1), (0, 0), (0, 0)))
    t6 = jnp.stack([t5p[:, k:k + H] for k in range(3)], axis=1)     # (B,3,H,W,21)
    t7 = jnp.einsum('lkmni,jki->ljmn', t6, w1, precision='highest')  # (B,Cout,H,W)
    return t7


if __name__ == "__main__":
    key = jax.random.PRNGKey(0)
    kx, k1, k2 = jax.random.split(key, 3)

    # Small demo shapes consistent with the module (nominal: B=128, H=W=28).
    B, H, W = 2, 16, 16
    x = jax.random.normal(kx, (B, 64, H, W), dtype=jnp.float32)
    w1 = jax.random.normal(k1, (256, 3, 21), dtype=jnp.float32)   # weights[0]
    w2 = jax.random.normal(k2, (32, 7, 21), dtype=jnp.float32)    # weights[1]

    # The torch module picks shift_direction randomly in __init__; check both.
    for shift in (1, -1):
        out = forward(x, w1, w2, shift=shift)
        out = jax.block_until_ready(out)
        ref = reference(x, w1, w2, shift)
        assert out.shape == (B, 256, H, W), out.shape
        err = float(jnp.max(jnp.abs(out - ref)))
        scale = float(jnp.max(jnp.abs(ref)))
        if err > 2e-2 * scale + 2e-2:
            raise AssertionError(
                f"kernel/reference mismatch (shift={shift}): "
                f"max abs err = {err}, output scale = {scale}")
    print("KERNEL_OK")
</pallas_src>

<mosaic_0001>
module attributes {stable_mosaic.version = 11 : i64} {
  func.func @kernel(%arg0: i32, %arg1: memref<7x256xf32, #tpu.memory_space<vmem>>, %arg2: memref<7x256xf32, #tpu.memory_space<vmem>>, %arg3: memref<24x224xf32, #tpu.memory_space<vmem>>, %arg4: memref<256x72xf32, #tpu.memory_space<vmem>>, %arg5: memref<2x2x32x256xf32, #tpu.memory_space<vmem>>, %arg6: memref<2x256x256xf32, #tpu.memory_space<vmem>>, %arg7: memref<32x512xf32, #tpu.memory_space<vmem>>, %arg8: memref<24x512xf32, #tpu.memory_space<vmem>>, %arg9: memref<224x256xf32, #tpu.memory_space<vmem>>, %arg10: memref<72x256xf32, #tpu.memory_space<vmem>>) attributes {dimension_semantics = [#tpu.dimension_semantics<parallel>], iteration_bounds = array<i64: 1>, scalar_prefetch = 0 : i64, scratch_operands = 4 : i64, tpu.core_type = #tpu.core_type<tc>, window_params = [{pipeline_mode = #tpu.pipeline_mode<synchronous>, transform_indices = @transform_0, window_bounds = array<i64: 7, 256>}, {pipeline_mode = #tpu.pipeline_mode<synchronous>, transform_indices = @transform_1, window_bounds = array<i64: 7, 256>}, {pipeline_mode = #tpu.pipeline_mode<synchronous>, transform_indices = @transform_2, window_bounds = array<i64: 24, 224>}, {pipeline_mode = #tpu.pipeline_mode<synchronous>, transform_indices = @transform_3, window_bounds = array<i64: 256, 72>}, {transform_indices = @transform_4, window_bounds = array<i64: 2, 2, 32, 256>}, {transform_indices = @transform_5, window_bounds = array<i64: 2, 256, 256>}]} {
    %cst = arith.constant 0.000000e+00 : f32
    %0 = vector.broadcast %cst : f32 to vector<32x128xf32>
    %c0 = arith.constant 0 : index
    %c0_0 = arith.constant 0 : index
    %1 = vector.load %arg7[%c0, %c0_0] : memref<32x512xf32, #tpu.memory_space<vmem>>, vector<32x128xf32>
    tpu.vector_store %arg7[%c0, %c0_0], %0 {strides = array<i32>} : memref<32x512xf32, #tpu.memory_space<vmem>>, vector<32x128xf32>,
    %cst_1 = arith.constant 0.000000e+00 : f32
    %2 = vector.broadcast %cst_1 : f32 to vector<32x128xf32>
    %c0_2 = arith.constant 0 : index
    %c384 = arith.constant 384 : index
    %3 = vector.load %arg7[%c0_2, %c384] : memref<32x512xf32, #tpu.memory_space<vmem>>, vector<32x128xf32>
    tpu.vector_store %arg7[%c0_2, %c384], %2 {strides = array<i32>} : memref<32x512xf32, #tpu.memory_space<vmem>>, vector<32x128xf32>,
    %cst_3 = arith.constant 0.000000e+00 : f32
    %4 = vector.broadcast %cst_3 : f32 to vector<24x128xf32>
    %c0_4 = arith.constant 0 : index
    %c0_5 = arith.constant 0 : index
    %5 = vector.load %arg8[%c0_4, %c0_5] : memref<24x512xf32, #tpu.memory_space<vmem>>, vector<24x128xf32>
    tpu.vector_store %arg8[%c0_4, %c0_5], %4 {strides = array<i32>} : memref<24x512xf32, #tpu.memory_space<vmem>>, vector<24x128xf32>,
    %cst_6 = arith.constant 0.000000e+00 : f32
    %6 = vector.broadcast %cst_6 : f32 to vector<24x128xf32>
    %c0_7 = arith.constant 0 : index
    %c384_8 = arith.constant 384 : index
    %7 = vector.load %arg8[%c0_7, %c384_8] : memref<24x512xf32, #tpu.memory_space<vmem>>, vector<24x128xf32>
    tpu.vector_store %arg8[%c0_7, %c384_8], %6 {strides = array<i32>} : memref<24x512xf32, #tpu.memory_space<vmem>>, vector<24x128xf32>,
    %c0_9 = arith.constant 0 : index
    %c0_10 = arith.constant 0 : index
    %8 = vector.load %arg1[%c0_9, %c0_10] : memref<7x256xf32, #tpu.memory_space<vmem>>, vector<7x256xf32>
    %c0_11 = arith.constant 0 : index
    %c0_12 = arith.constant 0 : index
    %9 = vector.load %arg2[%c0_11, %c0_12] : memref<7x256xf32, #tpu.memory_space<vmem>>, vector<7x256xf32>
    %c0_13 = arith.constant 0 : index
    %c0_14 = arith.constant 0 : index
    %10 = vector.load %arg3[%c0_13, %c0_14] : memref<24x224xf32, #tpu.memory_space<vmem>>, vector<24x224xf32>
    %c0_15 = arith.constant 0 : index
    %c0_16 = arith.constant 0 : index
    %11 = vector.load %arg4[%c0_15, %c0_16] : memref<256x72xf32, #tpu.memory_space<vmem>>, vector<256x72xf32>
    %c0_17 = arith.constant 0 : index
    %c0_18 = arith.constant 0 : index
    %c0_19 = arith.constant 0 : index
    %c0_20 = arith.constant 0 : index
    %12 = vector.load %arg5[%c0_17, %c0_18, %c0_19, %c0_20] : memref<2x2x32x256xf32, #tpu.memory_space<vmem>>, vector<1x1x32x256xf32>
    %13 = vector.shape_cast %12 : vector<1x1x32x256xf32> to vector<32x256xf32>
    %c0_21 = arith.constant 0 : index
    %c1 = arith.constant 1 : index
    %c0_22 = arith.constant 0 : index
    %c0_23 = arith.constant 0 : index
    %14 = vector.load %arg5[%c0_21, %c1, %c0_22, %c0_23] : memref<2x2x32x256xf32, #tpu.memory_space<vmem>>, vector<1x1x32x256xf32>
    %15 = vector.shape_cast %14 : vector<1x1x32x256xf32> to vector<32x256xf32>
    %16 = arith.addf %13, %15 : vector<32x256xf32>
    %c0_24 = arith.constant 0 : index
    %c128 = arith.constant 128 : index
    %17 = vector.load %arg7[%c0_24, %c128] : memref<32x512xf32, #tpu.memory_space<vmem>>, vector<32x256xf32>
    tpu.vector_store %arg7[%c0_24, %c128], %16 {strides = array<i32>} : memref<32x512xf32, #tpu.memory_space<vmem>>, vector<32x256xf32>,
    %c0_25 = arith.constant 0 : index
    %c124 = arith.constant 124 : index
    %18 = vector.load %arg7[%c0_25, %c124] : memref<32x512xf32, #tpu.memory_space<vmem>>, vector<32x256xf32>
    %c0_26 = arith.constant 0 : index
    %c140 = arith.constant 140 : index
    %19 = vector.load %arg7[%c0_26, %c140] : memref<32x512xf32, #tpu.memory_space<vmem>>, vector<32x256xf32>
    %20 = vector.extract_strided_slice %8 {offsets = [0, 0], sizes = [1, 256], strides = [1, 1]} : vector<7x256xf32> to vector<1x256xf32>
    %21 = vector.broadcast %20 : vector<1x256xf32> to vector<32x256xf32>
    %22 = arith.mulf %18, %21 : vector<32x256xf32>
    %23 = vector.extract_strided_slice %9 {offsets = [0, 0], sizes = [1, 256], strides = [1, 1]} : vector<7x256xf32> to vector<1x256xf32>
    %24 = vector.broadcast %23 : vector<1x256xf32> to vector<32x256xf32>
    %25 = arith.mulf %19, %24 : vector<32x256xf32>
    %26 = arith.addf %22, %25 : vector<32x256xf32>
    %c0_27 = arith.constant 0 : index
    %c0_28 = arith.constant 0 : index
    %27 = vector.load %arg9[%c0_27, %c0_28] : memref<224x256xf32, #tpu.memory_space<vmem>>, vector<32x256xf32>
    tpu.vector_store %arg9[%c0_27, %c0_28], %26 {strides = array<i32>} : memref<224x256xf32, #tpu.memory_space<vmem>>, vector<32x256xf32>,
    %c0_29 = arith.constant 0 : index
    %c125 = arith.constant 125 : index
    %28 = vector.load %arg7[%c0_29, %c125] : memref<32x512xf32, #tpu.memory_space<vmem>>, vector<32x256xf32>
    %c0_30 = arith.constant 0 : index
    %c141 = arith.constant 141 : index
    %29 = vector.load %arg7[%c0_30, %c141] : memref<32x512xf32, #tpu.memory_space<vmem>>, vector<32x256xf32>
    %30 = vector.extract_strided_slice %8 {offsets = [1, 0], sizes = [1, 256], strides = [1, 1]} : vector<7x256xf32> to vector<1x256xf32>
    %31 = vector.broadcast %30 : vector<1x256xf32> to vector<32x256xf32>
    %32 = arith.mulf %28, %31 : vector<32x256xf32>
    %33 = vector.extract_strided_slice %9 {offsets = [1, 0], sizes = [1, 256], strides = [1, 1]} : vector<7x256xf32> to vector<1x256xf32>
    %34 = vector.broadcast %33 : vector<1x256xf32> to vector<32x256xf32>
    %35 = arith.mulf %29, %34 : vector<32x256xf32>
    %36 = arith.addf %32, %35 : vector<32x256xf32>
    %c32 = arith.constant 32 : index
    %c0_31 = arith.constant 0 : index
    %37 = vector.load %arg9[%c32, %c0_31] : memref<224x256xf32, #tpu.memory_space<vmem>>, vector<32x256xf32>
    tpu.vector_store %arg9[%c32, %c0_31], %36 {strides = array<i32>} : memref<224x256xf32, #tpu.memory_space<vmem>>, vector<32x256xf32>,
    %c0_32 = arith.constant 0 : index
    %c126 = arith.constant 126 : index
    %38 = vector.load %arg7[%c0_32, %c126] : memref<32x512xf32, #tpu.memory_space<vmem>>, vector<32x256xf32>
    %c0_33 = arith.constant 0 : index
    %c142 = arith.constant 142 : index
    %39 = vector.load %arg7[%c0_33, %c142] : memref<32x512xf32, #tpu.memory_space<vmem>>, vector<32x256xf32>
    %40 = vector.extract_strided_slice %8 {offsets = [2, 0], sizes = [1, 256], strides = [1, 1]} : vector<7x256xf32> to vector<1x256xf32>
    %41 = vector.broadcast %40 : vector<1x256xf32> to vector<32x256xf32>
    %42 = arith.mulf %38, %41 : vector<32x256xf32>
    %43 = vector.extract_strided_slice %9 {offsets = [2, 0], sizes = [1, 256], strides = [1, 1]} : vector<7x256xf32> to vector<1x256xf32>
    %44 = vector.broadcast %43 : vector<1x256xf32> to vector<32x256xf32>
    %45 = arith.mulf %39, %44 : vector<32x256xf32>
    %46 = arith.addf %42, %45 : vector<32x256xf32>
    %c64 = arith.constant 64 : index
    %c0_34 = arith.constant 0 : index
    %47 = vector.load %arg9[%c64, %c0_34] : memref<224x256xf32, #tpu.memory_space<vmem>>, vector<32x256xf32>
    tpu.vector_store %arg9[%c64, %c0_34], %46 {strides = array<i32>} : memref<224x256xf32, #tpu.memory_space<vmem>>, vector<32x256xf32>,
    %c0_35 = arith.constant 0 : index
    %c127 = arith.constant 127 : index
    %48 = vector.load %arg7[%c0_35, %c127] : memref<32x512xf32, #tpu.memory_space<vmem>>, vector<32x256xf32>
    %c0_36 = arith.constant 0 : index
    %c143 = arith.constant 143 : index
    %49 = vector.load %arg7[%c0_36, %c143] : memref<32x512xf32, #tpu.memory_space<vmem>>, vector<32x256xf32>
    %50 = vector.extract_strided_slice %8 {offsets = [3, 0], sizes = [1, 256], strides = [1, 1]} : vector<7x256xf32> to vector<1x256xf32>
    %51 = vector.broadcast %50 : vector<1x256xf32> to vector<32x256xf32>
    %52 = arith.mulf %48, %51 : vector<32x256xf32>
    %53 = vector.extract_strided_slice %9 {offsets = [3, 0], sizes = [1, 256], strides = [1, 1]} : vector<7x256xf32> to vector<1x256xf32>
    %54 = vector.broadcast %53 : vector<1x256xf32> to vector<32x256xf32>
    %55 = arith.mulf %49, %54 : vector<32x256xf32>
    %56 = arith.addf %52, %55 : vector<32x256xf32>
    %c96 = arith.constant 96 : index
    %c0_37 = arith.constant 0 : index
    %57 = vector.load %arg9[%c96, %c0_37] : memref<224x256xf32, #tpu.memory_space<vmem>>, vector<32x256xf32>
    tpu.vector_store %arg9[%c96, %c0_37], %56 {strides = array<i32>} : memref<224x256xf32, #tpu.memory_space<vmem>>, vector<32x256xf32>,
    %c0_38 = arith.constant 0 : index
    %c128_39 = arith.constant 128 : index
    %58 = vector.load %arg7[%c0_38, %c128_39] : memref<32x512xf32, #tpu.memory_space<vmem>>, vector<32x256xf32>
    %c0_40 = arith.constant 0 : index
    %c144 = arith.constant 144 : index
    %59 = vector.load %arg7[%c0_40, %c144] : memref<32x512xf32, #tpu.memory_space<vmem>>, vector<32x256xf32>
    %60 = vector.extract_strided_slice %8 {offsets = [4, 0], sizes = [1, 256], strides = [1, 1]} : vector<7x256xf32> to vector<1x256xf32>
    %61 = vector.broadcast %60 : vector<1x256xf32> to vector<32x256xf32>
    %62 = arith.mulf %58, %61 : vector<32x256xf32>
    %63 = vector.extract_strided_slice %9 {offsets = [4, 0], sizes = [1, 256], strides = [1, 1]} : vector<7x256xf32> to vector<1x256xf32>
    %64 = vector.broadcast %63 : vector<1x256xf32> to vector<32x256xf32>
    %65 = arith.mulf %59, %64 : vector<32x256xf32>
    %66 = arith.addf %62, %65 : vector<32x256xf32>
    %c128_41 = arith.constant 128 : index
    %c0_42 = arith.constant 0 : index
    %67 = vector.load %arg9[%c128_41, %c0_42] : memref<224x256xf32, #tpu.memory_space<vmem>>, vector<32x256xf32>
    tpu.vector_store %arg9[%c128_41, %c0_42], %66 {strides = array<i32>} : memref<224x256xf32, #tpu.memory_space<vmem>>, vector<32x256xf32>,
    %c0_43 = arith.constant 0 : index
    %c129 = arith.constant 129 : index
    %68 = vector.load %arg7[%c0_43, %c129] : memref<32x512xf32, #tpu.memory_space<vmem>>, vector<32x256xf32>
    %c0_44 = arith.constant 0 : index
    %c145 = arith.constant 145 : index
    %69 = vector.load %arg7[%c0_44, %c145] : memref<32x512xf32, #tpu.memory_space<vmem>>, vector<32x256xf32>
    %70 = vector.extract_strided_slice %8 {offsets = [5, 0], sizes = [1, 256], strides = [1, 1]} : vector<7x256xf32> to vector<1x256xf32>
    %71 = vector.broadcast %70 : vector<1x256xf32> to vector<32x256xf32>
    %72 = arith.mulf %68, %71 : vector<32x256xf32>
    %73 = vector.extract_strided_slice %9 {offsets = [5, 0], sizes = [1, 256], strides = [1, 1]} : vector<7x256xf32> to vector<1x256xf32>
    %74 = vector.broadcast %73 : vector<1x256xf32> to vector<32x256xf32>
    %75 = arith.mulf %69, %74 : vector<32x256xf32>
    %76 = arith.addf %72, %75 : vector<32x256xf32>
    %c160 = arith.constant 160 : index
    %c0_45 = arith.constant 0 : index
    %77 = vector.load %arg9[%c160, %c0_45] : memref<224x256xf32, #tpu.memory_space<vmem>>, vector<32x256xf32>
    tpu.vector_store %arg9[%c160, %c0_45], %76 {strides = array<i32>} : memref<224x256xf32, #tpu.memory_space<vmem>>, vector<32x256xf32>,
    %c0_46 = arith.constant 0 : index
    %c130 = arith.constant 130 : index
    %78 = vector.load %arg7[%c0_46, %c130] : memref<32x512xf32, #tpu.memory_space<vmem>>, vector<32x256xf32>
    %c0_47 = arith.constant 0 : index
    %c146 = arith.constant 146 : index
    %79 = vector.load %arg7[%c0_47, %c146] : memref<32x512xf32, #tpu.memory_space<vmem>>, vector<32x256xf32>
    %80 = vector.extract_strided_slice %8 {offsets = [6, 0], sizes = [1, 256], strides = [1, 1]} : vector<7x256xf32> to vector<1x256xf32>
    %81 = vector.broadcast %80 : vector<1x256xf32> to vector<32x256xf32>
    %82 = arith.mulf %78, %81 : vector<32x256xf32>
    %83 = vector.extract_strided_slice %9 {offsets = [6, 0], sizes = [1, 256], strides = [1, 1]} : vector<7x256xf32> to vector<1x256xf32>
    %84 = vector.broadcast %83 : vector<1x256xf32> to vector<32x256xf32>
    %85 = arith.mulf %79, %84 : vector<32x256xf32>
    %86 = arith.addf %82, %85 : vector<32x256xf32>
    %c192 = arith.constant 192 : index
    %c0_48 = arith.constant 0 : index
    %87 = vector.load %arg9[%c192, %c0_48] : memref<224x256xf32, #tpu.memory_space<vmem>>, vector<32x256xf32>
    tpu.vector_store %arg9[%c192, %c0_48], %86 {strides = array<i32>} : memref<224x256xf32, #tpu.memory_space<vmem>>, vector<32x256xf32>,
    %c0_49 = arith.constant 0 : index
    %c0_50 = arith.constant 0 : index
    %88 = vector.load %arg9[%c0_49, %c0_50] : memref<224x256xf32, #tpu.memory_space<vmem>>, vector<224x256xf32>
    %cst_51 = arith.constant dense<0.000000e+00> : vector<24x256xf32>
    %89 = tpu.matmul %10, %88, %cst_51 {dimension_numbers = #tpu.dot_dimension_numbers<[1], [0], [0], [1], [0, 0, 1, 1], [], []>} : vector<24x224xf32>, vector<224x256xf32>, vector<24x256xf32> -> vector<24x256xf32>
    %c0_52 = arith.constant 0 : index
    %c128_53 = arith.constant 128 : index
    %90 = vector.load %arg8[%c0_52, %c128_53] : memref<24x512xf32, #tpu.memory_space<vmem>>, vector<24x256xf32>
    tpu.vector_store %arg8[%c0_52, %c128_53], %89 {strides = array<i32>} : memref<24x512xf32, #tpu.memory_space<vmem>>, vector<24x256xf32>,
    %c0_54 = arith.constant 0 : index
    %c112 = arith.constant 112 : index
    %91 = vector.load %arg8[%c0_54, %c112] : memref<24x512xf32, #tpu.memory_space<vmem>>, vector<24x256xf32>
    %c0_55 = arith.constant 0 : index
    %c0_56 = arith.constant 0 : index
    %92 = vector.load %arg10[%c0_55, %c0_56] : memref<72x256xf32, #tpu.memory_space<vmem>>, vector<24x256xf32>
    tpu.vector_store %arg10[%c0_55, %c0_56], %91 {strides = array<i32>} : memref<72x256xf32, #tpu.memory_space<vmem>>, vector<24x256xf32>,
    %c0_57 = arith.constant 0 : index
    %c128_58 = arith.constant 128 : index
    %93 = vector.load %arg8[%c0_57, %c128_58] : memref<24x512xf32, #tpu.memory_space<vmem>>, vector<24x256xf32>
    %c24 = arith.constant 24 : index
    %c0_59 = arith.constant 0 : index
    %94 = vector.load %arg10[%c24, %c0_59] : memref<72x256xf32, #tpu.memory_space<vmem>>, vector<24x256xf32>
    tpu.vector_store %arg10[%c24, %c0_59], %93 {strides = array<i32>} : memref<72x256xf32, #tpu.memory_space<vmem>>, vector<24x256xf32>,
    %c0_60 = arith.constant 0 : index
    %c144_61 = arith.constant 144 : index
    %95 = vector.load %arg8[%c0_60, %c144_61] : memref<24x512xf32, #tpu.memory_space<vmem>>, vector<24x256xf32>
    %c48 = arith.constant 48 : index
    %c0_62 = arith.constant 0 : index
    %96 = vector.load %arg10[%c48, %c0_62] : memref<72x256xf32, #tpu.memory_space<vmem>>, vector<24x256xf32>
    tpu.vector_store %arg10[%c48, %c0_62], %95 {strides = array<i32>} : memref<72x256xf32, #tpu.memory_space<vmem>>, vector<24x256xf32>,
    %c0_63 = arith.constant 0 : index
    %c0_64 = arith.constant 0 : index
    %97 = vector.load %arg10[%c0_63, %c0_64] : memref<72x256xf32, #tpu.memory_space<vmem>>, vector<72x256xf32>
    %cst_65 = arith.constant dense<0.000000e+00> : vector<256x256xf32>
    %98 = tpu.matmul %11, %97, %cst_65 {dimension_numbers = #tpu.dot_dimension_numbers<[1], [0], [0], [1], [0, 0, 1, 1], [], []>} : vector<256x72xf32>, vector<72x256xf32>, vector<256x256xf32> -> vector<256x256xf32>
    %c0_66 = arith.constant 0 : index
    %c0_67 = arith.constant 0 : index
    %c0_68 = arith.constant 0 : index
    %99 = vector.load %arg6[%c0_66, %c0_67, %c0_68] : memref<2x256x256xf32, #tpu.memory_space<vmem>>, vector<1x256x256xf32>
    %100 = vector.shape_cast %99 : vector<1x256x256xf32> to vector<256x256xf32>
    %101 = vector.shape_cast %98 : vector<256x256xf32> to vector<1x256x256xf32>
    tpu.vector_store %arg6[%c0_66, %c0_67, %c0_68], %101 {strides = array<i32>} : memref<2x256x256xf32, #tpu.memory_space<vmem>>, vector<1x256x256xf32>,
    %c1_69 = arith.constant 1 : index
    %c0_70 = arith.constant 0 : index
    %c0_71 = arith.constant 0 : index
    %c0_72 = arith.constant 0 : index
    %102 = vector.load %arg5[%c1_69, %c0_70, %c0_71, %c0_72] : memref<2x2x32x256xf32, #tpu.memory_space<vmem>>, vector<1x1x32x256xf32>
    %103 = vector.shape_cast %102 : vector<1x1x32x256xf32> to vector<32x256xf32>
    %c1_73 = arith.constant 1 : index
    %c1_74 = arith.constant 1 : index
    %c0_75 = arith.constant 0 : index
    %c0_76 = arith.constant 0 : index
    %104 = vector.load %arg5[%c1_73, %c1_74, %c0_75, %c0_76] : memref<2x2x32x256xf32, #tpu.memory_space<vmem>>, vector<1x1x32x256xf32>
    %105 = vector.shape_cast %104 : vector<1x1x32x256xf32> to vector<32x256xf32>
    %106 = arith.addf %103, %105 : vector<32x256xf32>
    %c0_77 = arith.constant 0 : index
    %c128_78 = arith.constant 128 : index
    %107 = vector.load %arg7[%c0_77, %c128_78] : memref<32x512xf32, #tpu.memory_space<vmem>>, vector<32x256xf32>
    tpu.vector_store %arg7[%c0_77, %c128_78], %106 {strides = array<i32>} : memref<32x512xf32, #tpu.memory_space<vmem>>, vector<32x256xf32>,
    %c0_79 = arith.constant 0 : index
    %c124_80 = arith.constant 124 : index
    %108 = vector.load %arg7[%c0_79, %c124_80] : memref<32x512xf32, #tpu.memory_space<vmem>>, vector<32x256xf32>
    %c0_81 = arith.constant 0 : index
    %c140_82 = arith.constant 140 : index
    %109 = vector.load %arg7[%c0_81, %c140_82] : memref<32x512xf32, #tpu.memory_space<vmem>>, vector<32x256xf32>
    %110 = vector.extract_strided_slice %8 {offsets = [0, 0], sizes = [1, 256], strides = [1, 1]} : vector<7x256xf32> to vector<1x256xf32>
    %111 = vector.broadcast %110 : vector<1x256xf32> to vector<32x256xf32>
    %112 = arith.mulf %108, %111 : vector<32x256xf32>
    %113 = vector.extract_strided_slice %9 {offsets = [0, 0], sizes = [1, 256], strides = [1, 1]} : vector<7x256xf32> to vector<1x256xf32>
    %114 = vector.broadcast %113 : vector<1x256xf32> to vector<32x256xf32>
    %115 = arith.mulf %109, %114 : vector<32x256xf32>
    %116 = arith.addf %112, %115 : vector<32x256xf32>
    %c0_83 = arith.constant 0 : index
    %c0_84 = arith.constant 0 : index
    %117 = vector.load %arg9[%c0_83, %c0_84] : memref<224x256xf32, #tpu.memory_space<vmem>>, vector<32x256xf32>
    tpu.vector_store %arg9[%c0_83, %c0_84], %116 {strides = array<i32>} : memref<224x256xf32, #tpu.memory_space<vmem>>, vector<32x256xf32>,
    %c0_85 = arith.constant 0 : index
    %c125_86 = arith.constant 125 : index
    %118 = vector.load %arg7[%c0_85, %c125_86] : memref<32x512xf32, #tpu.memory_space<vmem>>, vector<32x256xf32>
    %c0_87 = arith.constant 0 : index
    %c141_88 = arith.constant 141 : index
    %119 = vector.load %arg7[%c0_87, %c141_88] : memref<32x512xf32, #tpu.memory_space<vmem>>, vector<32x256xf32>
    %120 = vector.extract_strided_slice %8 {offsets = [1, 0], sizes = [1, 256], strides = [1, 1]} : vector<7x256xf32> to vector<1x256xf32>
    %121 = vector.broadcast %120 : vector<1x256xf32> to vector<32x256xf32>
    %122 = arith.mulf %118, %121 : vector<32x256xf32>
    %123 = vector.extract_strided_slice %9 {offsets = [1, 0], sizes = [1, 256], strides = [1, 1]} : vector<7x256xf32> to vector<1x256xf32>
    %124 = vector.broadcast %123 : vector<1x256xf32> to vector<32x256xf32>
    %125 = arith.mulf %119, %124 : vector<32x256xf32>
    %126 = arith.addf %122, %125 : vector<32x256xf32>
    %c32_89 = arith.constant 32 : index
    %c0_90 = arith.constant 0 : index
    %127 = vector.load %arg9[%c32_89, %c0_90] : memref<224x256xf32, #tpu.memory_space<vmem>>, vector<32x256xf32>
    tpu.vector_store %arg9[%c32_89, %c0_90], %126 {strides = array<i32>} : memref<224x256xf32, #tpu.memory_space<vmem>>, vector<32x256xf32>,
    %c0_91 = arith.constant 0 : index
    %c126_92 = arith.constant 126 : index
    %128 = vector.load %arg7[%c0_91, %c126_92] : memref<32x512xf32, #tpu.memory_space<vmem>>, vector<32x256xf32>
    %c0_93 = arith.constant 0 : index
    %c142_94 = arith.constant 142 : index
    %129 = vector.load %arg7[%c0_93, %c142_94] : memref<32x512xf32, #tpu.memory_space<vmem>>, vector<32x256xf32>
    %130 = vector.extract_strided_slice %8 {offsets = [2, 0], sizes = [1, 256], strides = [1, 1]} : vector<7x256xf32> to vector<1x256xf32>
    %131 = vector.broadcast %130 : vector<1x256xf32> to vector<32x256xf32>
    %132 = arith.mulf %128, %131 : vector<32x256xf32>
    %133 = vector.extract_strided_slice %9 {offsets = [2, 0], sizes = [1, 256], strides = [1, 1]} : vector<7x256xf32> to vector<1x256xf32>
    %134 = vector.broadcast %133 : vector<1x256xf32> to vector<32x256xf32>
    %135 = arith.mulf %129, %134 : vector<32x256xf32>
    %136 = arith.addf %132, %135 : vector<32x256xf32>
    %c64_95 = arith.constant 64 : index
    %c0_96 = arith.constant 0 : index
    %137 = vector.load %arg9[%c64_95, %c0_96] : memref<224x256xf32, #tpu.memory_space<vmem>>, vector<32x256xf32>
    tpu.vector_store %arg9[%c64_95, %c0_96], %136 {strides = array<i32>} : memref<224x256xf32, #tpu.memory_space<vmem>>, vector<32x256xf32>,
    %c0_97 = arith.constant 0 : index
    %c127_98 = arith.constant 127 : index
    %138 = vector.load %arg7[%c0_97, %c127_98] : memref<32x512xf32, #tpu.memory_space<vmem>>, vector<32x256xf32>
    %c0_99 = arith.constant 0 : index
    %c143_100 = arith.constant 143 : index
    %139 = vector.load %arg7[%c0_99, %c143_100] : memref<32x512xf32, #tpu.memory_space<vmem>>, vector<32x256xf32>
    %140 = vector.extract_strided_slice %8 {offsets = [3, 0], sizes = [1, 256], strides = [1, 1]} : vector<7x256xf32> to vector<1x256xf32>
    %141 = vector.broadcast %140 : vector<1x256xf32> to vector<32x256xf32>
    %142 = arith.mulf %138, %141 : vector<32x256xf32>
    %143 = vector.extract_strided_slice %9 {offsets = [3, 0], sizes = [1, 256], strides = [1, 1]} : vector<7x256xf32> to vector<1x256xf32>
    %144 = vector.broadcast %143 : vector<1x256xf32> to vector<32x256xf32>
    %145 = arith.mulf %139, %144 : vector<32x256xf32>
    %146 = arith.addf %142, %145 : vector<32x256xf32>
    %c96_101 = arith.constant 96 : index
    %c0_102 = arith.constant 0 : index
    %147 = vector.load %arg9[%c96_101, %c0_102] : memref<224x256xf32, #tpu.memory_space<vmem>>, vector<32x256xf32>
    tpu.vector_store %arg9[%c96_101, %c0_102], %146 {strides = array<i32>} : memref<224x256xf32, #tpu.memory_space<vmem>>, vector<32x256xf32>,
    %c0_103 = arith.constant 0 : index
    %c128_104 = arith.constant 128 : index
    %148 = vector.load %arg7[%c0_103, %c128_104] : memref<32x512xf32, #tpu.memory_space<vmem>>, vector<32x256xf32>
    %c0_105 = arith.constant 0 : index
    %c144_106 = arith.constant 144 : index
    %149 = vector.load %arg7[%c0_105, %c144_106] : memref<32x512xf32, #tpu.memory_space<vmem>>, vector<32x256xf32>
    %150 = vector.extract_strided_slice %8 {offsets = [4, 0], sizes = [1, 256], strides = [1, 1]} : vector<7x256xf32> to vector<1x256xf32>
    %151 = vector.broadcast %150 : vector<1x256xf32> to vector<32x256xf32>
    %152 = arith.mulf %148, %151 : vector<32x256xf32>
    %153 = vector.extract_strided_slice %9 {offsets = [4, 0], sizes = [1, 256], strides = [1, 1]} : vector<7x256xf32> to vector<1x256xf32>
    %154 = vector.broadcast %153 : vector<1x256xf32> to vector<32x256xf32>
    %155 = arith.mulf %149, %154 : vector<32x256xf32>
    %156 = arith.addf %152, %155 : vector<32x256xf32>
    %c128_107 = arith.constant 128 : index
    %c0_108 = arith.constant 0 : index
    %157 = vector.load %arg9[%c128_107, %c0_108] : memref<224x256xf32, #tpu.memory_space<vmem>>, vector<32x256xf32>
    tpu.vector_store %arg9[%c128_107, %c0_108], %156 {strides = array<i32>} : memref<224x256xf32, #tpu.memory_space<vmem>>, vector<32x256xf32>,
    %c0_109 = arith.constant 0 : index
    %c129_110 = arith.constant 129 : index
    %158 = vector.load %arg7[%c0_109, %c129_110] : memref<32x512xf32, #tpu.memory_space<vmem>>, vector<32x256xf32>
    %c0_111 = arith.constant 0 : index
    %c145_112 = arith.constant 145 : index
    %159 = vector.load %arg7[%c0_111, %c145_112] : memref<32x512xf32, #tpu.memory_space<vmem>>, vector<32x256xf32>
    %160 = vector.extract_strided_slice %8 {offsets = [5, 0], sizes = [1, 256], strides = [1, 1]} : vector<7x256xf32> to vector<1x256xf32>
    %161 = vector.broadcast %160 : vector<1x256xf32> to vector<32x256xf32>
    %162 = arith.mulf %158, %161 : vector<32x256xf32>
    %163 = vector.extract_strided_slice %9 {offsets = [5, 0], sizes = [1, 256], strides = [1, 1]} : vector<7x256xf32> to vector<1x256xf32>
    %164 = vector.broadcast %163 : vector<1x256xf32> to vector<32x256xf32>
    %165 = arith.mulf %159, %164 : vector<32x256xf32>
    %166 = arith.addf %162, %165 : vector<32x256xf32>
    %c160_113 = arith.constant 160 : index
    %c0_114 = arith.constant 0 : index
    %167 = vector.load %arg9[%c160_113, %c0_114] : memref<224x256xf32, #tpu.memory_space<vmem>>, vector<32x256xf32>
    tpu.vector_store %arg9[%c160_113, %c0_114], %166 {strides = array<i32>} : memref<224x256xf32, #tpu.memory_space<vmem>>, vector<32x256xf32>,
    %c0_115 = arith.constant 0 : index
    %c130_116 = arith.constant 130 : index
    %168 = vector.load %arg7[%c0_115, %c130_116] : memref<32x512xf32, #tpu.memory_space<vmem>>, vector<32x256xf32>
    %c0_117 = arith.constant 0 : index
    %c146_118 = arith.constant 146 : index
    %169 = vector.load %arg7[%c0_117, %c146_118] : memref<32x512xf32, #tpu.memory_space<vmem>>, vector<32x256xf32>
    %170 = vector.extract_strided_slice %8 {offsets = [6, 0], sizes = [1, 256], strides = [1, 1]} : vector<7x256xf32> to vector<1x256xf32>
    %171 = vector.broadcast %170 : vector<1x256xf32> to vector<32x256xf32>
    %172 = arith.mulf %168, %171 : vector<32x256xf32>
    %173 = vector.extract_strided_slice %9 {offsets = [6, 0], sizes = [1, 256], strides = [1, 1]} : vector<7x256xf32> to vector<1x256xf32>
    %174 = vector.broadcast %173 : vector<1x256xf32> to vector<32x256xf32>
    %175 = arith.mulf %169, %174 : vector<32x256xf32>
    %176 = arith.addf %172, %175 : vector<32x256xf32>
    %c192_119 = arith.constant 192 : index
    %c0_120 = arith.constant 0 : index
    %177 = vector.load %arg9[%c192_119, %c0_120] : memref<224x256xf32, #tpu.memory_space<vmem>>, vector<32x256xf32>
    tpu.vector_store %arg9[%c192_119, %c0_120], %176 {strides = array<i32>} : memref<224x256xf32, #tpu.memory_space<vmem>>, vector<32x256xf32>,
    %c0_121 = arith.constant 0 : index
    %c0_122 = arith.constant 0 : index
    %178 = vector.load %arg9[%c0_121, %c0_122] : memref<224x256xf32, #tpu.memory_space<vmem>>, vector<224x256xf32>
    %cst_123 = arith.constant dense<0.000000e+00> : vector<24x256xf32>
    %179 = tpu.matmul %10, %178, %cst_123 {dimension_numbers = #tpu.dot_dimension_numbers<[1], [0], [0], [1], [0, 0, 1, 1], [], []>} : vector<24x224xf32>, vector<224x256xf32>, vector<24x256xf32> -> vector<24x256xf32>
    %c0_124 = arith.constant 0 : index
    %c128_125 = arith.constant 128 : index
    %180 = vector.load %arg8[%c0_124, %c128_125] : memref<24x512xf32, #tpu.memory_space<vmem>>, vector<24x256xf32>
    tpu.vector_store %arg8[%c0_124, %c128_125], %179 {strides = array<i32>} : memref<24x512xf32, #tpu.memory_space<vmem>>, vector<24x256xf32>,
    %c0_126 = arith.constant 0 : index
    %c112_127 = arith.constant 112 : index
    %181 = vector.load %arg8[%c0_126, %c112_127] : memref<24x512xf32, #tpu.memory_space<vmem>>, vector<24x256xf32>
    %c0_128 = arith.constant 0 : index
    %c0_129 = arith.constant 0 : index
    %182 = vector.load %arg10[%c0_128, %c0_129] : memref<72x256xf32, #tpu.memory_space<vmem>>, vector<24x256xf32>
    tpu.vector_store %arg10[%c0_128, %c0_129], %181 {strides = array<i32>} : memref<72x256xf32, #tpu.memory_space<vmem>>, vector<24x256xf32>,
    %c0_130 = arith.constant 0 : index
    %c128_131 = arith.constant 128 : index
    %183 = vector.load %arg8[%c0_130, %c128_131] : memref<24x512xf32, #tpu.memory_space<vmem>>, vector<24x256xf32>
    %c24_132 = arith.constant 24 : index
    %c0_133 = arith.constant 0 : index
    %184 = vector.load %arg10[%c24_132, %c0_133] : memref<72x256xf32, #tpu.memory_space<vmem>>, vector<24x256xf32>
    tpu.vector_store %arg10[%c24_132, %c0_133], %183 {strides = array<i32>} : memref<72x256xf32, #tpu.memory_space<vmem>>, vector<24x256xf32>,
    %c0_134 = arith.constant 0 : index
    %c144_135 = arith.constant 144 : index
    %185 = vector.load %arg8[%c0_134, %c144_135] : memref<24x512xf32, #tpu.memory_space<vmem>>, vector<24x256xf32>
    %c48_136 = arith.constant 48 : index
    %c0_137 = arith.constant 0 : index
    %186 = vector.load %arg10[%c48_136, %c0_137] : memref<72x256xf32, #tpu.memory_space<vmem>>, vector<24x256xf32>
    tpu.vector_store %arg10[%c48_136, %c0_137], %185 {strides = array<i32>} : memref<72x256xf32, #tpu.memory_space<vmem>>, vector<24x256xf32>,
    %c0_138 = arith.constant 0 : index
    %c0_139 = arith.constant 0 : index
    %187 = vector.load %arg10[%c0_138, %c0_139] : memref<72x256xf32, #tpu.memory_space<vmem>>, vector<72x256xf32>
    %cst_140 = arith.constant dense<0.000000e+00> : vector<256x256xf32>
    %188 = tpu.matmul %11, %187, %cst_140 {dimension_numbers = #tpu.dot_dimension_numbers<[1], [0], [0], [1], [0, 0, 1, 1], [], []>} : vector<256x72xf32>, vector<72x256xf32>, vector<256x256xf32> -> vector<256x256xf32>
    %c1_141 = arith.constant 1 : index
    %c0_142 = arith.constant 0 : index
    %c0_143 = arith.constant 0 : index
    %189 = vector.load %arg6[%c1_141, %c0_142, %c0_143] : memref<2x256x256xf32, #tpu.memory_space<vmem>>, vector<1x256x256xf32>
    %190 = vector.shape_cast %189 : vector<1x256x256xf32> to vector<256x256xf32>
    %191 = vector.shape_cast %188 : vector<256x256xf32> to vector<1x256x256xf32>
    tpu.vector_store %arg6[%c1_141, %c0_142, %c0_143], %191 {strides = array<i32>} : memref<2x256x256xf32, #tpu.memory_space<vmem>>, vector<1x256x256xf32>,
    return
  }
  func.func @transform_0(%arg0: i32) -> (i32, i32) {
    %c0_i32 = arith.constant 0 : i32
    %c0_i32_0 = arith.constant 0 : i32
    %c0_i32_1 = arith.constant 0 : i32
    return %c0_i32, %c0_i32_0 : i32, i32
  }
  func.func @transform_1(%arg0: i32) -> (i32, i32) {
    %c0_i32 = arith.constant 0 : i32
    %c0_i32_0 = arith.constant 0 : i32
    %c0_i32_1 = arith.constant 0 : i32
    return %c0_i32, %c0_i32_0 : i32, i32
  }
  func.func @transform_2(%arg0: i32) -> (i32, i32) {
    %c0_i32 = arith.constant 0 : i32
    %c0_i32_0 = arith.constant 0 : i32
    %c0_i32_1 = arith.constant 0 : i32
    return %c0_i32, %c0_i32_0 : i32, i32
  }
  func.func @transform_3(%arg0: i32) -> (i32, i32) {
    %c0_i32 = arith.constant 0 : i32
    %c0_i32_0 = arith.constant 0 : i32
    %c0_i32_1 = arith.constant 0 : i32
    return %c0_i32, %c0_i32_0 : i32, i32
  }
  func.func @transform_4(%arg0: i32) -> (i32, i32, i32, i32) {
    %c0_i32 = arith.constant 0 : i32
    %c0_i32_0 = arith.constant 0 : i32
    %c0_i32_1 = arith.constant 0 : i32
    %c0_i32_2 = arith.constant 0 : i32
    return %arg0, %c0_i32, %c0_i32_0, %c0_i32_1 : i32, i32, i32, i32
  }
  func.func @transform_5(%arg0: i32) -> (i32, i32, i32) {
    %c0_i32 = arith.constant 0 : i32
    %c0_i32_0 = arith.constant 0 : i32
    %c0_i32_1 = arith.constant 0 : i32
    return %arg0, %c0_i32, %c0_i32_0 : i32, i32, i32
  }
}

</mosaic_0001>

<llo_original>
// kernel: forward.1
$region0: #{forward.1}
  #allocation0 [shape = 'u32[]', space=smem, size = 0x4, offset = 0x4, fixed_abs, tag = 'smem constant byte address 0x4 - core index']
  #allocation1 [shape = 'u32[144,128]{1,0:T(1,128)}', space=vmem, size = 0x12000, scoped, tag = 'internal scratch']
  #allocation2 [shape = 'f32[32,512]{1,0:T(8,128)}', space=vmem, size = 0x10000, scoped, tag = 'scratch operand']
  #allocation3 [shape = 'f32[24,512]{1,0:T(8,128)}', space=vmem, size = 0xc000, scoped, tag = 'scratch operand']
  #allocation4 [shape = 'f32[224,256]{1,0:T(8,128)}', space=vmem, size = 0x38000, scoped, tag = 'scratch operand']
  #allocation5 [shape = 'f32[72,256]{1,0:T(8,128)}', space=vmem, size = 0x12000, scoped, tag = 'scratch operand']
  %s0 = inlined_call_operand.vmem [shape: f32[7,256], index: 0, kind: input, shape index: {}]
  %s1 = inlined_call_operand.vmem [shape: f32[7,256], index: 1, kind: input, shape index: {}]
  %s2 = inlined_call_operand.vmem [shape: f32[24,224], index: 2, kind: input, shape index: {}]
  %s3 = inlined_call_operand.vmem [shape: f32[256,72], index: 3, kind: input, shape index: {}]
  %s4 = inlined_call_operand.vmem [shape: f32[2,2,32,256], index: 4, kind: input, shape index: {}]
  %s5 = inlined_call_operand.vmem [shape: f32[2,256,256], index: 5, kind: output, shape index: {}]
  %s6 = sld [smem:[#allocation0]]
  $region30: #{forward.1} parent=0
    _
  %s8 = ssub.s32 1, %s6
  %s9 = scalar_select 0, %s8, %s6
  // Predicated region
  $region2: #{forward.1} parent=0 // pred_check
    _
  $region3: #{forward.1} parent=0 // pred_check_branch
    %11 = sbr.rel (0) target = $region5
  $region4: #{forward.1} parent=0 // pred_region
    _
  $region5: #{forward.1} parent=0 // pred_fallthru
    _
  // Predicated region
  $region6: #{forward.1} parent=0 // pred_check
    _
  $region7: #{forward.1} parent=0 // pred_check_branch
    %13 = sbr.rel (0) target = $region9
  $region8: #{forward.1} parent=0 // pred_region
    _
  $region9: #{forward.1} parent=0 // pred_fallthru
    _
  // Predicated region
  $region10: #{forward.1} parent=0 // pred_check
    _
  $region11: #{forward.1} parent=0 // pred_check_branch
    %15 = sbr.rel (0) target = $region13
  $region12: #{forward.1} parent=0 // pred_region
    _
  $region13: #{forward.1} parent=0 // pred_fallthru
    _
  // Predicated region
  $region14: #{forward.1} parent=0 // pred_check
    _
  $region15: #{forward.1} parent=0 // pred_check_branch
    %17 = sbr.rel (0) target = $region17
  $region16: #{forward.1} parent=0 // pred_region
    _
  $region17: #{forward.1} parent=0 // pred_fallthru
    _
  // Predicated region
  $region18: #{forward.1} parent=0 // pred_check
    _
  $region19: #{forward.1} parent=0 // pred_check_branch
    %19 = sbr.rel (0) target = $region21
  $region20: #{forward.1} parent=0 // pred_region
    _
  $region21: #{forward.1} parent=0 // pred_fallthru
    _
  %20 = vst [vmem:[#allocation2] sm:$0xff] 0.0
  %21 = vst [vmem:[#allocation2 + $0x20] sm:$0xff] 0.0
  %22 = vst [vmem:[#allocation2 + $0x40] sm:$0xff] 0.0
  %23 = vst [vmem:[#allocation2 + $0x60] sm:$0xff] 0.0
  %24 = vst [vmem:[#allocation2 + $0x18] sm:$0xff] 0.0
  %25 = vst [vmem:[#allocation2 + $0x38] sm:$0xff] 0.0
  %26 = vst [vmem:[#allocation2 + $0x58] sm:$0xff] 0.0
  %27 = vst [vmem:[#allocation2 + $0x78] sm:$0xff] 0.0
  %28 = vst [vmem:[#allocation3] sm:$0xff] 0.0
  %29 = vst [vmem:[#allocation3 + $0x20] sm:$0xff] 0.0
  %30 = vst [vmem:[#allocation3 + $0x40] sm:$0xff] 0.0
  %31 = vst [vmem:[#allocation3 + $0x18] sm:$0xff] 0.0
  %32 = vst [vmem:[#allocation3 + $0x38] sm:$0xff] 0.0
  %33 = vst [vmem:[#allocation3 + $0x58] sm:$0xff] 0.0
  %v34 = vld [vmem:[%s0] sm:$0x7f]
  %v35 = vld [vmem:[%s0 + $0x8] sm:$0x7f]
  %v36 = vld [vmem:[%s1] sm:$0x7f]
  %v37 = vld [vmem:[%s1 + $0x8] sm:$0x7f]
  %v38 = vld [vmem:[%s2] sm:$0xff]
  %v39 = vld [vmem:[%s2 + $0x8] sm:$0xff]
  %v40 = vld [vmem:[%s2 + $0x10] sm:$0xff]
  %v41 = vld [vmem:[%s2 + $0x18] sm:$0xff]
  %v42 = vld [vmem:[%s2 + $0x20] sm:$0xff]
  %v43 = vld [vmem:[%s2 + $0x28] sm:$0xff]
  %v44 = vld [vmem:[%s3] sm:$0xff]
  %v45 = vld [vmem:[%s3 + $0x8] sm:$0xff]
  %v46 = vld [vmem:[%s3 + $0x10] sm:$0xff]
  %v47 = vld [vmem:[%s3 + $0x18] sm:$0xff]
  %v48 = vld [vmem:[%s3 + $0x20] sm:$0xff]
  %v49 = vld [vmem:[%s3 + $0x28] sm:$0xff]
  %v50 = vld [vmem:[%s3 + $0x30] sm:$0xff]
  %v51 = vld [vmem:[%s3 + $0x38] sm:$0xff]
  %v52 = vld [vmem:[%s3 + $0x40] sm:$0xff]
  %v53 = vld [vmem:[%s3 + $0x48] sm:$0xff]
  %v54 = vld [vmem:[%s3 + $0x50] sm:$0xff]
  %v55 = vld [vmem:[%s3 + $0x58] sm:$0xff]
  %v56 = vld [vmem:[%s3 + $0x60] sm:$0xff]
  %v57 = vld [vmem:[%s3 + $0x68] sm:$0xff]
  %v58 = vld [vmem:[%s3 + $0x70] sm:$0xff]
  %v59 = vld [vmem:[%s3 + $0x78] sm:$0xff]
  %v60 = vld [vmem:[%s3 + $0x80] sm:$0xff]
  %v61 = vld [vmem:[%s3 + $0x88] sm:$0xff]
  %v62 = vld [vmem:[%s3 + $0x90] sm:$0xff]
  %v63 = vld [vmem:[%s3 + $0x98] sm:$0xff]
  %v64 = vld [vmem:[%s3 + $0xa0] sm:$0xff]
  %v65 = vld [vmem:[%s3 + $0xa8] sm:$0xff]
  %v66 = vld [vmem:[%s3 + $0xb0] sm:$0xff]
  %v67 = vld [vmem:[%s3 + $0xb8] sm:$0xff]
  %v68 = vld [vmem:[%s3 + $0xc0] sm:$0xff]
  %v69 = vld [vmem:[%s3 + $0xc8] sm:$0xff]
  %v70 = vld [vmem:[%s3 + $0xd0] sm:$0xff]
  %v71 = vld [vmem:[%s3 + $0xd8] sm:$0xff]
  %v72 = vld [vmem:[%s3 + $0xe0] sm:$0xff]
  %v73 = vld [vmem:[%s3 + $0xe8] sm:$0xff]
  %v74 = vld [vmem:[%s3 + $0xf0] sm:$0xff]
  %v75 = vld [vmem:[%s3 + $0xf8] sm:$0xff]
  %v76 = vld [vmem:[%s4] sm:$0xff]
  %v77 = vld [vmem:[%s4 + $0x8] sm:$0xff]
  %v78 = vld [vmem:[%s4 + $0x10] sm:$0xff]
  %v79 = vld [vmem:[%s4 + $0x18] sm:$0xff]
  %v80 = vld [vmem:[%s4 + $0x20] sm:$0xff]
  %v81 = vld [vmem:[%s4 + $0x28] sm:$0xff]
  %v82 = vld [vmem:[%s4 + $0x30] sm:$0xff]
  %v83 = vld [vmem:[%s4 + $0x38] sm:$0xff]
  %s84 = scalar_lea.vmem %s4, 64
  %v85 = vld [vmem:[%s84] sm:$0xff]
  %v86 = vld [vmem:[%s84 + $0x8] sm:$0xff]
  %v87 = vld [vmem:[%s84 + $0x10] sm:$0xff]
  %v88 = vld [vmem:[%s84 + $0x18] sm:$0xff]
  %v89 = vld [vmem:[%s84 + $0x20] sm:$0xff]
  %v90 = vld [vmem:[%s84 + $0x28] sm:$0xff]
  %v91 = vld [vmem:[%s84 + $0x30] sm:$0xff]
  %v92 = vld [vmem:[%s84 + $0x38] sm:$0xff]
  %v93 = vadd.f32 %v76, %v85
  %v94 = vadd.f32 %v77, %v86
  %v95 = vadd.f32 %v78, %v87
  %v96 = vadd.f32 %v79, %v88
  %v97 = vadd.f32 %v80, %v89
  %v98 = vadd.f32 %v81, %v90
  %v99 = vadd.f32 %v82, %v91
  %v100 = vadd.f32 %v83, %v92
  %101 = vst [vmem:[#allocation2 + $0x8] sm:$0xff] %v93
  %102 = vst [vmem:[#allocation2 + $0x10] sm:$0xff] %v94
  %103 = vst [vmem:[#allocation2 + $0x28] sm:$0xff] %v95
  %104 = vst [vmem:[#allocation2 + $0x30] sm:$0xff] %v96
  %105 = vst [vmem:[#allocation2 + $0x48] sm:$0xff] %v97
  %106 = vst [vmem:[#allocation2 + $0x50] sm:$0xff] %v98
  %107 = vst [vmem:[#allocation2 + $0x68] sm:$0xff] %v99
  %108 = vst [vmem:[#allocation2 + $0x70] sm:$0xff] %v100
  %v109 = vld [vmem:[#allocation2] sm:$0xff]
  %v110 = vld [vmem:[#allocation2 + $0x8] sm:$0xff]
  %v111 = vld [vmem:[#allocation2 + $0x10] sm:$0xff]
  %v112 = vld [vmem:[#allocation2 + $0x20] sm:$0xff]
  %v113 = vld [vmem:[#allocation2 + $0x28] sm:$0xff]
  %v114 = vld [vmem:[#allocation2 + $0x30] sm:$0xff]
  %v115 = vld [vmem:[#allocation2 + $0x40] sm:$0xff]
  %v116 = vld [vmem:[#allocation2 + $0x48] sm:$0xff]
  %v117 = vld [vmem:[#allocation2 + $0x50] sm:$0xff]
  %v118 = vld [vmem:[#allocation2 + $0x60] sm:$0xff]
  %v119 = vld [vmem:[#allocation2 + $0x68] sm:$0xff]
  %v120 = vld [vmem:[#allocation2 + $0x70] sm:$0xff]
  %v121 = vld [vmem:[#allocation2 + $0x8] sm:$0xff]
  %v122 = vld [vmem:[#allocation2 + $0x10] sm:$0xff]
  %v123 = vld [vmem:[#allocation2 + $0x18] sm:$0xff]
  %v124 = vld [vmem:[#allocation2 + $0x28] sm:$0xff]
  %v125 = vld [vmem:[#allocation2 + $0x30] sm:$0xff]
  %v126 = vld [vmem:[#allocation2 + $0x38] sm:$0xff]
  %v127 = vld [vmem:[#allocation2 + $0x48] sm:$0xff]
  %v128 = vld [vmem:[#allocation2 + $0x50] sm:$0xff]
  %v129 = vld [vmem:[#allocation2 + $0x58] sm:$0xff]
  %v130 = vld [vmem:[#allocation2 + $0x68] sm:$0xff]
  %v131 = vld [vmem:[#allocation2 + $0x70] sm:$0xff]
  %v132 = vld [vmem:[#allocation2 + $0x78] sm:$0xff]
  %v133 = vlaneseq
  %v134 = vshrl.u32 %v133, 7
  %v135 = vsub.s32 0, %v134
  %v136 = vrot.slane %v34, %v135
  %v137 = vlaneseq
  %v138 = vshrl.u32 %v137, 7
  %v139 = vsub.s32 0, %v138
  %v140 = vrot.slane %v35, %v139
  %143 = vrot.lane.b32.xlu0 %v136, 124
  %v144 = vpop.permute.xlu0 %143
  %145 = vrot.lane.b32.xlu0 %v140, 124
  %v146 = vpop.permute.xlu0 %145
  %vm147 = vcmask 1014784
  %v148 = vsel %vm147, %v144, %v146
  %v152 = vmul.f32 %v109, %v144
  %v153 = vmul.f32 %v110, %v148
  %v154 = vmul.f32 %v111, %v146
  %v155 = vmul.f32 %v112, %v144
  %v156 = vmul.f32 %v113, %v148
  %v157 = vmul.f32 %v114, %v146
  %v158 = vmul.f32 %v115, %v144
  %v159 = vmul.f32 %v116, %v148
  %v160 = vmul.f32 %v117, %v146
  %v161 = vmul.f32 %v118, %v144
  %v162 = vmul.f32 %v119, %v148
  %v163 = vmul.f32 %v120, %v146
  %v164 = vlaneseq
  %v165 = vshrl.u32 %v164, 7
  %v166 = vsub.s32 0, %v165
  %v167 = vrot.slane %v36, %v166
  %v168 = vlaneseq
  %v169 = vshrl.u32 %v168, 7
  %v170 = vsub.s32 0, %v169
  %v171 = vrot.slane %v37, %v170
  %174 = vrot.lane.b32.xlu0 %v167, 12
  %v175 = vpop.permute.xlu0 %174
  %176 = vrot.lane.b32.xlu0 %v171, 12
  %v177 = vpop.permute.xlu0 %176
  %vm178 = vcmask 97280
  %v179 = vsel %vm178, %v175, %v177
  %v183 = vmul.f32 %v121, %v175
  %v184 = vmul.f32 %v122, %v179
  %v185 = vmul.f32 %v123, %v177
  %v186 = vmul.f32 %v124, %v175
  %v187 = vmul.f32 %v125, %v179
  %v188 = vmul.f32 %v126, %v177
  %v189 = vmul.f32 %v127, %v175
  %v190 = vmul.f32 %v128, %v179
  %v191 = vmul.f32 %v129, %v177
  %v192 = vmul.f32 %v130, %v175
  %v193 = vmul.f32 %v131, %v179
  %v194 = vmul.f32 %v132, %v177
  %207 = vrot.lane.b32.xlu0 %v183, 112
  %v208 = vpop.permute.xlu0 %207
  %209 = vrot.lane.b32.xlu0 %v184, 112
  %v210 = vpop.permute.xlu0 %209
  %211 = vrot.lane.b32.xlu0 %v185, 112
  %v212 = vpop.permute.xlu0 %211
  %213 = vrot.lane.b32.xlu0 %v186, 112
  %v214 = vpop.permute.xlu0 %213
  %215 = vrot.lane.b32.xlu0 %v187, 112
  %v216 = vpop.permute.xlu0 %215
  %217 = vrot.lane.b32.xlu0 %v188, 112
  %v218 = vpop.permute.xlu0 %217
  %219 = vrot.lane.b32.xlu0 %v189, 112
  %v220 = vpop.permute.xlu0 %219
  %221 = vrot.lane.b32.xlu0 %v190, 112
  %v222 = vpop.permute.xlu0 %221
  %223 = vrot.lane.b32.xlu0 %v191, 112
  %v224 = vpop.permute.xlu0 %223
  %225 = vrot.lane.b32.xlu0 %v192, 112
  %v226 = vpop.permute.xlu0 %225
  %227 = vrot.lane.b32.xlu0 %v193, 112
  %v228 = vpop.permute.xlu0 %227
  %229 = vrot.lane.b32.xlu0 %v194, 112
  %v230 = vpop.permute.xlu0 %229
  %vm231 = vcmask 916480
  %v232 = vsel %vm231, %v208, %v210
  %v233 = vsel %vm231, %v210, %v212
  %v234 = vsel %vm231, %v214, %v216
  %v235 = vsel %vm231, %v216, %v218
  %v236 = vsel %vm231, %v220, %v222
  %v237 = vsel %vm231, %v222, %v224
  %v238 = vsel %vm231, %v226, %v228
  %v239 = vsel %vm231, %v228, %v230
  %v252 = vadd.f32 %v152, %v208
  %v253 = vadd.f32 %v153, %v232
  %v254 = vadd.f32 %v154, %v233
  %v255 = vadd.f32 %v155, %v214
  %v256 = vadd.f32 %v156, %v234
  %v257 = vadd.f32 %v157, %v235
  %v258 = vadd.f32 %v158, %v220
  %v259 = vadd.f32 %v159, %v236
  %v260 = vadd.f32 %v160, %v237
  %v261 = vadd.f32 %v161, %v226
  %v262 = vadd.f32 %v162, %v238
  %v263 = vadd.f32 %v163, %v239
  %276 = vrot.lane.b32.xlu0 %v252, 4
  %v277 = vpop.permute.xlu0 %276
  %278 = vrot.lane.b32.xlu0 %v253, 4
  %v279 = vpop.permute.xlu0 %278
  %280 = vrot.lane.b32.xlu0 %v254, 4
  %v281 = vpop.permute.xlu0 %280
  %282 = vrot.lane.b32.xlu0 %v255, 4
  %v283 = vpop.permute.xlu0 %282
  %284 = vrot.lane.b32.xlu0 %v256, 4
  %v285 = vpop.permute.xlu0 %284
  %286 = vrot.lane.b32.xlu0 %v257, 4
  %v287 = vpop.permute.xlu0 %286
  %288 = vrot.lane.b32.xlu0 %v258, 4
  %v289 = vpop.permute.xlu0 %288
  %290 = vrot.lane.b32.xlu0 %v259, 4
  %v291 = vpop.permute.xlu0 %290
  %292 = vrot.lane.b32.xlu0 %v260, 4
  %v293 = vpop.permute.xlu0 %292
  %294 = vrot.lane.b32.xlu0 %v261, 4
  %v295 = vpop.permute.xlu0 %294
  %296 = vrot.lane.b32.xlu0 %v262, 4
  %v297 = vpop.permute.xlu0 %296
  %298 = vrot.lane.b32.xlu0 %v263, 4
  %v299 = vpop.permute.xlu0 %298
  %vm300 = vcmask 31744
  %v301 = vsel %vm300, %v277, %v279
  %v302 = vsel %vm300, %v279, %v281
  %v303 = vsel %vm300, %v283, %v285
  %v304 = vsel %vm300, %v285, %v287
  %v305 = vsel %vm300, %v289, %v291
  %v306 = vsel %vm300, %v291, %v293
  %v307 = vsel %vm300, %v295, %v297
  %v308 = vsel %vm300, %v297, %v299
  %317 = vst [vmem:[#allocation4] sm:$0xff] %v301
  %318 = vst [vmem:[#allocation4 + $0x8] sm:$0xff] %v302
  %319 = vst [vmem:[#allocation4 + $0x10] sm:$0xff] %v303
  %320 = vst [vmem:[#allocation4 + $0x18] sm:$0xff] %v304
  %321 = vst [vmem:[#allocation4 + $0x20] sm:$0xff] %v305
  %322 = vst [vmem:[#allocation4 + $0x28] sm:$0xff] %v306
  %323 = vst [vmem:[#allocation4 + $0x30] sm:$0xff] %v307
  %324 = vst [vmem:[#allocation4 + $0x38] sm:$0xff] %v308
  %v325 = vld [vmem:[#allocation2] sm:$0xff]
  %v326 = vld [vmem:[#allocation2 + $0x8] sm:$0xff]
  %v327 = vld [vmem:[#allocation2 + $0x10] sm:$0xff]
  %v328 = vld [vmem:[#allocation2 + $0x20] sm:$0xff]
  %v329 = vld [vmem:[#allocation2 + $0x28] sm:$0xff]
  %v330 = vld [vmem:[#allocation2 + $0x30] sm:$0xff]
  %v331 = vld [vmem:[#allocation2 + $0x40] sm:$0xff]
  %v332 = vld [vmem:[#allocation2 + $0x48] sm:$0xff]
  %v333 = vld [vmem:[#allocation2 + $0x50] sm:$0xff]
  %v334 = vld [vmem:[#allocation2 + $0x60] sm:$0xff]
  %v335 = vld [vmem:[#allocation2 + $0x68] sm:$0xff]
  %v336 = vld [vmem:[#allocation2 + $0x70] sm:$0xff]
  %v337 = vld [vmem:[#allocation2 + $0x8] sm:$0xff]
  %v338 = vld [vmem:[#allocation2 + $0x10] sm:$0xff]
  %v339 = vld [vmem:[#allocation2 + $0x18] sm:$0xff]
  %v340 = vld [vmem:[#allocation2 + $0x28] sm:$0xff]
  %v341 = vld [vmem:[#allocation2 + $0x30] sm:$0xff]
  %v342 = vld [vmem:[#allocation2 + $0x38] sm:$0xff]
  %v343 = vld [vmem:[#allocation2 + $0x48] sm:$0xff]
  %v344 = vld [vmem:[#allocation2 + $0x50] sm:$0xff]
  %v345 = vld [vmem:[#allocation2 + $0x58] sm:$0xff]
  %v346 = vld [vmem:[#allocation2 + $0x68] sm:$0xff]
  %v347 = vld [vmem:[#allocation2 + $0x70] sm:$0xff]
  %v348 = vld [vmem:[#allocation2 + $0x78] sm:$0xff]
  %v349 = vlaneseq
  %v350 = vshrl.u32 %v349, 7
  %v351 = vsub.s32 1, %v350
  %v352 = vrot.slane %v34, %v351
  %v353 = vlaneseq
  %v354 = vshrl.u32 %v353, 7
  %v355 = vsub.s32 1, %v354
  %v356 = vrot.slane %v35, %v355
  %359 = vrot.lane.b32.xlu0 %v352, 125
  %v360 = vpop.permute.xlu0 %359
  %361 = vrot.lane.b32.xlu0 %v356, 125
  %v362 = vpop.permute.xlu0 %361
  %vm363 = vcmask 1022976
  %v364 = vsel %vm363, %v360, %v362
  %v368 = vmul.f32 %v325, %v360
  %v369 = vmul.f32 %v326, %v364
  %v370 = vmul.f32 %v327, %v362
  %v371 = vmul.f32 %v328, %v360
  %v372 = vmul.f32 %v329, %v364
  %v373 = vmul.f32 %v330, %v362
  %v374 = vmul.f32 %v331, %v360
  %v375 = vmul.f32 %v332, %v364
  %v376 = vmul.f32 %v333, %v362
  %v377 = vmul.f32 %v334, %v360
  %v378 = vmul.f32 %v335, %v364
  %v379 = vmul.f32 %v336, %v362
  %v380 = vlaneseq
  %v381 = vshrl.u32 %v380, 7
  %v382 = vsub.s32 1, %v381
  %v383 = vrot.slane %v36, %v382
  %v384 = vlaneseq
  %v385 = vshrl.u32 %v384, 7
  %v386 = vsub.s32 1, %v385
  %v387 = vrot.slane %v37, %v386
  %390 = vrot.lane.b32.xlu0 %v383, 13
  %v391 = vpop.permute.xlu0 %390
  %392 = vrot.lane.b32.xlu0 %v387, 13
  %v393 = vpop.permute.xlu0 %392
  %vm394 = vcmask 105472
  %v395 = vsel %vm394, %v391, %v393
  %v399 = vmul.f32 %v337, %v391
  %v400 = vmul.f32 %v338, %v395
  %v401 = vmul.f32 %v339, %v393
  %v402 = vmul.f32 %v340, %v391
  %v403 = vmul.f32 %v341, %v395
  %v404 = vmul.f32 %v342, %v393
  %v405 = vmul.f32 %v343, %v391
  %v406 = vmul.f32 %v344, %v395
  %v407 = vmul.f32 %v345, %v393
  %v408 = vmul.f32 %v346, %v391
  %v409 = vmul.f32 %v347, %v395
  %v410 = vmul.f32 %v348, %v393
  %423 = vrot.lane.b32.xlu0 %v399, 112
  %v424 = vpop.permute.xlu0 %423
  %425 = vrot.lane.b32.xlu0 %v400, 112
  %v426 = vpop.permute.xlu0 %425
  %427 = vrot.lane.b32.xlu0 %v401, 112
  %v428 = vpop.permute.xlu0 %427
  %429 = vrot.lane.b32.xlu0 %v402, 112
  %v430 = vpop.permute.xlu0 %429
  %431 = vrot.lane.b32.xlu0 %v403, 112
  %v432 = vpop.permute.xlu0 %431
  %433 = vrot.lane.b32.xlu0 %v404, 112
  %v434 = vpop.permute.xlu0 %433
  %435 = vrot.lane.b32.xlu0 %v405, 112
  %v436 = vpop.permute.xlu0 %435
  %437 = vrot.lane.b32.xlu0 %v406, 112
  %v438 = vpop.permute.xlu0 %437
  %439 = vrot.lane.b32.xlu0 %v407, 112
  %v440 = vpop.permute.xlu0 %439
  %441 = vrot.lane.b32.xlu0 %v408, 112
  %v442 = vpop.permute.xlu0 %441
  %443 = vrot.lane.b32.xlu0 %v409, 112
  %v444 = vpop.permute.xlu0 %443
  %445 = vrot.lane.b32.xlu0 %v410, 112
  %v446 = vpop.permute.xlu0 %445
  %v447 = vsel %vm231, %v424, %v426
  %v448 = vsel %vm231, %v426, %v428
  %v449 = vsel %vm231, %v430, %v432
  %v450 = vsel %vm231, %v432, %v434
  %v451 = vsel %vm231, %v436, %v438
  %v452 = vsel %vm231, %v438, %v440
  %v453 = vsel %vm231, %v442, %v444
  %v454 = vsel %vm231, %v444, %v446
  %v467 = vadd.f32 %v368, %v424
  %v468 = vadd.f32 %v369, %v447
  %v469 = vadd.f32 %v370, %v448
  %v470 = vadd.f32 %v371, %v430
  %v471 = vadd.f32 %v372, %v449
  %v472 = vadd.f32 %v373, %v450
  %v473 = vadd.f32 %v374, %v436
  %v474 = vadd.f32 %v375, %v451
  %v475 = vadd.f32 %v376, %v452
  %v476 = vadd.f32 %v377, %v442
  %v477 = vadd.f32 %v378, %v453
  %v478 = vadd.f32 %v379, %v454
  %491 = vrot.lane.b32.xlu0 %v467, 3
  %v492 = vpop.permute.xlu0 %491
  %493 = vrot.lane.b32.xlu0 %v468, 3
  %v494 = vpop.permute.xlu0 %493
  %495 = vrot.lane.b32.xlu0 %v469, 3
  %v496 = vpop.permute.xlu0 %495
  %497 = vrot.lane.b32.xlu0 %v470, 3
  %v498 = vpop.permute.xlu0 %497
  %499 = vrot.lane.b32.xlu0 %v471, 3
  %v500 = vpop.permute.xlu0 %499
  %501 = vrot.lane.b32.xlu0 %v472, 3
  %v502 = vpop.permute.xlu0 %501
  %503 = vrot.lane.b32.xlu0 %v473, 3
  %v504 = vpop.permute.xlu0 %503
  %505 = vrot.lane.b32.xlu0 %v474, 3
  %v506 = vpop.permute.xlu0 %505
  %507 = vrot.lane.b32.xlu0 %v475, 3
  %v508 = vpop.permute.xlu0 %507
  %509 = vrot.lane.b32.xlu0 %v476, 3
  %v510 = vpop.permute.xlu0 %509
  %511 = vrot.lane.b32.xlu0 %v477, 3
  %v512 = vpop.permute.xlu0 %511
  %513 = vrot.lane.b32.xlu0 %v478, 3
  %v514 = vpop.permute.xlu0 %513
  %vm515 = vcmask 23552
  %v516 = vsel %vm515, %v492, %v494
  %v517 = vsel %vm515, %v494, %v496
  %v518 = vsel %vm515, %v498, %v500
  %v519 = vsel %vm515, %v500, %v502
  %v520 = vsel %vm515, %v504, %v506
  %v521 = vsel %vm515, %v506, %v508
  %v522 = vsel %vm515, %v510, %v512
  %v523 = vsel %vm515, %v512, %v514
  %532 = vst [vmem:[#allocation4 + $0x40] sm:$0xff] %v516
  %533 = vst [vmem:[#allocation4 + $0x48] sm:$0xff] %v517
  %534 = vst [vmem:[#allocation4 + $0x50] sm:$0xff] %v518
  %535 = vst [vmem:[#allocation4 + $0x58] sm:$0xff] %v519
  %536 = vst [vmem:[#allocation4 + $0x60] sm:$0xff] %v520
  %537 = vst [vmem:[#allocation4 + $0x68] sm:$0xff] %v521
  %538 = vst [vmem:[#allocation4 + $0x70] sm:$0xff] %v522
  %539 = vst [vmem:[#allocation4 + $0x78] sm:$0xff] %v523
  %v540 = vld [vmem:[#allocation2] sm:$0xff]
  %v541 = vld [vmem:[#allocation2 + $0x8] sm:$0xff]
  %v542 = vld [vmem:[#allocation2 + $0x10] sm:$0xff]
  %v543 = vld [vmem:[#allocation2 + $0x20] sm:$0xff]
  %v544 = vld [vmem:[#allocation2 + $0x28] sm:$0xff]
  %v545 = vld [vmem:[#allocation2 + $0x30] sm:$0xff]
  %v546 = vld [vmem:[#allocation2 + $0x40] sm:$0xff]
  %v547 = vld [vmem:[#allocation2 + $0x48] sm:$0xff]
  %v548 = vld [vmem:[#allocation2 + $0x50] sm:$0xff]
  %v549 = vld [vmem:[#allocation2 + $0x60] sm:$0xff]
  %v550 = vld [vmem:[#allocation2 + $0x68] sm:$0xff]
  %v551 = vld [vmem:[#allocation2 + $0x70] sm:$0xff]
  %v552 = vld [vmem:[#allocation2 + $0x8] sm:$0xff]
  %v553 = vld [vmem:[#allocation2 + $0x10] sm:$0xff]
  %v554 = vld [vmem:[#allocation2 + $0x18] sm:$0xff]
  %v555 = vld [vmem:[#allocation2 + $0x28] sm:$0xff]
  %v556 = vld [vmem:[#allocation2 + $0x30] sm:$0xff]
  %v557 = vld [vmem:[#allocation2 + $0x38] sm:$0xff]
  %v558 = vld [vmem:[#allocation2 + $0x48] sm:$0xff]
  %v559 = vld [vmem:[#allocation2 + $0x50] sm:$0xff]
  %v560 = vld [vmem:[#allocation2 + $0x58] sm:$0xff]
  %v561 = vld [vmem:[#allocation2 + $0x68] sm:$0xff]
  %v562 = vld [vmem:[#allocation2 + $0x70] sm:$0xff]
  %v563 = vld [vmem:[#allocation2 + $0x78] sm:$0xff]
  %v564 = vlaneseq
  %v565 = vshrl.u32 %v564, 7
  %v566 = vsub.s32 2, %v565
  %v567 = vrot.slane %v34, %v566
  %v568 = vlaneseq
  %v569 = vshrl.u32 %v568, 7
  %v570 = vsub.s32 2, %v569
  %v571 = vrot.slane %v35, %v570
  %574 = vrot.lane.b32.xlu0 %v567, 126
  %v575 = vpop.permute.xlu0 %574
  %576 = vrot.lane.b32.xlu0 %v571, 126
  %v577 = vpop.permute.xlu0 %576
  %vm578 = vcmask 1031168
  %v579 = vsel %vm578, %v575, %v577
  %v583 = vmul.f32 %v540, %v575
  %v584 = vmul.f32 %v541, %v579
  %v585 = vmul.f32 %v542, %v577
  %v586 = vmul.f32 %v543, %v575
  %v587 = vmul.f32 %v544, %v579
  %v588 = vmul.f32 %v545, %v577
  %v589 = vmul.f32 %v546, %v575
  %v590 = vmul.f32 %v547, %v579
  %v591 = vmul.f32 %v548, %v577
  %v592 = vmul.f32 %v549, %v575
  %v593 = vmul.f32 %v550, %v579
  %v594 = vmul.f32 %v551, %v577
  %v595 = vlaneseq
  %v596 = vshrl.u32 %v595, 7
  %v597 = vsub.s32 2, %v596
  %v598 = vrot.slane %v36, %v597
  %v599 = vlaneseq
  %v600 = vshrl.u32 %v599, 7
  %v601 = vsub.s32 2, %v600
  %v602 = vrot.slane %v37, %v601
  %605 = vrot.lane.b32.xlu0 %v598, 14
  %v606 = vpop.permute.xlu0 %605
  %607 = vrot.lane.b32.xlu0 %v602, 14
  %v608 = vpop.permute.xlu0 %607
  %vm609 = vcmask 113664
  %v610 = vsel %vm609, %v606, %v608
  %v614 = vmul.f32 %v552, %v606
  %v615 = vmul.f32 %v553, %v610
  %v616 = vmul.f32 %v554, %v608
  %v617 = vmul.f32 %v555, %v606
  %v618 = vmul.f32 %v556, %v610
  %v619 = vmul.f32 %v557, %v608
  %v620 = vmul.f32 %v558, %v606
  %v621 = vmul.f32 %v559, %v610
  %v622 = vmul.f32 %v560, %v608
  %v623 = vmul.f32 %v561, %v606
  %v624 = vmul.f32 %v562, %v610
  %v625 = vmul.f32 %v563, %v608
  %638 = vrot.lane.b32.xlu0 %v614, 112
  %v639 = vpop.permute.xlu0 %638
  %640 = vrot.lane.b32.xlu0 %v615, 112
  %v641 = vpop.permute.xlu0 %640
  %642 = vrot.lane.b32.xlu0 %v616, 112
  %v643 = vpop.permute.xlu0 %642
  %644 = vrot.lane.b32.xlu0 %v617, 112
  %v645 = vpop.permute.xlu0 %644
  %646 = vrot.lane.b32.xlu0 %v618, 112
  %v647 = vpop.permute.xlu0 %646
  %648 = vrot.lane.b32.xlu0 %v619, 112
  %v649 = vpop.permute.xlu0 %648
  %650 = vrot.lane.b32.xlu0 %v620, 112
  %v651 = vpop.permute.xlu0 %650
  %652 = vrot.lane.b32.xlu0 %v621, 112
  %v653 = vpop.permute.xlu0 %652
  %654 = vrot.lane.b32.xlu0 %v622, 112
  %v655 = vpop.permute.xlu0 %654
  %656 = vrot.lane.b32.xlu0 %v623, 112
  %v657 = vpop.permute.xlu0 %656
  %658 = vrot.lane.b32.xlu0 %v624, 112
  %v659 = vpop.permute.xlu0 %658
  %660 = vrot.lane.b32.xlu0 %v625, 112
  %v661 = vpop.permute.xlu0 %660
  %v662 = vsel %vm231, %v639, %v641
  %v663 = vsel %vm231, %v641, %v643
  %v664 = vsel %vm231, %v645, %v647
  %v665 = vsel %vm231, %v647, %v649
  %v666 = vsel %vm231, %v651, %v653
  %v667 = vsel %vm231, %v653, %v655
  %v668 = vsel %vm231, %v657, %v659
  %v669 = vsel %vm231, %v659, %v661
  %v682 = vadd.f32 %v583, %v639
  %v683 = vadd.f32 %v584, %v662
  %v684 = vadd.f32 %v585, %v663
  %v685 = vadd.f32 %v586, %v645
  %v686 = vadd.f32 %v587, %v664
  %v687 = vadd.f32 %v588, %v665
  %v688 = vadd.f32 %v589, %v651
  %v689 = vadd.f32 %v590, %v666
  %v690 = vadd.f32 %v591, %v667
  %v691 = vadd.f32 %v592, %v657
  %v692 = vadd.f32 %v593, %v668
  %v693 = vadd.f32 %v594, %v669
  %706 = vrot.lane.b32.xlu0 %v682, 2
  %v707 = vpop.permute.xlu0 %706
  %708 = vrot.lane.b32.xlu0 %v683, 2
  %v709 = vpop.permute.xlu0 %708
  %710 = vrot.lane.b32.xlu0 %v684, 2
  %v711 = vpop.permute.xlu0 %710
  %712 = vrot.lane.b32.xlu0 %v685, 2
  %v713 = vpop.permute.xlu0 %712
  %714 = vrot.lane.b32.xlu0 %v686, 2
  %v715 = vpop.permute.xlu0 %714
  %716 = vrot.lane.b32.xlu0 %v687, 2
  %v717 = vpop.permute.xlu0 %716
  %718 = vrot.lane.b32.xlu0 %v688, 2
  %v719 = vpop.permute.xlu0 %718
  %720 = vrot.lane.b32.xlu0 %v689, 2
  %v721 = vpop.permute.xlu0 %720
  %722 = vrot.lane.b32.xlu0 %v690, 2
  %v723 = vpop.permute.xlu0 %722
  %724 = vrot.lane.b32.xlu0 %v691, 2
  %v725 = vpop.permute.xlu0 %724
  %726 = vrot.lane.b32.xlu0 %v692, 2
  %v727 = vpop.permute.xlu0 %726
  %728 = vrot.lane.b32.xlu0 %v693, 2
  %v729 = vpop.permute.xlu0 %728
  %vm730 = vcmask 15360
  %v731 = vsel %vm730, %v707, %v709
  %v732 = vsel %vm730, %v709, %v711
  %v733 = vsel %vm730, %v713, %v715
  %v734 = vsel %vm730, %v715, %v717
  %v735 = vsel %vm730, %v719, %v721
  %v736 = vsel %vm730, %v721, %v723
  %v737 = vsel %vm730, %v725, %v727
  %v738 = vsel %vm730, %v727, %v729
  %747 = vst [vmem:[#allocation4 + $0x80] sm:$0xff] %v731
  %748 = vst [vmem:[#allocation4 + $0x88] sm:$0xff] %v732
  %749 = vst [vmem:[#allocation4 + $0x90] sm:$0xff] %v733
  %750 = vst [vmem:[#allocation4 + $0x98] sm:$0xff] %v734
  %751 = vst [vmem:[#allocation4 + $0xa0] sm:$0xff] %v735
  %752 = vst [vmem:[#allocation4 + $0xa8] sm:$0xff] %v736
  %753 = vst [vmem:[#allocation4 + $0xb0] sm:$0xff] %v737
  %754 = vst [vmem:[#allocation4 + $0xb8] sm:$0xff] %v738
  %v755 = vld [vmem:[#allocation2] sm:$0xff]
  %v756 = vld [vmem:[#allocation2 + $0x8] sm:$0xff]
  %v757 = vld [vmem:[#allocation2 + $0x10] sm:$0xff]
  %v758 = vld [vmem:[#allocation2 + $0x20] sm:$0xff]
  %v759 = vld [vmem:[#allocation2 + $0x28] sm:$0xff]
  %v760 = vld [vmem:[#allocation2 + $0x30] sm:$0xff]
  %v761 = vld [vmem:[#allocation2 + $0x40] sm:$0xff]
  %v762 = vld [vmem:[#allocation2 + $0x48] sm:$0xff]
  %v763 = vld [vmem:[#allocation2 + $0x50] sm:$0xff]
  %v764 = vld [vmem:[#allocation2 + $0x60] sm:$0xff]
  %v765 = vld [vmem:[#allocation2 + $0x68] sm:$0xff]
  %v766 = vld [vmem:[#allocation2 + $0x70] sm:$0xff]
  %v767 = vld [vmem:[#allocation2 + $0x8] sm:$0xff]
  %v768 = vld [vmem:[#allocation2 + $0x10] sm:$0xff]
  %v769 = vld [vmem:[#allocation2 + $0x18] sm:$0xff]
  %v770 = vld [vmem:[#allocation2 + $0x28] sm:$0xff]
  %v771 = vld [vmem:[#allocation2 + $0x30] sm:$0xff]
  %v772 = vld [vmem:[#allocation2 + $0x38] sm:$0xff]
  %v773 = vld [vmem:[#allocation2 + $0x48] sm:$0xff]
  %v774 = vld [vmem:[#allocation2 + $0x50] sm:$0xff]
  %v775 = vld [vmem:[#allocation2 + $0x58] sm:$0xff]
  %v776 = vld [vmem:[#allocation2 + $0x68] sm:$0xff]
  %v777 = vld [vmem:[#allocation2 + $0x70] sm:$0xff]
  %v778 = vld [vmem:[#allocation2 + $0x78] sm:$0xff]
  %v779 = vlaneseq
  %v780 = vshrl.u32 %v779, 7
  %v781 = vsub.s32 3, %v780
  %v782 = vrot.slane %v34, %v781
  %v783 = vlaneseq
  %v784 = vshrl.u32 %v783, 7
  %v785 = vsub.s32 3, %v784
  %v786 = vrot.slane %v35, %v785
  %789 = vrot.lane.b32.xlu0 %v782, 127
  %v790 = vpop.permute.xlu0 %789
  %791 = vrot.lane.b32.xlu0 %v786, 127
  %v792 = vpop.permute.xlu0 %791
  %vm793 = vcmask 1039360
  %v794 = vsel %vm793, %v790, %v792
  %v798 = vmul.f32 %v755, %v790
  %v799 = vmul.f32 %v756, %v794
  %v800 = vmul.f32 %v757, %v792
  %v801 = vmul.f32 %v758, %v790
  %v802 = vmul.f32 %v759, %v794
  %v803 = vmul.f32 %v760, %v792
  %v804 = vmul.f32 %v761, %v790
  %v805 = vmul.f32 %v762, %v794
  %v806 = vmul.f32 %v763, %v792
  %v807 = vmul.f32 %v764, %v790
  %v808 = vmul.f32 %v765, %v794
  %v809 = vmul.f32 %v766, %v792
  %v810 = vlaneseq
  %v811 = vshrl.u32 %v810, 7
  %v812 = vsub.s32 3, %v811
  %v813 = vrot.slane %v36, %v812
  %v814 = vlaneseq
  %v815 = vshrl.u32 %v814, 7
  %v816 = vsub.s32 3, %v815
  %v817 = vrot.slane %v37, %v816
  %820 = vrot.lane.b32.xlu0 %v813, 15
  %v821 = vpop.permute.xlu0 %820
  %822 = vrot.lane.b32.xlu0 %v817, 15
  %v823 = vpop.permute.xlu0 %822
  %vm824 = vcmask 121856
  %v825 = vsel %vm824, %v821, %v823
  %v829 = vmul.f32 %v767, %v821
  %v830 = vmul.f32 %v768, %v825
  %v831 = vmul.f32 %v769, %v823
  %v832 = vmul.f32 %v770, %v821
  %v833 = vmul.f32 %v771, %v825
  %v834 = vmul.f32 %v772, %v823
  %v835 = vmul.f32 %v773, %v821
  %v836 = vmul.f32 %v774, %v825
  %v837 = vmul.f32 %v775, %v823
  %v838 = vmul.f32 %v776, %v821
  %v839 = vmul.f32 %v777, %v825
  %v840 = vmul.f32 %v778, %v823
  %853 = vrot.lane.b32.xlu0 %v829, 112
  %v854 = vpop.permute.xlu0 %853
  %855 = vrot.lane.b32.xlu0 %v830, 112
  %v856 = vpop.permute.xlu0 %855
  %857 = vrot.lane.b32.xlu0 %v831, 112
  %v858 = vpop.permute.xlu0 %857
  %859 = vrot.lane.b32.xlu0 %v832, 112
  %v860 = vpop.permute.xlu0 %859
  %861 = vrot.lane.b32.xlu0 %v833, 112
  %v862 = vpop.permute.xlu0 %861
  %863 = vrot.lane.b32.xlu0 %v834, 112
  %v864 = vpop.permute.xlu0 %863
  %865 = vrot.lane.b32.xlu0 %v835, 112
  %v866 = vpop.permute.xlu0 %865
  %867 = vrot.lane.b32.xlu0 %v836, 112
  %v868 = vpop.permute.xlu0 %867
  %869 = vrot.lane.b32.xlu0 %v837, 112
  %v870 = vpop.permute.xlu0 %869
  %871 = vrot.lane.b32.xlu0 %v838, 112
  %v872 = vpop.permute.xlu0 %871
  %873 = vrot.lane.b32.xlu0 %v839, 112
  %v874 = vpop.permute.xlu0 %873
  %875 = vrot.lane.b32.xlu0 %v840, 112
  %v876 = vpop.permute.xlu0 %875
  %v877 = vsel %vm231, %v854, %v856
  %v878 = vsel %vm231, %v856, %v858
  %v879 = vsel %vm231, %v860, %v862
  %v880 = vsel %vm231, %v862, %v864
  %v881 = vsel %vm231, %v866, %v868
  %v882 = vsel %vm231, %v868, %v870
  %v883 = vsel %vm231, %v872, %v874
  %v884 = vsel %vm231, %v874, %v876
  %v897 = vadd.f32 %v798, %v854
  %v898 = vadd.f32 %v799, %v877
  %v899 = vadd.f32 %v800, %v878
  %v900 = vadd.f32 %v801, %v860
  %v901 = vadd.f32 %v802, %v879
  %v902 = vadd.f32 %v803, %v880
  %v903 = vadd.f32 %v804, %v866
  %v904 = vadd.f32 %v805, %v881
  %v905 = vadd.f32 %v806, %v882
  %v906 = vadd.f32 %v807, %v872
  %v907 = vadd.f32 %v808, %v883
  %v908 = vadd.f32 %v809, %v884
  %921 = vrot.lane.b32.xlu0 %v897, 1
  %v922 = vpop.permute.xlu0 %921
  %923 = vrot.lane.b32.xlu0 %v898, 1
  %v924 = vpop.permute.xlu0 %923
  %925 = vrot.lane.b32.xlu0 %v899, 1
  %v926 = vpop.permute.xlu0 %925
  %927 = vrot.lane.b32.xlu0 %v900, 1
  %v928 = vpop.permute.xlu0 %927
  %929 = vrot.lane.b32.xlu0 %v901, 1
  %v930 = vpop.permute.xlu0 %929
  %931 = vrot.lane.b32.xlu0 %v902, 1
  %v932 = vpop.permute.xlu0 %931
  %933 = vrot.lane.b32.xlu0 %v903, 1
  %v934 = vpop.permute.xlu0 %933
  %935 = vrot.lane.b32.xlu0 %v904, 1
  %v936 = vpop.permute.xlu0 %935
  %937 = vrot.lane.b32.xlu0 %v905, 1
  %v938 = vpop.permute.xlu0 %937
  %939 = vrot.lane.b32.xlu0 %v906, 1
  %v940 = vpop.permute.xlu0 %939
  %941 = vrot.lane.b32.xlu0 %v907, 1
  %v942 = vpop.permute.xlu0 %941
  %943 = vrot.lane.b32.xlu0 %v908, 1
  %v944 = vpop.permute.xlu0 %943
  %vm945 = vcmask 7168
  %v946 = vsel %vm945, %v922, %v924
  %v947 = vsel %vm945, %v924, %v926
  %v948 = vsel %vm945, %v928, %v930
  %v949 = vsel %vm945, %v930, %v932
  %v950 = vsel %vm945, %v934, %v936
  %v951 = vsel %vm945, %v936, %v938
  %v952 = vsel %vm945, %v940, %v942
  %v953 = vsel %vm945, %v942, %v944
  %962 = vst [vmem:[#allocation4 + $0xc0] sm:$0xff] %v946
  %963 = vst [vmem:[#allocation4 + $0xc8] sm:$0xff] %v947
  %964 = vst [vmem:[#allocation4 + $0xd0] sm:$0xff] %v948
  %965 = vst [vmem:[#allocation4 + $0xd8] sm:$0xff] %v949
  %966 = vst [vmem:[#allocation4 + $0xe0] sm:$0xff] %v950
  %967 = vst [vmem:[#allocation4 + $0xe8] sm:$0xff] %v951
  %968 = vst [vmem:[#allocation4 + $0xf0] sm:$0xff] %v952
  %969 = vst [vmem:[#allocation4 + $0xf8] sm:$0xff] %v953
  %v970 = vld [vmem:[#allocation2 + $0x8] sm:$0xff]
  %v971 = vld [vmem:[#allocation2 + $0x10] sm:$0xff]
  %v972 = vld [vmem:[#allocation2 + $0x28] sm:$0xff]
  %v973 = vld [vmem:[#allocation2 + $0x30] sm:$0xff]
  %v974 = vld [vmem:[#allocation2 + $0x48] sm:$0xff]
  %v975 = vld [vmem:[#allocation2 + $0x50] sm:$0xff]
  %v976 = vld [vmem:[#allocation2 + $0x68] sm:$0xff]
  %v977 = vld [vmem:[#allocation2 + $0x70] sm:$0xff]
  %v978 = vld [vmem:[#allocation2 + $0x8] sm:$0xff]
  %v979 = vld [vmem:[#allocation2 + $0x10] sm:$0xff]
  %v980 = vld [vmem:[#allocation2 + $0x18] sm:$0xff]
  %v981 = vld [vmem:[#allocation2 + $0x28] sm:$0xff]
  %v982 = vld [vmem:[#allocation2 + $0x30] sm:$0xff]
  %v983 = vld [vmem:[#allocation2 + $0x38] sm:$0xff]
  %v984 = vld [vmem:[#allocation2 + $0x48] sm:$0xff]
  %v985 = vld [vmem:[#allocation2 + $0x50] sm:$0xff]
  %v986 = vld [vmem:[#allocation2 + $0x58] sm:$0xff]
  %v987 = vld [vmem:[#allocation2 + $0x68] sm:$0xff]
  %v988 = vld [vmem:[#allocation2 + $0x70] sm:$0xff]
  %v989 = vld [vmem:[#allocation2 + $0x78] sm:$0xff]
  %v990 = vlaneseq
  %v991 = vshrl.u32 %v990, 7
  %v992 = vsub.s32 4, %v991
  %v993 = vrot.slane %v34, %v992
  %v994 = vlaneseq
  %v995 = vshrl.u32 %v994, 7
  %v996 = vsub.s32 4, %v995
  %v997 = vrot.slane %v35, %v996
  %v998 = vmul.f32 %v970, %v993
  %v999 = vmul.f32 %v971, %v997
  %v1000 = vmul.f32 %v972, %v993
  %v1001 = vmul.f32 %v973, %v997
  %v1002 = vmul.f32 %v974, %v993
  %v1003 = vmul.f32 %v975, %v997
  %v1004 = vmul.f32 %v976, %v993
  %v1005 = vmul.f32 %v977, %v997
  %v1006 = vlaneseq
  %v1007 = vshrl.u32 %v1006, 7
  %v1008 = vsub.s32 4, %v1007
  %v1009 = vrot.slane %v36, %v1008
  %v1010 = vlaneseq
  %v1011 = vshrl.u32 %v1010, 7
  %v1012 = vsub.s32 4, %v1011
  %v1013 = vrot.slane %v37, %v1012
  %1016 = vrot.lane.b32.xlu0 %v1009, 16
  %v1017 = vpop.permute.xlu0 %1016
  %1018 = vrot.lane.b32.xlu0 %v1013, 16
  %v1019 = vpop.permute.xlu0 %1018
  %vm1020 = vcmask 130048
  %v1021 = vsel %vm1020, %v1017, %v1019
  %v1025 = vmul.f32 %v978, %v1017
  %v1026 = vmul.f32 %v979, %v1021
  %v1027 = vmul.f32 %v980, %v1019
  %v1028 = vmul.f32 %v981, %v1017
  %v1029 = vmul.f32 %v982, %v1021
  %v1030 = vmul.f32 %v983, %v1019
  %v1031 = vmul.f32 %v984, %v1017
  %v1032 = vmul.f32 %v985, %v1021
  %v1033 = vmul.f32 %v986, %v1019
  %v1034 = vmul.f32 %v987, %v1017
  %v1035 = vmul.f32 %v988, %v1021
  %v1036 = vmul.f32 %v989, %v1019
  %1049 = vrot.lane.b32.xlu0 %v1025, 112
  %v1050 = vpop.permute.xlu0 %1049
  %1051 = vrot.lane.b32.xlu0 %v1026, 112
  %v1052 = vpop.permute.xlu0 %1051
  %1053 = vrot.lane.b32.xlu0 %v1027, 112
  %v1054 = vpop.permute.xlu0 %1053
  %1055 = vrot.lane.b32.xlu0 %v1028, 112
  %v1056 = vpop.permute.xlu0 %1055
  %1057 = vrot.lane.b32.xlu0 %v1029, 112
  %v1058 = vpop.permute.xlu0 %1057
  %1059 = vrot.lane.b32.xlu0 %v1030, 112
  %v1060 = vpop.permute.xlu0 %1059
  %1061 = vrot.lane.b32.xlu0 %v1031, 112
  %v1062 = vpop.permute.xlu0 %1061
  %1063 = vrot.lane.b32.xlu0 %v1032, 112
  %v1064 = vpop.permute.xlu0 %1063
  %1065 = vrot.lane.b32.xlu0 %v1033, 112
  %v1066 = vpop.permute.xlu0 %1065
  %1067 = vrot.lane.b32.xlu0 %v1034, 112
  %v1068 = vpop.permute.xlu0 %1067
  %1069 = vrot.lane.b32.xlu0 %v1035, 112
  %v1070 = vpop.permute.xlu0 %1069
  %1071 = vrot.lane.b32.xlu0 %v1036, 112
  %v1072 = vpop.permute.xlu0 %1071
  %v1073 = vsel %vm231, %v1050, %v1052
  %v1074 = vsel %vm231, %v1052, %v1054
  %v1075 = vsel %vm231, %v1056, %v1058
  %v1076 = vsel %vm231, %v1058, %v1060
  %v1077 = vsel %vm231, %v1062, %v1064
  %v1078 = vsel %vm231, %v1064, %v1066
  %v1079 = vsel %vm231, %v1068, %v1070
  %v1080 = vsel %vm231, %v1070, %v1072
  %v1089 = vadd.f32 %v998, %v1073
  %v1090 = vadd.f32 %v999, %v1074
  %v1091 = vadd.f32 %v1000, %v1075
  %v1092 = vadd.f32 %v1001, %v1076
  %v1093 = vadd.f32 %v1002, %v1077
  %v1094 = vadd.f32 %v1003, %v1078
  %v1095 = vadd.f32 %v1004, %v1079
  %v1096 = vadd.f32 %v1005, %v1080
  %1097 = vst [vmem:[#allocation4 + $0x100] sm:$0xff] %v1089
  %1098 = vst [vmem:[#allocation4 + $0x108] sm:$0xff] %v1090
  %1099 = vst [vmem:[#allocation4 + $0x110] sm:$0xff] %v1091
  %1100 = vst [vmem:[#allocation4 + $0x118] sm:$0xff] %v1092
  %1101 = vst [vmem:[#allocation4 + $0x120] sm:$0xff] %v1093
  %1102 = vst [vmem:[#allocation4 + $0x128] sm:$0xff] %v1094
  %1103 = vst [vmem:[#allocation4 + $0x130] sm:$0xff] %v1095
  %1104 = vst [vmem:[#allocation4 + $0x138] sm:$0xff] %v1096
  %v1105 = vld [vmem:[#allocation2 + $0x8] sm:$0xff]
  %v1106 = vld [vmem:[#allocation2 + $0x10] sm:$0xff]
  %v1107 = vld [vmem:[#allocation2 + $0x18] sm:$0xff]
  %v1108 = vld [vmem:[#allocation2 + $0x28] sm:$0xff]
  %v1109 = vld [vmem:[#allocation2 + $0x30] sm:$0xff]
  %v1110 = vld [vmem:[#allocation2 + $0x38] sm:$0xff]
  %v1111 = vld [vmem:[#allocation2 + $0x48] sm:$0xff]
  %v1112 = vld [vmem:[#allocation2 + $0x50] sm:$0xff]
  %v1113 = vld [vmem:[#allocation2 + $0x58] sm:$0xff]
  %v1114 = vld [vmem:[#allocation2 + $0x68] sm:$0xff]
  %v1115 = vld [vmem:[#allocation2 + $0x70] sm:$0xff]
  %v1116 = vld [vmem:[#allocation2 + $0x78] sm:$0xff]
  %v1117 = vlaneseq
  %v1118 = vshrl.u32 %v1117, 7
  %v1119 = vsub.s32 5, %v1118
  %v1120 = vrot.slane %v34, %v1119
  %v1121 = vlaneseq
  %v1122 = vshrl.u32 %v1121, 7
  %v1123 = vsub.s32 5, %v1122
  %v1124 = vrot.slane %v35, %v1123
  %1127 = vrot.lane.b32.xlu0 %v1120, 1
  %v1128 = vpop.permute.xlu0 %1127
  %1129 = vrot.lane.b32.xlu0 %v1124, 1
  %v1130 = vpop.permute.xlu0 %1129
  %v1131 = vsel %vm945, %v1128, %v1130
  %v1135 = vmul.f32 %v1105, %v1128
  %v1136 = vmul.f32 %v1106, %v1131
  %v1137 = vmul.f32 %v1107, %v1130
  %v1138 = vmul.f32 %v1108, %v1128
  %v1139 = vmul.f32 %v1109, %v1131
  %v1140 = vmul.f32 %v1110, %v1130
  %v1141 = vmul.f32 %v1111, %v1128
  %v1142 = vmul.f32 %v1112, %v1131
  %v1143 = vmul.f32 %v1113, %v1130
  %v1144 = vmul.f32 %v1114, %v1128
  %v1145 = vmul.f32 %v1115, %v1131
  %v1146 = vmul.f32 %v1116, %v1130
  %v1147 = vlaneseq
  %v1148 = vshrl.u32 %v1147, 7
  %v1149 = vsub.s32 5, %v1148
  %v1150 = vrot.slane %v36, %v1149
  %v1151 = vlaneseq
  %v1152 = vshrl.u32 %v1151, 7
  %v1153 = vsub.s32 5, %v1152
  %v1154 = vrot.slane %v37, %v1153
  %1157 = vrot.lane.b32.xlu0 %v1150, 17
  %v1158 = vpop.permute.xlu0 %1157
  %1159 = vrot.lane.b32.xlu0 %v1154, 17
  %v1160 = vpop.permute.xlu0 %1159
  %vm1161 = vcmask 138240
  %v1162 = vsel %vm1161, %v1158, %v1160
  %v1166 = vmul.f32 %v1105, %v1158
  %v1167 = vmul.f32 %v1106, %v1162
  %v1168 = vmul.f32 %v1107, %v1160
  %v1169 = vmul.f32 %v1108, %v1158
  %v1170 = vmul.f32 %v1109, %v1162
  %v1171 = vmul.f32 %v1110, %v1160
  %v1172 = vmul.f32 %v1111, %v1158
  %v1173 = vmul.f32 %v1112, %v1162
  %v1174 = vmul.f32 %v1113, %v1160
  %v1175 = vmul.f32 %v1114, %v1158
  %v1176 = vmul.f32 %v1115, %v1162
  %v1177 = vmul.f32 %v1116, %v1160
  %1190 = vrot.lane.b32.xlu0 %v1166, 112
  %v1191 = vpop.permute.xlu0 %1190
  %1192 = vrot.lane.b32.xlu0 %v1167, 112
  %v1193 = vpop.permute.xlu0 %1192
  %1194 = vrot.lane.b32.xlu0 %v1168, 112
  %v1195 = vpop.permute.xlu0 %1194
  %1196 = vrot.lane.b32.xlu0 %v1169, 112
  %v1197 = vpop.permute.xlu0 %1196
  %1198 = vrot.lane.b32.xlu0 %v1170, 112
  %v1199 = vpop.permute.xlu0 %1198
  %1200 = vrot.lane.b32.xlu0 %v1171, 112
  %v1201 = vpop.permute.xlu0 %1200
  %1202 = vrot.lane.b32.xlu0 %v1172, 112
  %v1203 = vpop.permute.xlu0 %1202
  %1204 = vrot.lane.b32.xlu0 %v1173, 112
  %v1205 = vpop.permute.xlu0 %1204
  %1206 = vrot.lane.b32.xlu0 %v1174, 112
  %v1207 = vpop.permute.xlu0 %1206
  %1208 = vrot.lane.b32.xlu0 %v1175, 112
  %v1209 = vpop.permute.xlu0 %1208
  %1210 = vrot.lane.b32.xlu0 %v1176, 112
  %v1211 = vpop.permute.xlu0 %1210
  %1212 = vrot.lane.b32.xlu0 %v1177, 112
  %v1213 = vpop.permute.xlu0 %1212
  %v1214 = vsel %vm231, %v1191, %v1193
  %v1215 = vsel %vm231, %v1193, %v1195
  %v1216 = vsel %vm231, %v1197, %v1199
  %v1217 = vsel %vm231, %v1199, %v1201
  %v1218 = vsel %vm231, %v1203, %v1205
  %v1219 = vsel %vm231, %v1205, %v1207
  %v1220 = vsel %vm231, %v1209, %v1211
  %v1221 = vsel %vm231, %v1211, %v1213
  %v1234 = vadd.f32 %v1135, %v1214
  %v1235 = vadd.f32 %v1136, %v1215
  %v1236 = vadd.f32 %v1137, %v1195
  %v1237 = vadd.f32 %v1138, %v1216
  %v1238 = vadd.f32 %v1139, %v1217
  %v1239 = vadd.f32 %v1140, %v1201
  %v1240 = vadd.f32 %v1141, %v1218
  %v1241 = vadd.f32 %v1142, %v1219
  %v1242 = vadd.f32 %v1143, %v1207
  %v1243 = vadd.f32 %v1144, %v1220
  %v1244 = vadd.f32 %v1145, %v1221
  %v1245 = vadd.f32 %v1146, %v1213
  %1258 = vrot.lane.b32.xlu0 %v1234, 127
  %v1259 = vpop.permute.xlu0 %1258
  %1260 = vrot.lane.b32.xlu0 %v1235, 127
  %v1261 = vpop.permute.xlu0 %1260
  %1262 = vrot.lane.b32.xlu0 %v1236, 127
  %v1263 = vpop.permute.xlu0 %1262
  %1264 = vrot.lane.b32.xlu0 %v1237, 127
  %v1265 = vpop.permute.xlu0 %1264
  %1266 = vrot.lane.b32.xlu0 %v1238, 127
  %v1267 = vpop.permute.xlu0 %1266
  %1268 = vrot.lane.b32.xlu0 %v1239, 127
  %v1269 = vpop.permute.xlu0 %1268
  %1270 = vrot.lane.b32.xlu0 %v1240, 127
  %v1271 = vpop.permute.xlu0 %1270
  %1272 = vrot.lane.b32.xlu0 %v1241, 127
  %v1273 = vpop.permute.xlu0 %1272
  %1274 = vrot.lane.b32.xlu0 %v1242, 127
  %v1275 = vpop.permute.xlu0 %1274
  %1276 = vrot.lane.b32.xlu0 %v1243, 127
  %v1277 = vpop.permute.xlu0 %1276
  %1278 = vrot.lane.b32.xlu0 %v1244, 127
  %v1279 = vpop.permute.xlu0 %1278
  %1280 = vrot.lane.b32.xlu0 %v1245, 127
  %v1281 = vpop.permute.xlu0 %1280
  %v1282 = vsel %vm793, %v1259, %v1261
  %v1283 = vsel %vm793, %v1261, %v1263
  %v1284 = vsel %vm793, %v1265, %v1267
  %v1285 = vsel %vm793, %v1267, %v1269
  %v1286 = vsel %vm793, %v1271, %v1273
  %v1287 = vsel %vm793, %v1273, %v1275
  %v1288 = vsel %vm793, %v1277, %v1279
  %v1289 = vsel %vm793, %v1279, %v1281
  %1298 = vst [vmem:[#allocation4 + $0x140] sm:$0xff] %v1282
  %1299 = vst [vmem:[#allocation4 + $0x148] sm:$0xff] %v1283
  %1300 = vst [vmem:[#allocation4 + $0x150] sm:$0xff] %v1284
  %1301 = vst [vmem:[#allocation4 + $0x158] sm:$0xff] %v1285
  %1302 = vst [vmem:[#allocation4 + $0x160] sm:$0xff] %v1286
  %1303 = vst [vmem:[#allocation4 + $0x168] sm:$0xff] %v1287
  %1304 = vst [vmem:[#allocation4 + $0x170] sm:$0xff] %v1288
  %1305 = vst [vmem:[#allocation4 + $0x178] sm:$0xff] %v1289
  %v1306 = vld [vmem:[#allocation2 + $0x8] sm:$0xff]
  %v1307 = vld [vmem:[#allocation2 + $0x10] sm:$0xff]
  %v1308 = vld [vmem:[#allocation2 + $0x18] sm:$0xff]
  %v1309 = vld [vmem:[#allocation2 + $0x28] sm:$0xff]
  %v1310 = vld [vmem:[#allocation2 + $0x30] sm:$0xff]
  %v1311 = vld [vmem:[#allocation2 + $0x38] sm:$0xff]
  %v1312 = vld [vmem:[#allocation2 + $0x48] sm:$0xff]
  %v1313 = vld [vmem:[#allocation2 + $0x50] sm:$0xff]
  %v1314 = vld [vmem:[#allocation2 + $0x58] sm:$0xff]
  %v1315 = vld [vmem:[#allocation2 + $0x68] sm:$0xff]
  %v1316 = vld [vmem:[#allocation2 + $0x70] sm:$0xff]
  %v1317 = vld [vmem:[#allocation2 + $0x78] sm:$0xff]
  %v1318 = vlaneseq
  %v1319 = vshrl.u32 %v1318, 7
  %v1320 = vsub.s32 6, %v1319
  %v1321 = vrot.slane %v34, %v1320
  %v1322 = vlaneseq
  %v1323 = vshrl.u32 %v1322, 7
  %v1324 = vsub.s32 6, %v1323
  %v1325 = vrot.slane %v35, %v1324
  %1328 = vrot.lane.b32.xlu0 %v1321, 2
  %v1329 = vpop.permute.xlu0 %1328
  %1330 = vrot.lane.b32.xlu0 %v1325, 2
  %v1331 = vpop.permute.xlu0 %1330
  %v1332 = vsel %vm730, %v1329, %v1331
  %v1336 = vmul.f32 %v1306, %v1329
  %v1337 = vmul.f32 %v1307, %v1332
  %v1338 = vmul.f32 %v1308, %v1331
  %v1339 = vmul.f32 %v1309, %v1329
  %v1340 = vmul.f32 %v1310, %v1332
  %v1341 = vmul.f32 %v1311, %v1331
  %v1342 = vmul.f32 %v1312, %v1329
  %v1343 = vmul.f32 %v1313, %v1332
  %v1344 = vmul.f32 %v1314, %v1331
  %v1345 = vmul.f32 %v1315, %v1329
  %v1346 = vmul.f32 %v1316, %v1332
  %v1347 = vmul.f32 %v1317, %v1331
  %v1348 = vlaneseq
  %v1349 = vshrl.u32 %v1348, 7
  %v1350 = vsub.s32 6, %v1349
  %v1351 = vrot.slane %v36, %v1350
  %v1352 = vlaneseq
  %v1353 = vshrl.u32 %v1352, 7
  %v1354 = vsub.s32 6, %v1353
  %v1355 = vrot.slane %v37, %v1354
  %1358 = vrot.lane.b32.xlu0 %v1351, 18
  %v1359 = vpop.permute.xlu0 %1358
  %1360 = vrot.lane.b32.xlu0 %v1355, 18
  %v1361 = vpop.permute.xlu0 %1360
  %vm1362 = vcmask 146432
  %v1363 = vsel %vm1362, %v1359, %v1361
  %v1367 = vmul.f32 %v1306, %v1359
  %v1368 = vmul.f32 %v1307, %v1363
  %v1369 = vmul.f32 %v1308, %v1361
  %v1370 = vmul.f32 %v1309, %v1359
  %v1371 = vmul.f32 %v1310, %v1363
  %v1372 = vmul.f32 %v1311, %v1361
  %v1373 = vmul.f32 %v1312, %v1359
  %v1374 = vmul.f32 %v1313, %v1363
  %v1375 = vmul.f32 %v1314, %v1361
  %v1376 = vmul.f32 %v1315, %v1359
  %v1377 = vmul.f32 %v1316, %v1363
  %v1378 = vmul.f32 %v1317, %v1361
  %1391 = vrot.lane.b32.xlu0 %v1367, 112
  %v1392 = vpop.permute.xlu0 %1391
  %1393 = vrot.lane.b32.xlu0 %v1368, 112
  %v1394 = vpop.permute.xlu0 %1393
  %1395 = vrot.lane.b32.xlu0 %v1369, 112
  %v1396 = vpop.permute.xlu0 %1395
  %1397 = vrot.lane.b32.xlu0 %v1370, 112
  %v1398 = vpop.permute.xlu0 %1397
  %1399 = vrot.lane.b32.xlu0 %v1371, 112
  %v1400 = vpop.permute.xlu0 %1399
  %1401 = vrot.lane.b32.xlu0 %v1372, 112
  %v1402 = vpop.permute.xlu0 %1401
  %1403 = vrot.lane.b32.xlu0 %v1373, 112
  %v1404 = vpop.permute.xlu0 %1403
  %1405 = vrot.lane.b32.xlu0 %v1374, 112
  %v1406 = vpop.permute.xlu0 %1405
  %1407 = vrot.lane.b32.xlu0 %v1375, 112
  %v1408 = vpop.permute.xlu0 %1407
  %1409 = vrot.lane.b32.xlu0 %v1376, 112
  %v1410 = vpop.permute.xlu0 %1409
  %1411 = vrot.lane.b32.xlu0 %v1377, 112
  %v1412 = vpop.permute.xlu0 %1411
  %1413 = vrot.lane.b32.xlu0 %v1378, 112
  %v1414 = vpop.permute.xlu0 %1413
  %v1415 = vsel %vm231, %v1392, %v1394
  %v1416 = vsel %vm231, %v1394, %v1396
  %v1417 = vsel %vm231, %v1398, %v1400
  %v1418 = vsel %vm231, %v1400, %v1402
  %v1419 = vsel %vm231, %v1404, %v1406
  %v1420 = vsel %vm231, %v1406, %v1408
  %v1421 = vsel %vm231, %v1410, %v1412
  %v1422 = vsel %vm231, %v1412, %v1414
  %v1435 = vadd.f32 %v1336, %v1415
  %v1436 = vadd.f32 %v1337, %v1416
  %v1437 = vadd.f32 %v1338, %v1396
  %v1438 = vadd.f32 %v1339, %v1417
  %v1439 = vadd.f32 %v1340, %v1418
  %v1440 = vadd.f32 %v1341, %v1402
  %v1441 = vadd.f32 %v1342, %v1419
  %v1442 = vadd.f32 %v1343, %v1420
  %v1443 = vadd.f32 %v1344, %v1408
  %v1444 = vadd.f32 %v1345, %v1421
  %v1445 = vadd.f32 %v1346, %v1422
  %v1446 = vadd.f32 %v1347, %v1414
  %1459 = vrot.lane.b32.xlu0 %v1435, 126
  %v1460 = vpop.permute.xlu0 %1459
  %1461 = vrot.lane.b32.xlu0 %v1436, 126
  %v1462 = vpop.permute.xlu0 %1461
  %1463 = vrot.lane.b32.xlu0 %v1437, 126
  %v1464 = vpop.permute.xlu0 %1463
  %1465 = vrot.lane.b32.xlu0 %v1438, 126
  %v1466 = vpop.permute.xlu0 %1465
  %1467 = vrot.lane.b32.xlu0 %v1439, 126
  %v1468 = vpop.permute.xlu0 %1467
  %1469 = vrot.lane.b32.xlu0 %v1440, 126
  %v1470 = vpop.permute.xlu0 %1469
  %1471 = vrot.lane.b32.xlu0 %v1441, 126
  %v1472 = vpop.permute.xlu0 %1471
  %1473 = vrot.lane.b32.xlu0 %v1442, 126
  %v1474 = vpop.permute.xlu0 %1473
  %1475 = vrot.lane.b32.xlu0 %v1443, 126
  %v1476 = vpop.permute.xlu0 %1475
  %1477 = vrot.lane.b32.xlu0 %v1444, 126
  %v1478 = vpop.permute.xlu0 %1477
  %1479 = vrot.lane.b32.xlu0 %v1445, 126
  %v1480 = vpop.permute.xlu0 %1479
  %1481 = vrot.lane.b32.xlu0 %v1446, 126
  %v1482 = vpop.permute.xlu0 %1481
  %v1483 = vsel %vm578, %v1460, %v1462
  %v1484 = vsel %vm578, %v1462, %v1464
  %v1485 = vsel %vm578, %v1466, %v1468
  %v1486 = vsel %vm578, %v1468, %v1470
  %v1487 = vsel %vm578, %v1472, %v1474
  %v1488 = vsel %vm578, %v1474, %v1476
  %v1489 = vsel %vm578, %v1478, %v1480
  %v1490 = vsel %vm578, %v1480, %v1482
  %1499 = vst [vmem:[#allocation4 + $0x180] sm:$0xff] %v1483
  %1500 = vst [vmem:[#allocation4 + $0x188] sm:$0xff] %v1484
  %1501 = vst [vmem:[#allocation4 + $0x190] sm:$0xff] %v1485
  %1502 = vst [vmem:[#allocation4 + $0x198] sm:$0xff] %v1486
  %1503 = vst [vmem:[#allocation4 + $0x1a0] sm:$0xff] %v1487
  %1504 = vst [vmem:[#allocation4 + $0x1a8] sm:$0xff] %v1488
  %1505 = vst [vmem:[#allocation4 + $0x1b0] sm:$0xff] %v1489
  %1506 = vst [vmem:[#allocation4 + $0x1b8] sm:$0xff] %v1490
  %v1507 = vld [vmem:[#allocation4] sm:$0xff]
  %v1508 = vld [vmem:[#allocation4 + $0x8] sm:$0xff]
  %v1509 = vld [vmem:[#allocation4 + $0x10] sm:$0xff]
  %v1510 = vld [vmem:[#allocation4 + $0x18] sm:$0xff]
  %v1511 = vld [vmem:[#allocation4 + $0x20] sm:$0xff]
  %v1512 = vld [vmem:[#allocation4 + $0x28] sm:$0xff]
  %v1513 = vld [vmem:[#allocation4 + $0x30] sm:$0xff]
  %v1514 = vld [vmem:[#allocation4 + $0x38] sm:$0xff]
  %v1515 = vld [vmem:[#allocation4 + $0x40] sm:$0xff]
  %v1516 = vld [vmem:[#allocation4 + $0x48] sm:$0xff]
  %v1517 = vld [vmem:[#allocation4 + $0x50] sm:$0xff]
  %v1518 = vld [vmem:[#allocation4 + $0x58] sm:$0xff]
  %v1519 = vld [vmem:[#allocation4 + $0x60] sm:$0xff]
  %v1520 = vld [vmem:[#allocation4 + $0x68] sm:$0xff]
  %v1521 = vld [vmem:[#allocation4 + $0x70] sm:$0xff]
  %v1522 = vld [vmem:[#allocation4 + $0x78] sm:$0xff]
  %v1523 = vld [vmem:[#allocation4 + $0x80] sm:$0xff]
  %v1524 = vld [vmem:[#allocation4 + $0x88] sm:$0xff]
  %v1525 = vld [vmem:[#allocation4 + $0x90] sm:$0xff]
  %v1526 = vld [vmem:[#allocation4 + $0x98] sm:$0xff]
  %v1527 = vld [vmem:[#allocation4 + $0xa0] sm:$0xff]
  %v1528 = vld [vmem:[#allocation4 + $0xa8] sm:$0xff]
  %v1529 = vld [vmem:[#allocation4 + $0xb0] sm:$0xff]
  %v1530 = vld [vmem:[#allocation4 + $0xb8] sm:$0xff]
  %v1531 = vld [vmem:[#allocation4 + $0xc0] sm:$0xff]
  %v1532 = vld [vmem:[#allocation4 + $0xc8] sm:$0xff]
  %v1533 = vld [vmem:[#allocation4 + $0xd0] sm:$0xff]
  %v1534 = vld [vmem:[#allocation4 + $0xd8] sm:$0xff]
  %v1535 = vld [vmem:[#allocation4 + $0xe0] sm:$0xff]
  %v1536 = vld [vmem:[#allocation4 + $0xe8] sm:$0xff]
  %v1537 = vld [vmem:[#allocation4 + $0xf0] sm:$0xff]
  %v1538 = vld [vmem:[#allocation4 + $0xf8] sm:$0xff]
  %v1539 = vld [vmem:[#allocation4 + $0x100] sm:$0xff]
  %v1540 = vld [vmem:[#allocation4 + $0x108] sm:$0xff]
  %v1541 = vld [vmem:[#allocation4 + $0x110] sm:$0xff]
  %v1542 = vld [vmem:[#allocation4 + $0x118] sm:$0xff]
  %v1543 = vld [vmem:[#allocation4 + $0x120] sm:$0xff]
  %v1544 = vld [vmem:[#allocation4 + $0x128] sm:$0xff]
  %v1545 = vld [vmem:[#allocation4 + $0x130] sm:$0xff]
  %v1546 = vld [vmem:[#allocation4 + $0x138] sm:$0xff]
  %v1547 = vld [vmem:[#allocation4 + $0x140] sm:$0xff]
  %v1548 = vld [vmem:[#allocation4 + $0x148] sm:$0xff]
  %v1549 = vld [vmem:[#allocation4 + $0x150] sm:$0xff]
  %v1550 = vld [vmem:[#allocation4 + $0x158] sm:$0xff]
  %v1551 = vld [vmem:[#allocation4 + $0x160] sm:$0xff]
  %v1552 = vld [vmem:[#allocation4 + $0x168] sm:$0xff]
  %v1553 = vld [vmem:[#allocation4 + $0x170] sm:$0xff]
  %v1554 = vld [vmem:[#allocation4 + $0x178] sm:$0xff]
  %v1555 = vld [vmem:[#allocation4 + $0x180] sm:$0xff]
  %v1556 = vld [vmem:[#allocation4 + $0x188] sm:$0xff]
  %v1557 = vld [vmem:[#allocation4 + $0x190] sm:$0xff]
  %v1558 = vld [vmem:[#allocation4 + $0x198] sm:$0xff]
  %v1559 = vld [vmem:[#allocation4 + $0x1a0] sm:$0xff]
  %v1560 = vld [vmem:[#allocation4 + $0x1a8] sm:$0xff]
  %v1561 = vld [vmem:[#allocation4 + $0x1b0] sm:$0xff]
  %v1562 = vld [vmem:[#allocation4 + $0x1b8] sm:$0xff]
  %vm1563 = vcmask 785408
  %v1565 = vsel %vm1563, %v39, 0
  %v1568 = vsel %vm1563, %v41, 0
  %v1571 = vsel %vm1563, %v43, 0
  %1573 = vmatprep.subr.mxu0 %v1508
  %1574 = vmatpush1.msra.mxu0 %v1507
  %1575 = vmatprep.subr.mxu0 %v1510
  %1576 = vmatpush1.msra.mxu0 %v1509
  %1577 = vmatprep.subr.mxu0 %v1512
  %1578 = vmatpush1.msra.mxu0 %v1511
  %1579 = vmatprep.subr.mxu0 %v1514
  %1580 = vmatpush1.msra.mxu0 %v1513
  %1581 = vmatprep.subr.mxu0 %v1516
  %1582 = vmatpush1.msra.mxu0 %v1515
  %1583 = vmatprep.subr.mxu0 %v1518
  %1584 = vmatpush1.msra.mxu0 %v1517
  %1585 = vmatprep.subr.mxu0 %v1520
  %1586 = vmatpush1.msra.mxu0 %v1519
  %1587 = vmatprep.subr.mxu0 %v1522
  %1588 = vmatpush1.msra.mxu0 %v1521
  %1589 = vmatprep.subr.mxu0 %v1524
  %1590 = vmatpush1.msra.mxu0 %v1523
  %1591 = vmatprep.subr.mxu0 %v1526
  %1592 = vmatpush1.msra.mxu0 %v1525
  %1593 = vmatprep.subr.mxu0 %v1528
  %1594 = vmatpush1.msra.mxu0 %v1527
  %1595 = vmatprep.subr.mxu0 %v1530
  %1596 = vmatpush1.msra.mxu0 %v1529
  %1597 = vmatprep.subr.mxu0 %v1532
  %1598 = vmatpush1.msra.mxu0 %v1531
  %1599 = vmatprep.subr.mxu0 %v1534
  %1600 = vmatpush1.msra.mxu0 %v1533
  %1601 = vmatprep.subr.mxu0 %v1536
  %1602 = vmatpush1.msra.mxu0 %v1535
  %1603 = vmatprep.subr.mxu0 %v1538
  %1604 = vmatpush1.msra.mxu0 %v1537
  %1605 = vmatprep.subr.mxu0 %v1540
  %1606 = vmatpush1.msra.mxu0 %v1539
  %1607 = vmatprep.subr.mxu0 %v1542
  %1608 = vmatpush1.msra.mxu0 %v1541
  %1609 = vmatprep.subr.mxu0 %v1544
  %1610 = vmatpush1.msra.mxu0 %v1543
  %1611 = vmatprep.subr.mxu0 %v1546
  %1612 = vmatpush1.msra.mxu0 %v1545
  %1613 = vmatprep.subr.mxu0 %v1548
  %1614 = vmatpush1.msra.mxu0 %v1547
  %1615 = vmatprep.subr.mxu0 %v1550
  %1616 = vmatpush1.msra.mxu0 %v1549
  %1617 = vmatprep.subr.mxu0 %v1552
  %1618 = vmatpush1.msra.mxu0 %v1551
  %1619 = vmatprep.subr.mxu0 %v1554
  %1620 = vmatpush1.msra.mxu0 %v1553
  %1621 = vmatprep.subr.mxu0 %v1556
  %1622 = vmatpush1.msra.mxu0 %v1555
  %1623 = vmatprep.subr.mxu0 %v1558
  %1624 = vmatpush1.msra.mxu0 %v1557
  %1625 = vmatprep.subr.mxu0 %v1560
  %1626 = vmatpush1.msra.mxu0 %v1559
  %1627 = vmatprep.subr.mxu0 %v1562
  %1628 = vmatpush1.msra.mxu0 %v1561
  %1629 = vmatprep.subr.mxu0 0.0
  %1630 = vmatpush1.msra.mxu0 0.0
  %1631 = vmatprep.subr.mxu0 0.0
  %1632 = vmatpush1.msra.mxu0 0.0
  %1633 = vmatprep.subr.mxu0 0.0
  %1634 = vmatpush1.msra.mxu0 0.0
  %1635 = vmatprep.subr.mxu0 0.0
  %1636 = vmatpush1.msra.mxu0 0.0
  %1637 = vmatprep.mubr.f32.mxu0 %v1565
  %1638 = vmatmul.mubr.f32.gmra.mrb[0].mxu0 %v38
  %v1639 = vpop.f32.mrb[0].mxu0
  %v1640 = vadd.f32 0.0, %v1639
  %v1641 = vpop.f32.mrb[0].mxu0
  %v1642 = vadd.f32 0.0, %v1641
  %1643 = vmatprep.mubr.f32.mxu0 %v1568
  %1644 = vmatmul.mubr.f32.gmra.mrb[0].mxu0 %v40
  %v1645 = vpop.f32.mrb[0].mxu0
  %v1646 = vadd.f32 0.0, %v1645
  %v1647 = vpop.f32.mrb[0].mxu0
  %v1648 = vadd.f32 0.0, %v1647
  %1649 = vmatprep.mubr.f32.mxu0 %v1571
  %1650 = vmatmul.mubr.f32.gmra.mrb[0].mxu0 %v42
  %v1651 = vpop.f32.mrb[0].mxu0
  %v1652 = vadd.f32 0.0, %v1651
  %v1653 = vpop.f32.mrb[0].mxu0
  %v1654 = vadd.f32 0.0, %v1653
  %1655 = vdwg.mxu0
  %1656 = vst [vmem:[#allocation3 + $0x8] sm:$0xff] %v1640
  %1657 = vst [vmem:[#allocation3 + $0x10] sm:$0xff] %v1642
  %1658 = vst [vmem:[#allocation3 + $0x28] sm:$0xff] %v1646
  %1659 = vst [vmem:[#allocation3 + $0x30] sm:$0xff] %v1648
  %1660 = vst [vmem:[#allocation3 + $0x48] sm:$0xff] %v1652
  %1661 = vst [vmem:[#allocation3 + $0x50] sm:$0xff] %v1654
  %v1662 = vld [vmem:[#allocation3] sm:$0xff]
  %v1663 = vld [vmem:[#allocation3 + $0x8] sm:$0xff]
  %v1664 = vld [vmem:[#allocation3 + $0x10] sm:$0xff]
  %v1665 = vld [vmem:[#allocation3 + $0x20] sm:$0xff]
  %v1666 = vld [vmem:[#allocation3 + $0x28] sm:$0xff]
  %v1667 = vld [vmem:[#allocation3 + $0x30] sm:$0xff]
  %v1668 = vld [vmem:[#allocation3 + $0x40] sm:$0xff]
  %v1669 = vld [vmem:[#allocation3 + $0x48] sm:$0xff]
  %v1670 = vld [vmem:[#allocation3 + $0x50] sm:$0xff]
  %1680 = vrot.lane.b32.xlu0 %v1662, 16
  %v1681 = vpop.permute.xlu0 %1680
  %1682 = vrot.lane.b32.xlu0 %v1663, 16
  %v1683 = vpop.permute.xlu0 %1682
  %1684 = vrot.lane.b32.xlu0 %v1664, 16
  %v1685 = vpop.permute.xlu0 %1684
  %1686 = vrot.lane.b32.xlu0 %v1665, 16
  %v1687 = vpop.permute.xlu0 %1686
  %1688 = vrot.lane.b32.xlu0 %v1666, 16
  %v1689 = vpop.permute.xlu0 %1688
  %1690 = vrot.lane.b32.xlu0 %v1667, 16
  %v1691 = vpop.permute.xlu0 %1690
  %1692 = vrot.lane.b32.xlu0 %v1668, 16
  %v1693 = vpop.permute.xlu0 %1692
  %1694 = vrot.lane.b32.xlu0 %v1669, 16
  %v1695 = vpop.permute.xlu0 %1694
  %1696 = vrot.lane.b32.xlu0 %v1670, 16
  %v1697 = vpop.permute.xlu0 %1696
  %v1698 = vsel %vm1020, %v1681, %v1683
  %v1699 = vsel %vm1020, %v1683, %v1685
  %v1700 = vsel %vm1020, %v1687, %v1689
  %v1701 = vsel %vm1020, %v1689, %v1691
  %v1702 = vsel %vm1020, %v1693, %v1695
  %v1703 = vsel %vm1020, %v1695, %v1697
  %1710 = vst [vmem:[#allocation5] sm:$0xff] %v1698
  %1711 = vst [vmem:[#allocation5 + $0x8] sm:$0xff] %v1699
  %1712 = vst [vmem:[#allocation5 + $0x10] sm:$0xff] %v1700
  %1713 = vst [vmem:[#allocation5 + $0x18] sm:$0xff] %v1701
  %1714 = vst [vmem:[#allocation5 + $0x20] sm:$0xff] %v1702
  %1715 = vst [vmem:[#allocation5 + $0x28] sm:$0xff] %v1703
  %v1716 = vld [vmem:[#allocation3 + $0x8] sm:$0xff]
  %v1717 = vld [vmem:[#allocation3 + $0x10] sm:$0xff]
  %v1718 = vld [vmem:[#allocation3 + $0x28] sm:$0xff]
  %v1719 = vld [vmem:[#allocation3 + $0x30] sm:$0xff]
  %v1720 = vld [vmem:[#allocation3 + $0x48] sm:$0xff]
  %v1721 = vld [vmem:[#allocation3 + $0x50] sm:$0xff]
  %1722 = vst [vmem:[#allocation5 + $0x30] sm:$0xff] %v1716
  %1723 = vst [vmem:[#allocation5 + $0x38] sm:$0xff] %v1717
  %1724 = vst [vmem:[#allocation5 + $0x40] sm:$0xff] %v1718
  %1725 = vst [vmem:[#allocation5 + $0x48] sm:$0xff] %v1719
  %1726 = vst [vmem:[#allocation5 + $0x50] sm:$0xff] %v1720
  %1727 = vst [vmem:[#allocation5 + $0x58] sm:$0xff] %v1721
  %v1728 = vld [vmem:[#allocation3 + $0x8] sm:$0xff]
  %v1729 = vld [vmem:[#allocation3 + $0x10] sm:$0xff]
  %v1730 = vld [vmem:[#allocation3 + $0x18] sm:$0xff]
  %v1731 = vld [vmem:[#allocation3 + $0x28] sm:$0xff]
  %v1732 = vld [vmem:[#allocation3 + $0x30] sm:$0xff]
  %v1733 = vld [vmem:[#allocation3 + $0x38] sm:$0xff]
  %v1734 = vld [vmem:[#allocation3 + $0x48] sm:$0xff]
  %v1735 = vld [vmem:[#allocation3 + $0x50] sm:$0xff]
  %v1736 = vld [vmem:[#allocation3 + $0x58] sm:$0xff]
  %1746 = vrot.lane.b32.xlu0 %v1728, 112
  %v1747 = vpop.permute.xlu0 %1746
  %1748 = vrot.lane.b32.xlu0 %v1729, 112
  %v1749 = vpop.permute.xlu0 %1748
  %1750 = vrot.lane.b32.xlu0 %v1730, 112
  %v1751 = vpop.permute.xlu0 %1750
  %1752 = vrot.lane.b32.xlu0 %v1731, 112
  %v1753 = vpop.permute.xlu0 %1752
  %1754 = vrot.lane.b32.xlu0 %v1732, 112
  %v1755 = vpop.permute.xlu0 %1754
  %1756 = vrot.lane.b32.xlu0 %v1733, 112
  %v1757 = vpop.permute.xlu0 %1756
  %1758 = vrot.lane.b32.xlu0 %v1734, 112
  %v1759 = vpop.permute.xlu0 %1758
  %1760 = vrot.lane.b32.xlu0 %v1735, 112
  %v1761 = vpop.permute.xlu0 %1760
  %1762 = vrot.lane.b32.xlu0 %v1736, 112
  %v1763 = vpop.permute.xlu0 %1762
  %v1764 = vsel %vm231, %v1747, %v1749
  %v1765 = vsel %vm231, %v1749, %v1751
  %v1766 = vsel %vm231, %v1753, %v1755
  %v1767 = vsel %vm231, %v1755, %v1757
  %v1768 = vsel %vm231, %v1759, %v1761
  %v1769 = vsel %vm231, %v1761, %v1763
  %1776 = vst [vmem:[#allocation5 + $0x60] sm:$0xff] %v1764
  %1777 = vst [vmem:[#allocation5 + $0x68] sm:$0xff] %v1765
  %1778 = vst [vmem:[#allocation5 + $0x70] sm:$0xff] %v1766
  %1779 = vst [vmem:[#allocation5 + $0x78] sm:$0xff] %v1767
  %1780 = vst [vmem:[#allocation5 + $0x80] sm:$0xff] %v1768
  %1781 = vst [vmem:[#allocation5 + $0x88] sm:$0xff] %v1769
  %v1782 = vld [vmem:[#allocation5] sm:$0xff]
  %v1783 = vld [vmem:[#allocation5 + $0x8] sm:$0xff]
  %v1784 = vld [vmem:[#allocation5 + $0x10] sm:$0xff]
  %v1785 = vld [vmem:[#allocation5 + $0x18] sm:$0xff]
  %v1786 = vld [vmem:[#allocation5 + $0x20] sm:$0xff]
  %v1787 = vld [vmem:[#allocation5 + $0x28] sm:$0xff]
  %v1788 = vld [vmem:[#allocation5 + $0x30] sm:$0xff]
  %v1789 = vld [vmem:[#allocation5 + $0x38] sm:$0xff]
  %v1790 = vld [vmem:[#allocation5 + $0x40] sm:$0xff]
  %v1791 = vld [vmem:[#allocation5 + $0x48] sm:$0xff]
  %v1792 = vld [vmem:[#allocation5 + $0x50] sm:$0xff]
  %v1793 = vld [vmem:[#allocation5 + $0x58] sm:$0xff]
  %v1794 = vld [vmem:[#allocation5 + $0x60] sm:$0xff]
  %v1795 = vld [vmem:[#allocation5 + $0x68] sm:$0xff]
  %v1796 = vld [vmem:[#allocation5 + $0x70] sm:$0xff]
  %v1797 = vld [vmem:[#allocation5 + $0x78] sm:$0xff]
  %v1798 = vld [vmem:[#allocation5 + $0x80] sm:$0xff]
  %v1799 = vld [vmem:[#allocation5 + $0x88] sm:$0xff]
  %vm1800 = vcmask 588800
  %v1802 = vsel %vm1800, %v44, 0
  %v1805 = vsel %vm1800, %v45, 0
  %v1808 = vsel %vm1800, %v46, 0
  %v1811 = vsel %vm1800, %v47, 0
  %v1814 = vsel %vm1800, %v48, 0
  %v1817 = vsel %vm1800, %v49, 0
  %v1820 = vsel %vm1800, %v50, 0
  %v1823 = vsel %vm1800, %v51, 0
  %v1826 = vsel %vm1800, %v52, 0
  %v1829 = vsel %vm1800, %v53, 0
  %v1832 = vsel %vm1800, %v54, 0
  %v1835 = vsel %vm1800, %v55, 0
  %v1838 = vsel %vm1800, %v56, 0
  %v1841 = vsel %vm1800, %v57, 0
  %v1844 = vsel %vm1800, %v58, 0
  %v1847 = vsel %vm1800, %v59, 0
  %v1850 = vsel %vm1800, %v60, 0
  %v1853 = vsel %vm1800, %v61, 0
  %v1856 = vsel %vm1800, %v62, 0
  %v1859 = vsel %vm1800, %v63, 0
  %v1862 = vsel %vm1800, %v64, 0
  %v1865 = vsel %vm1800, %v65, 0
  %v1868 = vsel %vm1800, %v66, 0
  %v1871 = vsel %vm1800, %v67, 0
  %v1874 = vsel %vm1800, %v68, 0
  %v1877 = vsel %vm1800, %v69, 0
  %v1880 = vsel %vm1800, %v70, 0
  %v1883 = vsel %vm1800, %v71, 0
  %v1886 = vsel %vm1800, %v72, 0
  %v1889 = vsel %vm1800, %v73, 0
  %v1892 = vsel %vm1800, %v74, 0
  %v1895 = vsel %vm1800, %v75, 0
  %1897 = vmatprep.subr.mxu0 %v1783
  %1898 = vmatpush1.msra.mxu0 %v1782
  %1899 = vmatprep.subr.mxu0 %v1785
  %1900 = vmatpush1.msra.mxu0 %v1784
  %1901 = vmatprep.subr.mxu0 %v1787
  %1902 = vmatpush1.msra.mxu0 %v1786
  %1903 = vmatprep.subr.mxu0 %v1789
  %1904 = vmatpush1.msra.mxu0 %v1788
  %1905 = vmatprep.subr.mxu0 %v1791
  %1906 = vmatpush1.msra.mxu0 %v1790
  %1907 = vmatprep.subr.mxu0 %v1793
  %1908 = vmatpush1.msra.mxu0 %v1792
  %1909 = vmatprep.subr.mxu0 %v1795
  %1910 = vmatpush1.msra.mxu0 %v1794
  %1911 = vmatprep.subr.mxu0 %v1797
  %1912 = vmatpush1.msra.mxu0 %v1796
  %1913 = vmatprep.subr.mxu0 %v1799
  %1914 = vmatpush1.msra.mxu0 %v1798
  %1915 = vmatprep.subr.mxu0 0.0
  %1916 = vmatpush1.msra.mxu0 0.0
  %1917 = vmatprep.subr.mxu0 0.0
  %1918 = vmatpush1.msra.mxu0 0.0
  %1919 = vmatprep.subr.mxu0 0.0
  %1920 = vmatpush1.msra.mxu0 0.0
  %1921 = vmatprep.subr.mxu0 0.0
  %1922 = vmatpush1.msra.mxu0 0.0
  %1923 = vmatprep.subr.mxu0 0.0
  %1924 = vmatpush1.msra.mxu0 0.0
  %1925 = vmatprep.subr.mxu0 0.0
  %1926 = vmatpush1.msra.mxu0 0.0
  %1927 = vmatprep.subr.mxu0 0.0
  %1928 = vmatpush1.msra.mxu0 0.0
  %1929 = vmatprep.subr.mxu0 0.0
  %1930 = vmatpush1.msra.mxu0 0.0
  %1931 = vmatprep.subr.mxu0 0.0
  %1932 = vmatpush1.msra.mxu0 0.0
  %1933 = vmatprep.subr.mxu0 0.0
  %1934 = vmatpush1.msra.mxu0 0.0
  %1935 = vmatprep.subr.mxu0 0.0
  %1936 = vmatpush1.msra.mxu0 0.0
  %1937 = vmatprep.subr.mxu0 0.0
  %1938 = vmatpush1.msra.mxu0 0.0
  %1939 = vmatprep.subr.mxu0 0.0
  %1940 = vmatpush1.msra.mxu0 0.0
  %1941 = vmatprep.subr.mxu0 0.0
  %1942 = vmatpush1.msra.mxu0 0.0
  %1943 = vmatprep.subr.mxu0 0.0
  %1944 = vmatpush1.msra.mxu0 0.0
  %1945 = vmatprep.subr.mxu0 0.0
  %1946 = vmatpush1.msra.mxu0 0.0
  %1947 = vmatprep.subr.mxu0 0.0
  %1948 = vmatpush1.msra.mxu0 0.0
  %1949 = vmatprep.subr.mxu0 0.0
  %1950 = vmatpush1.msra.mxu0 0.0
  %1951 = vmatprep.subr.mxu0 0.0
  %1952 = vmatpush1.msra.mxu0 0.0
  %1953 = vmatprep.subr.mxu0 0.0
  %1954 = vmatpush1.msra.mxu0 0.0
  %1955 = vmatprep.subr.mxu0 0.0
  %1956 = vmatpush1.msra.mxu0 0.0
  %1957 = vmatprep.subr.mxu0 0.0
  %1958 = vmatpush1.msra.mxu0 0.0
  %1959 = vmatprep.subr.mxu0 0.0
  %1960 = vmatpush1.msra.mxu0 0.0
  %1961 = vmatprep.mubr.f32.mxu0 0.0
  %1962 = vmatmul.mubr.f32.gmra.mrb[0].mxu0 %v1802
  %v1963 = vpop.f32.mrb[0].mxu0
  %v1964 = vadd.f32 0.0, %v1963
  %v1965 = vpop.f32.mrb[0].mxu0
  %v1966 = vadd.f32 0.0, %v1965
  %1967 = vmatprep.mubr.f32.mxu0 0.0
  %1968 = vmatmul.mubr.f32.gmra.mrb[0].mxu0 %v1805
  %v1969 = vpop.f32.mrb[0].mxu0
  %v1970 = vadd.f32 0.0, %v1969
  %v1971 = vpop.f32.mrb[0].mxu0
  %v1972 = vadd.f32 0.0, %v1971
  %1973 = vmatprep.mubr.f32.mxu0 0.0
  %1974 = vmatmul.mubr.f32.gmra.mrb[0].mxu0 %v1808
  %v1975 = vpop.f32.mrb[0].mxu0
  %v1976 = vadd.f32 0.0, %v1975
  %v1977 = vpop.f32.mrb[0].mxu0
  %v1978 = vadd.f32 0.0, %v1977
  %1979 = vmatprep.mubr.f32.mxu0 0.0
  %1980 = vmatmul.mubr.f32.gmra.mrb[0].mxu0 %v1811
  %v1981 = vpop.f32.mrb[0].mxu0
  %v1982 = vadd.f32 0.0, %v1981
  %v1983 = vpop.f32.mrb[0].mxu0
  %v1984 = vadd.f32 0.0, %v1983
  %1985 = vmatprep.mubr.f32.mxu0 0.0
  %1986 = vmatmul.mubr.f32.gmra.mrb[0].mxu0 %v1814
  %v1987 = vpop.f32.mrb[0].mxu0
  %v1988 = vadd.f32 0.0, %v1987
  %v1989 = vpop.f32.mrb[0].mxu0
  %v1990 = vadd.f32 0.0, %v1989
  %1991 = vmatprep.mubr.f32.mxu0 0.0
  %1992 = vmatmul.mubr.f32.gmra.mrb[0].mxu0 %v1817
  %v1993 = vpop.f32.mrb[0].mxu0
  %v1994 = vadd.f32 0.0, %v1993
  %v1995 = vpop.f32.mrb[0].mxu0
  %v1996 = vadd.f32 0.0, %v1995
  %1997 = vmatprep.mubr.f32.mxu0 0.0
  %1998 = vmatmul.mubr.f32.gmra.mrb[0].mxu0 %v1820
  %v1999 = vpop.f32.mrb[0].mxu0
  %v2000 = vadd.f32 0.0, %v1999
  %v2001 = vpop.f32.mrb[0].mxu0
  %v2002 = vadd.f32 0.0, %v2001
  %2003 = vmatprep.mubr.f32.mxu0 0.0
  %2004 = vmatmul.mubr.f32.gmra.mrb[0].mxu0 %v1823
  %v2005 = vpop.f32.mrb[0].mxu0
  %v2006 = vadd.f32 0.0, %v2005
  %v2007 = vpop.f32.mrb[0].mxu0
  %v2008 = vadd.f32 0.0, %v2007
  %2009 = vmatprep.mubr.f32.mxu0 0.0
  %2010 = vmatmul.mubr.f32.gmra.mrb[0].mxu0 %v1826
  %v2011 = vpop.f32.mrb[0].mxu0
  %v2012 = vadd.f32 0.0, %v2011
  %v2013 = vpop.f32.mrb[0].mxu0
  %v2014 = vadd.f32 0.0, %v2013
  %2015 = vmatprep.mubr.f32.mxu0 0.0
  %2016 = vmatmul.mubr.f32.gmra.mrb[0].mxu0 %v1829
  %v2017 = vpop.f32.mrb[0].mxu0
  %v2018 = vadd.f32 0.0, %v2017
  %v2019 = vpop.f32.mrb[0].mxu0
  %v2020 = vadd.f32 0.0, %v2019
  %2021 = vmatprep.mubr.f32.mxu0 0.0
  %2022 = vmatmul.mubr.f32.gmra.mrb[0].mxu0 %v1832
  %v2023 = vpop.f32.mrb[0].mxu0
  %v2024 = vadd.f32 0.0, %v2023
  %v2025 = vpop.f32.mrb[0].mxu0
  %v2026 = vadd.f32 0.0, %v2025
  %2027 = vmatprep.mubr.f32.mxu0 0.0
  %2028 = vmatmul.mubr.f32.gmra.mrb[0].mxu0 %v1835
  %v2029 = vpop.f32.mrb[0].mxu0
  %v2030 = vadd.f32 0.0, %v2029
  %v2031 = vpop.f32.mrb[0].mxu0
  %v2032 = vadd.f32 0.0, %v2031
  %2033 = vmatprep.mubr.f32.mxu0 0.0
  %2034 = vmatmul.mubr.f32.gmra.mrb[0].mxu0 %v1838
  %v2035 = vpop.f32.mrb[0].mxu0
  %v2036 = vadd.f32 0.0, %v2035
  %v2037 = vpop.f32.mrb[0].mxu0
  %v2038 = vadd.f32 0.0, %v2037
  %2039 = vmatprep.mubr.f32.mxu0 0.0
  %2040 = vmatmul.mubr.f32.gmra.mrb[0].mxu0 %v1841
  %v2041 = vpop.f32.mrb[0].mxu0
  %v2042 = vadd.f32 0.0, %v2041
  %v2043 = vpop.f32.mrb[0].mxu0
  %v2044 = vadd.f32 0.0, %v2043
  %2045 = vmatprep.mubr.f32.mxu0 0.0
  %2046 = vmatmul.mubr.f32.gmra.mrb[0].mxu0 %v1844
  %v2047 = vpop.f32.mrb[0].mxu0
  %v2048 = vadd.f32 0.0, %v2047
  %v2049 = vpop.f32.mrb[0].mxu0
  %v2050 = vadd.f32 0.0, %v2049
  %2051 = vmatprep.mubr.f32.mxu0 0.0
  %2052 = vmatmul.mubr.f32.gmra.mrb[0].mxu0 %v1847
  %v2053 = vpop.f32.mrb[0].mxu0
  %v2054 = vadd.f32 0.0, %v2053
  %v2055 = vpop.f32.mrb[0].mxu0
  %v2056 = vadd.f32 0.0, %v2055
  %2057 = vmatprep.mubr.f32.mxu0 0.0
  %2058 = vmatmul.mubr.f32.gmra.mrb[0].mxu0 %v1850
  %v2059 = vpop.f32.mrb[0].mxu0
  %v2060 = vadd.f32 0.0, %v2059
  %v2061 = vpop.f32.mrb[0].mxu0
  %v2062 = vadd.f32 0.0, %v2061
  %2063 = vmatprep.mubr.f32.mxu0 0.0
  %2064 = vmatmul.mubr.f32.gmra.mrb[0].mxu0 %v1853
  %v2065 = vpop.f32.mrb[0].mxu0
  %v2066 = vadd.f32 0.0, %v2065
  %v2067 = vpop.f32.mrb[0].mxu0
  %v2068 = vadd.f32 0.0, %v2067
  %2069 = vmatprep.mubr.f32.mxu0 0.0
  %2070 = vmatmul.mubr.f32.gmra.mrb[0].mxu0 %v1856
  %v2071 = vpop.f32.mrb[0].mxu0
  %v2072 = vadd.f32 0.0, %v2071
  %v2073 = vpop.f32.mrb[0].mxu0
  %v2074 = vadd.f32 0.0, %v2073
  %2075 = vmatprep.mubr.f32.mxu0 0.0
  %2076 = vmatmul.mubr.f32.gmra.mrb[0].mxu0 %v1859
  %v2077 = vpop.f32.mrb[0].mxu0
  %v2078 = vadd.f32 0.0, %v2077
  %v2079 = vpop.f32.mrb[0].mxu0
  %v2080 = vadd.f32 0.0, %v2079
  %2081 = vmatprep.mubr.f32.mxu0 0.0
  %2082 = vmatmul.mubr.f32.gmra.mrb[0].mxu0 %v1862
  %v2083 = vpop.f32.mrb[0].mxu0
  %v2084 = vadd.f32 0.0, %v2083
  %v2085 = vpop.f32.mrb[0].mxu0
  %v2086 = vadd.f32 0.0, %v2085
  %2087 = vmatprep.mubr.f32.mxu0 0.0
  %2088 = vmatmul.mubr.f32.gmra.mrb[0].mxu0 %v1865
  %v2089 = vpop.f32.mrb[0].mxu0
  %v2090 = vadd.f32 0.0, %v2089
  %v2091 = vpop.f32.mrb[0].mxu0
  %v2092 = vadd.f32 0.0, %v2091
  %2093 = vmatprep.mubr.f32.mxu0 0.0
  %2094 = vmatmul.mubr.f32.gmra.mrb[0].mxu0 %v1868
  %v2095 = vpop.f32.mrb[0].mxu0
  %v2096 = vadd.f32 0.0, %v2095
  %v2097 = vpop.f32.mrb[0].mxu0
  %v2098 = vadd.f32 0.0, %v2097
  %2099 = vmatprep.mubr.f32.mxu0 0.0
  %2100 = vmatmul.mubr.f32.gmra.mrb[0].mxu0 %v1871
  %v2101 = vpop.f32.mrb[0].mxu0
  %v2102 = vadd.f32 0.0, %v2101
  %v2103 = vpop.f32.mrb[0].mxu0
  %v2104 = vadd.f32 0.0, %v2103
  %2105 = vmatprep.mubr.f32.mxu0 0.0
  %2106 = vmatmul.mubr.f32.gmra.mrb[0].mxu0 %v1874
  %v2107 = vpop.f32.mrb[0].mxu0
  %v2108 = vadd.f32 0.0, %v2107
  %v2109 = vpop.f32.mrb[0].mxu0
  %v2110 = vadd.f32 0.0, %v2109
  %2111 = vmatprep.mubr.f32.mxu0 0.0
  %2112 = vmatmul.mubr.f32.gmra.mrb[0].mxu0 %v1877
  %v2113 = vpop.f32.mrb[0].mxu0
  %v2114 = vadd.f32 0.0, %v2113
  %v2115 = vpop.f32.mrb[0].mxu0
  %v2116 = vadd.f32 0.0, %v2115
  %2117 = vmatprep.mubr.f32.mxu0 0.0
  %2118 = vmatmul.mubr.f32.gmra.mrb[0].mxu0 %v1880
  %v2119 = vpop.f32.mrb[0].mxu0
  %v2120 = vadd.f32 0.0, %v2119
  %v2121 = vpop.f32.mrb[0].mxu0
  %v2122 = vadd.f32 0.0, %v2121
  %2123 = vmatprep.mubr.f32.mxu0 0.0
  %2124 = vmatmul.mubr.f32.gmra.mrb[0].mxu0 %v1883
  %v2125 = vpop.f32.mrb[0].mxu0
  %v2126 = vadd.f32 0.0, %v2125
  %v2127 = vpop.f32.mrb[0].mxu0
  %v2128 = vadd.f32 0.0, %v2127
  %2129 = vmatprep.mubr.f32.mxu0 0.0
  %2130 = vmatmul.mubr.f32.gmra.mrb[0].mxu0 %v1886
  %v2131 = vpop.f32.mrb[0].mxu0
  %v2132 = vadd.f32 0.0, %v2131
  %v2133 = vpop.f32.mrb[0].mxu0
  %v2134 = vadd.f32 0.0, %v2133
  %2135 = vmatprep.mubr.f32.mxu0 0.0
  %2136 = vmatmul.mubr.f32.gmra.mrb[0].mxu0 %v1889
  %v2137 = vpop.f32.mrb[0].mxu0
  %v2138 = vadd.f32 0.0, %v2137
  %v2139 = vpop.f32.mrb[0].mxu0
  %v2140 = vadd.f32 0.0, %v2139
  %2141 = vmatprep.mubr.f32.mxu0 0.0
  %2142 = vmatmul.mubr.f32.gmra.mrb[0].mxu0 %v1892
  %v2143 = vpop.f32.mrb[0].mxu0
  %v2144 = vadd.f32 0.0, %v2143
  %v2145 = vpop.f32.mrb[0].mxu0
  %v2146 = vadd.f32 0.0, %v2145
  %2147 = vmatprep.mubr.f32.mxu0 0.0
  %2148 = vmatmul.mubr.f32.gmra.mrb[0].mxu0 %v1895
  %v2149 = vpop.f32.mrb[0].mxu0
  %v2150 = vadd.f32 0.0, %v2149
  %v2151 = vpop.f32.mrb[0].mxu0
  %v2152 = vadd.f32 0.0, %v2151
  %2153 = vdwg.mxu0
  %2154 = vst [vmem:[%s5] sm:$0xff] %v1964
  %2155 = vst [vmem:[%s5 + $0x8] sm:$0xff] %v1966
  %2156 = vst [vmem:[%s5 + $0x10] sm:$0xff] %v1970
  %2157 = vst [vmem:[%s5 + $0x18] sm:$0xff] %v1972
  %2158 = vst [vmem:[%s5 + $0x20] sm:$0xff] %v1976
  %2159 = vst [vmem:[%s5 + $0x28] sm:$0xff] %v1978
  %2160 = vst [vmem:[%s5 + $0x30] sm:$0xff] %v1982
  %2161 = vst [vmem:[%s5 + $0x38] sm:$0xff] %v1984
  %2162 = vst [vmem:[%s5 + $0x40] sm:$0xff] %v1988
  %2163 = vst [vmem:[%s5 + $0x48] sm:$0xff] %v1990
  %2164 = vst [vmem:[%s5 + $0x50] sm:$0xff] %v1994
  %2165 = vst [vmem:[%s5 + $0x58] sm:$0xff] %v1996
  %2166 = vst [vmem:[%s5 + $0x60] sm:$0xff] %v2000
  %2167 = vst [vmem:[%s5 + $0x68] sm:$0xff] %v2002
  %2168 = vst [vmem:[%s5 + $0x70] sm:$0xff] %v2006
  %2169 = vst [vmem:[%s5 + $0x78] sm:$0xff] %v2008
  %2170 = vst [vmem:[%s5 + $0x80] sm:$0xff] %v2012
  %2171 = vst [vmem:[%s5 + $0x88] sm:$0xff] %v2014
  %2172 = vst [vmem:[%s5 + $0x90] sm:$0xff] %v2018
  %2173 = vst [vmem:[%s5 + $0x98] sm:$0xff] %v2020
  %2174 = vst [vmem:[%s5 + $0xa0] sm:$0xff] %v2024
  %2175 = vst [vmem:[%s5 + $0xa8] sm:$0xff] %v2026
  %2176 = vst [vmem:[%s5 + $0xb0] sm:$0xff] %v2030
  %2177 = vst [vmem:[%s5 + $0xb8] sm:$0xff] %v2032
  %2178 = vst [vmem:[%s5 + $0xc0] sm:$0xff] %v2036
  %2179 = vst [vmem:[%s5 + $0xc8] sm:$0xff] %v2038
  %2180 = vst [vmem:[%s5 + $0xd0] sm:$0xff] %v2042
  %2181 = vst [vmem:[%s5 + $0xd8] sm:$0xff] %v2044
  %2182 = vst [vmem:[%s5 + $0xe0] sm:$0xff] %v2048
  %2183 = vst [vmem:[%s5 + $0xe8] sm:$0xff] %v2050
  %2184 = vst [vmem:[%s5 + $0xf0] sm:$0xff] %v2054
  %2185 = vst [vmem:[%s5 + $0xf8] sm:$0xff] %v2056
  %2186 = vst [vmem:[%s5 + $0x100] sm:$0xff] %v2060
  %2187 = vst [vmem:[%s5 + $0x108] sm:$0xff] %v2062
  %2188 = vst [vmem:[%s5 + $0x110] sm:$0xff] %v2066
  %2189 = vst [vmem:[%s5 + $0x118] sm:$0xff] %v2068
  %2190 = vst [vmem:[%s5 + $0x120] sm:$0xff] %v2072
  %2191 = vst [vmem:[%s5 + $0x128] sm:$0xff] %v2074
  %2192 = vst [vmem:[%s5 + $0x130] sm:$0xff] %v2078
  %2193 = vst [vmem:[%s5 + $0x138] sm:$0xff] %v2080
  %2194 = vst [vmem:[%s5 + $0x140] sm:$0xff] %v2084
  %2195 = vst [vmem:[%s5 + $0x148] sm:$0xff] %v2086
  %2196 = vst [vmem:[%s5 + $0x150] sm:$0xff] %v2090
  %2197 = vst [vmem:[%s5 + $0x158] sm:$0xff] %v2092
  %2198 = vst [vmem:[%s5 + $0x160] sm:$0xff] %v2096
  %2199 = vst [vmem:[%s5 + $0x168] sm:$0xff] %v2098
  %2200 = vst [vmem:[%s5 + $0x170] sm:$0xff] %v2102
  %2201 = vst [vmem:[%s5 + $0x178] sm:$0xff] %v2104
  %2202 = vst [vmem:[%s5 + $0x180] sm:$0xff] %v2108
  %2203 = vst [vmem:[%s5 + $0x188] sm:$0xff] %v2110
  %2204 = vst [vmem:[%s5 + $0x190] sm:$0xff] %v2114
  %2205 = vst [vmem:[%s5 + $0x198] sm:$0xff] %v2116
  %2206 = vst [vmem:[%s5 + $0x1a0] sm:$0xff] %v2120
  %2207 = vst [vmem:[%s5 + $0x1a8] sm:$0xff] %v2122
  %2208 = vst [vmem:[%s5 + $0x1b0] sm:$0xff] %v2126
  %2209 = vst [vmem:[%s5 + $0x1b8] sm:$0xff] %v2128
  %2210 = vst [vmem:[%s5 + $0x1c0] sm:$0xff] %v2132
  %2211 = vst [vmem:[%s5 + $0x1c8] sm:$0xff] %v2134
  %2212 = vst [vmem:[%s5 + $0x1d0] sm:$0xff] %v2138
  %2213 = vst [vmem:[%s5 + $0x1d8] sm:$0xff] %v2140
  %2214 = vst [vmem:[%s5 + $0x1e0] sm:$0xff] %v2144
  %2215 = vst [vmem:[%s5 + $0x1e8] sm:$0xff] %v2146
  %2216 = vst [vmem:[%s5 + $0x1f0] sm:$0xff] %v2150
  %2217 = vst [vmem:[%s5 + $0x1f8] sm:$0xff] %v2152
  %s2218 = scalar_lea.vmem %s4, 128
  %v2219 = vld [vmem:[%s2218] sm:$0xff]
  %v2220 = vld [vmem:[%s2218 + $0x8] sm:$0xff]
  %v2221 = vld [vmem:[%s2218 + $0x10] sm:$0xff]
  %v2222 = vld [vmem:[%s2218 + $0x18] sm:$0xff]
  %v2223 = vld [vmem:[%s2218 + $0x20] sm:$0xff]
  %v2224 = vld [vmem:[%s2218 + $0x28] sm:$0xff]
  %v2225 = vld [vmem:[%s2218 + $0x30] sm:$0xff]
  %v2226 = vld [vmem:[%s2218 + $0x38] sm:$0xff]
  %s2227 = scalar_lea.vmem %s4, 192
  %v2228 = vld [vmem:[%s2227] sm:$0xff]
  %v2229 = vld [vmem:[%s2227 + $0x8] sm:$0xff]
  %v2230 = vld [vmem:[%s2227 + $0x10] sm:$0xff]
  %v2231 = vld [vmem:[%s2227 + $0x18] sm:$0xff]
  %v2232 = vld [vmem:[%s2227 + $0x20] sm:$0xff]
  %v2233 = vld [vmem:[%s2227 + $0x28] sm:$0xff]
  %v2234 = vld [vmem:[%s2227 + $0x30] sm:$0xff]
  %v2235 = vld [vmem:[%s2227 + $0x38] sm:$0xff]
  %v2236 = vadd.f32 %v2219, %v2228
  %v2237 = vadd.f32 %v2220, %v2229
  %v2238 = vadd.f32 %v2221, %v2230
  %v2239 = vadd.f32 %v2222, %v2231
  %v2240 = vadd.f32 %v2223, %v2232
  %v2241 = vadd.f32 %v2224, %v2233
  %v2242 = vadd.f32 %v2225, %v2234
  %v2243 = vadd.f32 %v2226, %v2235
  %2244 = vst [vmem:[#allocation2 + $0x8] sm:$0xff] %v2236
  %2245 = vst [vmem:[#allocation2 + $0x10] sm:$0xff] %v2237
  %2246 = vst [vmem:[#allocation2 + $0x28] sm:$0xff] %v2238
  %2247 = vst [vmem:[#allocation2 + $0x30] sm:$0xff] %v2239
  %2248 = vst [vmem:[#allocation2 + $0x48] sm:$0xff] %v2240
  %2249 = vst [vmem:[#allocation2 + $0x50] sm:$0xff] %v2241
  %2250 = vst [vmem:[#allocation2 + $0x68] sm:$0xff] %v2242
  %2251 = vst [vmem:[#allocation2 + $0x70] sm:$0xff] %v2243
  %v2252 = vld [vmem:[#allocation2] sm:$0xff]
  %v2253 = vld [vmem:[#allocation2 + $0x8] sm:$0xff]
  %v2254 = vld [vmem:[#allocation2 + $0x10] sm:$0xff]
  %v2255 = vld [vmem:[#allocation2 + $0x20] sm:$0xff]
  %v2256 = vld [vmem:[#allocation2 + $0x28] sm:$0xff]
  %v2257 = vld [vmem:[#allocation2 + $0x30] sm:$0xff]
  %v2258 = vld [vmem:[#allocation2 + $0x40] sm:$0xff]
  %v2259 = vld [vmem:[#allocation2 + $0x48] sm:$0xff]
  %v2260 = vld [vmem:[#allocation2 + $0x50] sm:$0xff]
  %v2261 = vld [vmem:[#allocation2 + $0x60] sm:$0xff]
  %v2262 = vld [vmem:[#allocation2 + $0x68] sm:$0xff]
  %v2263 = vld [vmem:[#allocation2 + $0x70] sm:$0xff]
  %v2264 = vld [vmem:[#allocation2 + $0x8] sm:$0xff]
  %v2265 = vld [vmem:[#allocation2 + $0x10] sm:$0xff]
  %v2266 = vld [vmem:[#allocation2 + $0x18] sm:$0xff]
  %v2267 = vld [vmem:[#allocation2 + $0x28] sm:$0xff]
  %v2268 = vld [vmem:[#allocation2 + $0x30] sm:$0xff]
  %v2269 = vld [vmem:[#allocation2 + $0x38] sm:$0xff]
  %v2270 = vld [vmem:[#allocation2 + $0x48] sm:$0xff]
  %v2271 = vld [vmem:[#allocation2 + $0x50] sm:$0xff]
  %v2272 = vld [vmem:[#allocation2 + $0x58] sm:$0xff]
  %v2273 = vld [vmem:[#allocation2 + $0x68] sm:$0xff]
  %v2274 = vld [vmem:[#allocation2 + $0x70] sm:$0xff]
  %v2275 = vld [vmem:[#allocation2 + $0x78] sm:$0xff]
  %v2276 = vmul.f32 %v2252, %v144
  %v2277 = vmul.f32 %v2253, %v148
  %v2278 = vmul.f32 %v2254, %v146
  %v2279 = vmul.f32 %v2255, %v144
  %v2280 = vmul.f32 %v2256, %v148
  %v2281 = vmul.f32 %v2257, %v146
  %v2282 = vmul.f32 %v2258, %v144
  %v2283 = vmul.f32 %v2259, %v148
  %v2284 = vmul.f32 %v2260, %v146
  %v2285 = vmul.f32 %v2261, %v144
  %v2286 = vmul.f32 %v2262, %v148
  %v2287 = vmul.f32 %v2263, %v146
  %v2288 = vmul.f32 %v2264, %v175
  %v2289 = vmul.f32 %v2265, %v179
  %v2290 = vmul.f32 %v2266, %v177
  %v2291 = vmul.f32 %v2267, %v175
  %v2292 = vmul.f32 %v2268, %v179
  %v2293 = vmul.f32 %v2269, %v177
  %v2294 = vmul.f32 %v2270, %v175
  %v2295 = vmul.f32 %v2271, %v179
  %v2296 = vmul.f32 %v2272, %v177
  %v2297 = vmul.f32 %v2273, %v175
  %v2298 = vmul.f32 %v2274, %v179
  %v2299 = vmul.f32 %v2275, %v177
  %2312 = vrot.lane.b32.xlu0 %v2288, 112
  %v2313 = vpop.permute.xlu0 %2312
  %2314 = vrot.lane.b32.xlu0 %v2289, 112
  %v2315 = vpop.permute.xlu0 %2314
  %2316 = vrot.lane.b32.xlu0 %v2290, 112
  %v2317 = vpop.permute.xlu0 %2316
  %2318 = vrot.lane.b32.xlu0 %v2291, 112
  %v2319 = vpop.permute.xlu0 %2318
  %2320 = vrot.lane.b32.xlu0 %v2292, 112
  %v2321 = vpop.permute.xlu0 %2320
  %2322 = vrot.lane.b32.xlu0 %v2293, 112
  %v2323 = vpop.permute.xlu0 %2322
  %2324 = vrot.lane.b32.xlu0 %v2294, 112
  %v2325 = vpop.permute.xlu0 %2324
  %2326 = vrot.lane.b32.xlu0 %v2295, 112
  %v2327 = vpop.permute.xlu0 %2326
  %2328 = vrot.lane.b32.xlu0 %v2296, 112
  %v2329 = vpop.permute.xlu0 %2328
  %2330 = vrot.lane.b32.xlu0 %v2297, 112
  %v2331 = vpop.permute.xlu0 %2330
  %2332 = vrot.lane.b32.xlu0 %v2298, 112
  %v2333 = vpop.permute.xlu0 %2332
  %2334 = vrot.lane.b32.xlu0 %v2299, 112
  %v2335 = vpop.permute.xlu0 %2334
  %v2336 = vsel %vm231, %v2313, %v2315
  %v2337 = vsel %vm231, %v2315, %v2317
  %v2338 = vsel %vm231, %v2319, %v2321
  %v2339 = vsel %vm231, %v2321, %v2323
  %v2340 = vsel %vm231, %v2325, %v2327
  %v2341 = vsel %vm231, %v2327, %v2329
  %v2342 = vsel %vm231, %v2331, %v2333
  %v2343 = vsel %vm231, %v2333, %v2335
  %v2356 = vadd.f32 %v2276, %v2313
  %v2357 = vadd.f32 %v2277, %v2336
  %v2358 = vadd.f32 %v2278, %v2337
  %v2359 = vadd.f32 %v2279, %v2319
  %v2360 = vadd.f32 %v2280, %v2338
  %v2361 = vadd.f32 %v2281, %v2339
  %v2362 = vadd.f32 %v2282, %v2325
  %v2363 = vadd.f32 %v2283, %v2340
  %v2364 = vadd.f32 %v2284, %v2341
  %v2365 = vadd.f32 %v2285, %v2331
  %v2366 = vadd.f32 %v2286, %v2342
  %v2367 = vadd.f32 %v2287, %v2343
  %2380 = vrot.lane.b32.xlu0 %v2356, 4
  %v2381 = vpop.permute.xlu0 %2380
  %2382 = vrot.lane.b32.xlu0 %v2357, 4
  %v2383 = vpop.permute.xlu0 %2382
  %2384 = vrot.lane.b32.xlu0 %v2358, 4
  %v2385 = vpop.permute.xlu0 %2384
  %2386 = vrot.lane.b32.xlu0 %v2359, 4
  %v2387 = vpop.permute.xlu0 %2386
  %2388 = vrot.lane.b32.xlu0 %v2360, 4
  %v2389 = vpop.permute.xlu0 %2388
  %2390 = vrot.lane.b32.xlu0 %v2361, 4
  %v2391 = vpop.permute.xlu0 %2390
  %2392 = vrot.lane.b32.xlu0 %v2362, 4
  %v2393 = vpop.permute.xlu0 %2392
  %2394 = vrot.lane.b32.xlu0 %v2363, 4
  %v2395 = vpop.permute.xlu0 %2394
  %2396 = vrot.lane.b32.xlu0 %v2364, 4
  %v2397 = vpop.permute.xlu0 %2396
  %2398 = vrot.lane.b32.xlu0 %v2365, 4
  %v2399 = vpop.permute.xlu0 %2398
  %2400 = vrot.lane.b32.xlu0 %v2366, 4
  %v2401 = vpop.permute.xlu0 %2400
  %2402 = vrot.lane.b32.xlu0 %v2367, 4
  %v2403 = vpop.permute.xlu0 %2402
  %v2404 = vsel %vm300, %v2381, %v2383
  %v2405 = vsel %vm300, %v2383, %v2385
  %v2406 = vsel %vm300, %v2387, %v2389
  %v2407 = vsel %vm300, %v2389, %v2391
  %v2408 = vsel %vm300, %v2393, %v2395
  %v2409 = vsel %vm300, %v2395, %v2397
  %v2410 = vsel %vm300, %v2399, %v2401
  %v2411 = vsel %vm300, %v2401, %v2403
  %2420 = vst [vmem:[#allocation4] sm:$0xff] %v2404
  %2421 = vst [vmem:[#allocation4 + $0x8] sm:$0xff] %v2405
  %2422 = vst [vmem:[#allocation4 + $0x10] sm:$0xff] %v2406
  %2423 = vst [vmem:[#allocation4 + $0x18] sm:$0xff] %v2407
  %2424 = vst [vmem:[#allocation4 + $0x20] sm:$0xff] %v2408
  %2425 = vst [vmem:[#allocation4 + $0x28] sm:$0xff] %v2409
  %2426 = vst [vmem:[#allocation4 + $0x30] sm:$0xff] %v2410
  %2427 = vst [vmem:[#allocation4 + $0x38] sm:$0xff] %v2411
  %v2428 = vld [vmem:[#allocation2] sm:$0xff]
  %v2429 = vld [vmem:[#allocation2 + $0x8] sm:$0xff]
  %v2430 = vld [vmem:[#allocation2 + $0x10] sm:$0xff]
  %v2431 = vld [vmem:[#allocation2 + $0x20] sm:$0xff]
  %v2432 = vld [vmem:[#allocation2 + $0x28] sm:$0xff]
  %v2433 = vld [vmem:[#allocation2 + $0x30] sm:$0xff]
  %v2434 = vld [vmem:[#allocation2 + $0x40] sm:$0xff]
  %v2435 = vld [vmem:[#allocation2 + $0x48] sm:$0xff]
  %v2436 = vld [vmem:[#allocation2 + $0x50] sm:$0xff]
  %v2437 = vld [vmem:[#allocation2 + $0x60] sm:$0xff]
  %v2438 = vld [vmem:[#allocation2 + $0x68] sm:$0xff]
  %v2439 = vld [vmem:[#allocation2 + $0x70] sm:$0xff]
  %v2440 = vld [vmem:[#allocation2 + $0x8] sm:$0xff]
  %v2441 = vld [vmem:[#allocation2 + $0x10] sm:$0xff]
  %v2442 = vld [vmem:[#allocation2 + $0x18] sm:$0xff]
  %v2443 = vld [vmem:[#allocation2 + $0x28] sm:$0xff]
  %v2444 = vld [vmem:[#allocation2 + $0x30] sm:$0xff]
  %v2445 = vld [vmem:[#allocation2 + $0x38] sm:$0xff]
  %v2446 = vld [vmem:[#allocation2 + $0x48] sm:$0xff]
  %v2447 = vld [vmem:[#allocation2 + $0x50] sm:$0xff]
  %v2448 = vld [vmem:[#allocation2 + $0x58] sm:$0xff]
  %v2449 = vld [vmem:[#allocation2 + $0x68] sm:$0xff]
  %v2450 = vld [vmem:[#allocation2 + $0x70] sm:$0xff]
  %v2451 = vld [vmem:[#allocation2 + $0x78] sm:$0xff]
  %v2452 = vmul.f32 %v2428, %v360
  %v2453 = vmul.f32 %v2429, %v364
  %v2454 = vmul.f32 %v2430, %v362
  %v2455 = vmul.f32 %v2431, %v360
  %v2456 = vmul.f32 %v2432, %v364
  %v2457 = vmul.f32 %v2433, %v362
  %v2458 = vmul.f32 %v2434, %v360
  %v2459 = vmul.f32 %v2435, %v364
  %v2460 = vmul.f32 %v2436, %v362
  %v2461 = vmul.f32 %v2437, %v360
  %v2462 = vmul.f32 %v2438, %v364
  %v2463 = vmul.f32 %v2439, %v362
  %v2464 = vmul.f32 %v2440, %v391
  %v2465 = vmul.f32 %v2441, %v395
  %v2466 = vmul.f32 %v2442, %v393
  %v2467 = vmul.f32 %v2443, %v391
  %v2468 = vmul.f32 %v2444, %v395
  %v2469 = vmul.f32 %v2445, %v393
  %v2470 = vmul.f32 %v2446, %v391
  %v2471 = vmul.f32 %v2447, %v395
  %v2472 = vmul.f32 %v2448, %v393
  %v2473 = vmul.f32 %v2449, %v391
  %v2474 = vmul.f32 %v2450, %v395
  %v2475 = vmul.f32 %v2451, %v393
  %2488 = vrot.lane.b32.xlu0 %v2464, 112
  %v2489 = vpop.permute.xlu0 %2488
  %2490 = vrot.lane.b32.xlu0 %v2465, 112
  %v2491 = vpop.permute.xlu0 %2490
  %2492 = vrot.lane.b32.xlu0 %v2466, 112
  %v2493 = vpop.permute.xlu0 %2492
  %2494 = vrot.lane.b32.xlu0 %v2467, 112
  %v2495 = vpop.permute.xlu0 %2494
  %2496 = vrot.lane.b32.xlu0 %v2468, 112
  %v2497 = vpop.permute.xlu0 %2496
  %2498 = vrot.lane.b32.xlu0 %v2469, 112
  %v2499 = vpop.permute.xlu0 %2498
  %2500 = vrot.lane.b32.xlu0 %v2470, 112
  %v2501 = vpop.permute.xlu0 %2500
  %2502 = vrot.lane.b32.xlu0 %v2471, 112
  %v2503 = vpop.permute.xlu0 %2502
  %2504 = vrot.lane.b32.xlu0 %v2472, 112
  %v2505 = vpop.permute.xlu0 %2504
  %2506 = vrot.lane.b32.xlu0 %v2473, 112
  %v2507 = vpop.permute.xlu0 %2506
  %2508 = vrot.lane.b32.xlu0 %v2474, 112
  %v2509 = vpop.permute.xlu0 %2508
  %2510 = vrot.lane.b32.xlu0 %v2475, 112
  %v2511 = vpop.permute.xlu0 %2510
  %v2512 = vsel %vm231, %v2489, %v2491
  %v2513 = vsel %vm231, %v2491, %v2493
  %v2514 = vsel %vm231, %v2495, %v2497
  %v2515 = vsel %vm231, %v2497, %v2499
  %v2516 = vsel %vm231, %v2501, %v2503
  %v2517 = vsel %vm231, %v2503, %v2505
  %v2518 = vsel %vm231, %v2507, %v2509
  %v2519 = vsel %vm231, %v2509, %v2511
  %v2532 = vadd.f32 %v2452, %v2489
  %v2533 = vadd.f32 %v2453, %v2512
  %v2534 = vadd.f32 %v2454, %v2513
  %v2535 = vadd.f32 %v2455, %v2495
  %v2536 = vadd.f32 %v2456, %v2514
  %v2537 = vadd.f32 %v2457, %v2515
  %v2538 = vadd.f32 %v2458, %v2501
  %v2539 = vadd.f32 %v2459, %v2516
  %v2540 = vadd.f32 %v2460, %v2517
  %v2541 = vadd.f32 %v2461, %v2507
  %v2542 = vadd.f32 %v2462, %v2518
  %v2543 = vadd.f32 %v2463, %v2519
  %2556 = vrot.lane.b32.xlu0 %v2532, 3
  %v2557 = vpop.permute.xlu0 %2556
  %2558 = vrot.lane.b32.xlu0 %v2533, 3
  %v2559 = vpop.permute.xlu0 %2558
  %2560 = vrot.lane.b32.xlu0 %v2534, 3
  %v2561 = vpop.permute.xlu0 %2560
  %2562 = vrot.lane.b32.xlu0 %v2535, 3
  %v2563 = vpop.permute.xlu0 %2562
  %2564 = vrot.lane.b32.xlu0 %v2536, 3
  %v2565 = vpop.permute.xlu0 %2564
  %2566 = vrot.lane.b32.xlu0 %v2537, 3
  %v2567 = vpop.permute.xlu0 %2566
  %2568 = vrot.lane.b32.xlu0 %v2538, 3
  %v2569 = vpop.permute.xlu0 %2568
  %2570 = vrot.lane.b32.xlu0 %v2539, 3
  %v2571 = vpop.permute.xlu0 %2570
  %2572 = vrot.lane.b32.xlu0 %v2540, 3
  %v2573 = vpop.permute.xlu0 %2572
  %2574 = vrot.lane.b32.xlu0 %v2541, 3
  %v2575 = vpop.permute.xlu0 %2574
  %2576 = vrot.lane.b32.xlu0 %v2542, 3
  %v2577 = vpop.permute.xlu0 %2576
  %2578 = vrot.lane.b32.xlu0 %v2543, 3
  %v2579 = vpop.permute.xlu0 %2578
  %v2580 = vsel %vm515, %v2557, %v2559
  %v2581 = vsel %vm515, %v2559, %v2561
  %v2582 = vsel %vm515, %v2563, %v2565
  %v2583 = vsel %vm515, %v2565, %v2567
  %v2584 = vsel %vm515, %v2569, %v2571
  %v2585 = vsel %vm515, %v2571, %v2573
  %v2586 = vsel %vm515, %v2575, %v2577
  %v2587 = vsel %vm515, %v2577, %v2579
  %2596 = vst [vmem:[#allocation4 + $0x40] sm:$0xff] %v2580
  %2597 = vst [vmem:[#allocation4 + $0x48] sm:$0xff] %v2581
  %2598 = vst [vmem:[#allocation4 + $0x50] sm:$0xff] %v2582
  %2599 = vst [vmem:[#allocation4 + $0x58] sm:$0xff] %v2583
  %2600 = vst [vmem:[#allocation4 + $0x60] sm:$0xff] %v2584
  %2601 = vst [vmem:[#allocation4 + $0x68] sm:$0xff] %v2585
  %2602 = vst [vmem:[#allocation4 + $0x70] sm:$0xff] %v2586
  %2603 = vst [vmem:[#allocation4 + $0x78] sm:$0xff] %v2587
  %v2604 = vld [vmem:[#allocation2] sm:$0xff]
  %v2605 = vld [vmem:[#allocation2 + $0x8] sm:$0xff]
  %v2606 = vld [vmem:[#allocation2 + $0x10] sm:$0xff]
  %v2607 = vld [vmem:[#allocation2 + $0x20] sm:$0xff]
  %v2608 = vld [vmem:[#allocation2 + $0x28] sm:$0xff]
  %v2609 = vld [vmem:[#allocation2 + $0x30] sm:$0xff]
  %v2610 = vld [vmem:[#allocation2 + $0x40] sm:$0xff]
  %v2611 = vld [vmem:[#allocation2 + $0x48] sm:$0xff]
  %v2612 = vld [vmem:[#allocation2 + $0x50] sm:$0xff]
  %v2613 = vld [vmem:[#allocation2 + $0x60] sm:$0xff]
  %v2614 = vld [vmem:[#allocation2 + $0x68] sm:$0xff]
  %v2615 = vld [vmem:[#allocation2 + $0x70] sm:$0xff]
  %v2616 = vld [vmem:[#allocation2 + $0x8] sm:$0xff]
  %v2617 = vld [vmem:[#allocation2 + $0x10] sm:$0xff]
  %v2618 = vld [vmem:[#allocation2 + $0x18] sm:$0xff]
  %v2619 = vld [vmem:[#allocation2 + $0x28] sm:$0xff]
  %v2620 = vld [vmem:[#allocation2 + $0x30] sm:$0xff]
  %v2621 = vld [vmem:[#allocation2 + $0x38] sm:$0xff]
  %v2622 = vld [vmem:[#allocation2 + $0x48] sm:$0xff]
  %v2623 = vld [vmem:[#allocation2 + $0x50] sm:$0xff]
  %v2624 = vld [vmem:[#allocation2 + $0x58] sm:$0xff]
  %v2625 = vld [vmem:[#allocation2 + $0x68] sm:$0xff]
  %v2626 = vld [vmem:[#allocation2 + $0x70] sm:$0xff]
  %v2627 = vld [vmem:[#allocation2 + $0x78] sm:$0xff]
  %v2628 = vmul.f32 %v2604, %v575
  %v2629 = vmul.f32 %v2605, %v579
  %v2630 = vmul.f32 %v2606, %v577
  %v2631 = vmul.f32 %v2607, %v575
  %v2632 = vmul.f32 %v2608, %v579
  %v2633 = vmul.f32 %v2609, %v577
  %v2634 = vmul.f32 %v2610, %v575
  %v2635 = vmul.f32 %v2611, %v579
  %v2636 = vmul.f32 %v2612, %v577
  %v2637 = vmul.f32 %v2613, %v575
  %v2638 = vmul.f32 %v2614, %v579
  %v2639 = vmul.f32 %v2615, %v577
  %v2640 = vmul.f32 %v2616, %v606
  %v2641 = vmul.f32 %v2617, %v610
  %v2642 = vmul.f32 %v2618, %v608
  %v2643 = vmul.f32 %v2619, %v606
  %v2644 = vmul.f32 %v2620, %v610
  %v2645 = vmul.f32 %v2621, %v608
  %v2646 = vmul.f32 %v2622, %v606
  %v2647 = vmul.f32 %v2623, %v610
  %v2648 = vmul.f32 %v2624, %v608
  %v2649 = vmul.f32 %v2625, %v606
  %v2650 = vmul.f32 %v2626, %v610
  %v2651 = vmul.f32 %v2627, %v608
  %2664 = vrot.lane.b32.xlu0 %v2640, 112
  %v2665 = vpop.permute.xlu0 %2664
  %2666 = vrot.lane.b32.xlu0 %v2641, 112
  %v2667 = vpop.permute.xlu0 %2666
  %2668 = vrot.lane.b32.xlu0 %v2642, 112
  %v2669 = vpop.permute.xlu0 %2668
  %2670 = vrot.lane.b32.xlu0 %v2643, 112
  %v2671 = vpop.permute.xlu0 %2670
  %2672 = vrot.lane.b32.xlu0 %v2644, 112
  %v2673 = vpop.permute.xlu0 %2672
  %2674 = vrot.lane.b32.xlu0 %v2645, 112
  %v2675 = vpop.permute.xlu0 %2674
  %2676 = vrot.lane.b32.xlu0 %v2646, 112
  %v2677 = vpop.permute.xlu0 %2676
  %2678 = vrot.lane.b32.xlu0 %v2647, 112
  %v2679 = vpop.permute.xlu0 %2678
  %2680 = vrot.lane.b32.xlu0 %v2648, 112
  %v2681 = vpop.permute.xlu0 %2680
  %2682 = vrot.lane.b32.xlu0 %v2649, 112
  %v2683 = vpop.permute.xlu0 %2682
  %2684 = vrot.lane.b32.xlu0 %v2650, 112
  %v2685 = vpop.permute.xlu0 %2684
  %2686 = vrot.lane.b32.xlu0 %v2651, 112
  %v2687 = vpop.permute.xlu0 %2686
  %v2688 = vsel %vm231, %v2665, %v2667
  %v2689 = vsel %vm231, %v2667, %v2669
  %v2690 = vsel %vm231, %v2671, %v2673
  %v2691 = vsel %vm231, %v2673, %v2675
  %v2692 = vsel %vm231, %v2677, %v2679
  %v2693 = vsel %vm231, %v2679, %v2681
  %v2694 = vsel %vm231, %v2683, %v2685
  %v2695 = vsel %vm231, %v2685, %v2687
  %v2708 = vadd.f32 %v2628, %v2665
  %v2709 = vadd.f32 %v2629, %v2688
  %v2710 = vadd.f32 %v2630, %v2689
  %v2711 = vadd.f32 %v2631, %v2671
  %v2712 = vadd.f32 %v2632, %v2690
  %v2713 = vadd.f32 %v2633, %v2691
  %v2714 = vadd.f32 %v2634, %v2677
  %v2715 = vadd.f32 %v2635, %v2692
  %v2716 = vadd.f32 %v2636, %v2693
  %v2717 = vadd.f32 %v2637, %v2683
  %v2718 = vadd.f32 %v2638, %v2694
  %v2719 = vadd.f32 %v2639, %v2695
  %2732 = vrot.lane.b32.xlu0 %v2708, 2
  %v2733 = vpop.permute.xlu0 %2732
  %2734 = vrot.lane.b32.xlu0 %v2709, 2
  %v2735 = vpop.permute.xlu0 %2734
  %2736 = vrot.lane.b32.xlu0 %v2710, 2
  %v2737 = vpop.permute.xlu0 %2736
  %2738 = vrot.lane.b32.xlu0 %v2711, 2
  %v2739 = vpop.permute.xlu0 %2738
  %2740 = vrot.lane.b32.xlu0 %v2712, 2
  %v2741 = vpop.permute.xlu0 %2740
  %2742 = vrot.lane.b32.xlu0 %v2713, 2
  %v2743 = vpop.permute.xlu0 %2742
  %2744 = vrot.lane.b32.xlu0 %v2714, 2
  %v2745 = vpop.permute.xlu0 %2744
  %2746 = vrot.lane.b32.xlu0 %v2715, 2
  %v2747 = vpop.permute.xlu0 %2746
  %2748 = vrot.lane.b32.xlu0 %v2716, 2
  %v2749 = vpop.permute.xlu0 %2748
  %2750 = vrot.lane.b32.xlu0 %v2717, 2
  %v2751 = vpop.permute.xlu0 %2750
  %2752 = vrot.lane.b32.xlu0 %v2718, 2
  %v2753 = vpop.permute.xlu0 %2752
  %2754 = vrot.lane.b32.xlu0 %v2719, 2
  %v2755 = vpop.permute.xlu0 %2754
  %v2756 = vsel %vm730, %v2733, %v2735
  %v2757 = vsel %vm730, %v2735, %v2737
  %v2758 = vsel %vm730, %v2739, %v2741
  %v2759 = vsel %vm730, %v2741, %v2743
  %v2760 = vsel %vm730, %v2745, %v2747
  %v2761 = vsel %vm730, %v2747, %v2749
  %v2762 = vsel %vm730, %v2751, %v2753
  %v2763 = vsel %vm730, %v2753, %v2755
  %2772 = vst [vmem:[#allocation4 + $0x80] sm:$0xff] %v2756
  %2773 = vst [vmem:[#allocation4 + $0x88] sm:$0xff] %v2757
  %2774 = vst [vmem:[#allocation4 + $0x90] sm:$0xff] %v2758
  %2775 = vst [vmem:[#allocation4 + $0x98] sm:$0xff] %v2759
  %2776 = vst [vmem:[#allocation4 + $0xa0] sm:$0xff] %v2760
  %2777 = vst [vmem:[#allocation4 + $0xa8] sm:$0xff] %v2761
  %2778 = vst [vmem:[#allocation4 + $0xb0] sm:$0xff] %v2762
  %2779 = vst [vmem:[#allocation4 + $0xb8] sm:$0xff] %v2763
  %v2780 = vld [vmem:[#allocation2] sm:$0xff]
  %v2781 = vld [vmem:[#allocation2 + $0x8] sm:$0xff]
  %v2782 = vld [vmem:[#allocation2 + $0x10] sm:$0xff]
  %v2783 = vld [vmem:[#allocation2 + $0x20] sm:$0xff]
  %v2784 = vld [vmem:[#allocation2 + $0x28] sm:$0xff]
  %v2785 = vld [vmem:[#allocation2 + $0x30] sm:$0xff]
  %v2786 = vld [vmem:[#allocation2 + $0x40] sm:$0xff]
  %v2787 = vld [vmem:[#allocation2 + $0x48] sm:$0xff]
  %v2788 = vld [vmem:[#allocation2 + $0x50] sm:$0xff]
  %v2789 = vld [vmem:[#allocation2 + $0x60] sm:$0xff]
  %v2790 = vld [vmem:[#allocation2 + $0x68] sm:$0xff]
  %v2791 = vld [vmem:[#allocation2 + $0x70] sm:$0xff]
  %v2792 = vld [vmem:[#allocation2 + $0x8] sm:$0xff]
  %v2793 = vld [vmem:[#allocation2 + $0x10] sm:$0xff]
  %v2794 = vld [vmem:[#allocation2 + $0x18] sm:$0xff]
  %v2795 = vld [vmem:[#allocation2 + $0x28] sm:$0xff]
  %v2796 = vld [vmem:[#allocation2 + $0x30] sm:$0xff]
  %v2797 = vld [vmem:[#allocation2 + $0x38] sm:$0xff]
  %v2798 = vld [vmem:[#allocation2 + $0x48] sm:$0xff]
  %v2799 = vld [vmem:[#allocation2 + $0x50] sm:$0xff]
  %v2800 = vld [vmem:[#allocation2 + $0x58] sm:$0xff]
  %v2801 = vld [vmem:[#allocation2 + $0x68] sm:$0xff]
  %v2802 = vld [vmem:[#allocation2 + $0x70] sm:$0xff]
  %v2803 = vld [vmem:[#allocation2 + $0x78] sm:$0xff]
  %v2804 = vmul.f32 %v2780, %v790
  %v2805 = vmul.f32 %v2781, %v794
  %v2806 = vmul.f32 %v2782, %v792
  %v2807 = vmul.f32 %v2783, %v790
  %v2808 = vmul.f32 %v2784, %v794
  %v2809 = vmul.f32 %v2785, %v792
  %v2810 = vmul.f32 %v2786, %v790
  %v2811 = vmul.f32 %v2787, %v794
  %v2812 = vmul.f32 %v2788, %v792
  %v2813 = vmul.f32 %v2789, %v790
  %v2814 = vmul.f32 %v2790, %v794
  %v2815 = vmul.f32 %v2791, %v792
  %v2816 = vmul.f32 %v2792, %v821
  %v2817 = vmul.f32 %v2793, %v825
  %v2818 = vmul.f32 %v2794, %v823
  %v2819 = vmul.f32 %v2795, %v821
  %v2820 = vmul.f32 %v2796, %v825
  %v2821 = vmul.f32 %v2797, %v823
  %v2822 = vmul.f32 %v2798, %v821
  %v2823 = vmul.f32 %v2799, %v825
  %v2824 = vmul.f32 %v2800, %v823
  %v2825 = vmul.f32 %v2801, %v821
  %v2826 = vmul.f32 %v2802, %v825
  %v2827 = vmul.f32 %v2803, %v823
  %2840 = vrot.lane.b32.xlu0 %v2816, 112
  %v2841 = vpop.permute.xlu0 %2840
  %2842 = vrot.lane.b32.xlu0 %v2817, 112
  %v2843 = vpop.permute.xlu0 %2842
  %2844 = vrot.lane.b32.xlu0 %v2818, 112
  %v2845 = vpop.permute.xlu0 %2844
  %2846 = vrot.lane.b32.xlu0 %v2819, 112
  %v2847 = vpop.permute.xlu0 %2846
  %2848 = vrot.lane.b32.xlu0 %v2820, 112
  %v2849 = vpop.permute.xlu0 %2848
  %2850 = vrot.lane.b32.xlu0 %v2821, 112
  %v2851 = vpop.permute.xlu0 %2850
  %2852 = vrot.lane.b32.xlu0 %v2822, 112
  %v2853 = vpop.permute.xlu0 %2852
  %2854 = vrot.lane.b32.xlu0 %v2823, 112
  %v2855 = vpop.permute.xlu0 %2854
  %2856 = vrot.lane.b32.xlu0 %v2824, 112
  %v2857 = vpop.permute.xlu0 %2856
  %2858 = vrot.lane.b32.xlu0 %v2825, 112
  %v2859 = vpop.permute.xlu0 %2858
  %2860 = vrot.lane.b32.xlu0 %v2826, 112
  %v2861 = vpop.permute.xlu0 %2860
  %2862 = vrot.lane.b32.xlu0 %v2827, 112
  %v2863 = vpop.permute.xlu0 %2862
  %v2864 = vsel %vm231, %v2841, %v2843
  %v2865 = vsel %vm231, %v2843, %v2845
  %v2866 = vsel %vm231, %v2847, %v2849
  %v2867 = vsel %vm231, %v2849, %v2851
  %v2868 = vsel %vm231, %v2853, %v2855
  %v2869 = vsel %vm231, %v2855, %v2857
  %v2870 = vsel %vm231, %v2859, %v2861
  %v2871 = vsel %vm231, %v2861, %v2863
  %v2884 = vadd.f32 %v2804, %v2841
  %v2885 = vadd.f32 %v2805, %v2864
  %v2886 = vadd.f32 %v2806, %v2865
  %v2887 = vadd.f32 %v2807, %v2847
  %v2888 = vadd.f32 %v2808, %v2866
  %v2889 = vadd.f32 %v2809, %v2867
  %v2890 = vadd.f32 %v2810, %v2853
  %v2891 = vadd.f32 %v2811, %v2868
  %v2892 = vadd.f32 %v2812, %v2869
  %v2893 = vadd.f32 %v2813, %v2859
  %v2894 = vadd.f32 %v2814, %v2870
  %v2895 = vadd.f32 %v2815, %v2871
  %2908 = vrot.lane.b32.xlu0 %v2884, 1
  %v2909 = vpop.permute.xlu0 %2908
  %2910 = vrot.lane.b32.xlu0 %v2885, 1
  %v2911 = vpop.permute.xlu0 %2910
  %2912 = vrot.lane.b32.xlu0 %v2886, 1
  %v2913 = vpop.permute.xlu0 %2912
  %2914 = vrot.lane.b32.xlu0 %v2887, 1
  %v2915 = vpop.permute.xlu0 %2914
  %2916 = vrot.lane.b32.xlu0 %v2888, 1
  %v2917 = vpop.permute.xlu0 %2916
  %2918 = vrot.lane.b32.xlu0 %v2889, 1
  %v2919 = vpop.permute.xlu0 %2918
  %2920 = vrot.lane.b32.xlu0 %v2890, 1
  %v2921 = vpop.permute.xlu0 %2920
  %2922 = vrot.lane.b32.xlu0 %v2891, 1
  %v2923 = vpop.permute.xlu0 %2922
  %2924 = vrot.lane.b32.xlu0 %v2892, 1
  %v2925 = vpop.permute.xlu0 %2924
  %2926 = vrot.lane.b32.xlu0 %v2893, 1
  %v2927 = vpop.permute.xlu0 %2926
  %2928 = vrot.lane.b32.xlu0 %v2894, 1
  %v2929 = vpop.permute.xlu0 %2928
  %2930 = vrot.lane.b32.xlu0 %v2895, 1
  %v2931 = vpop.permute.xlu0 %2930
  %v2932 = vsel %vm945, %v2909, %v2911
  %v2933 = vsel %vm945, %v2911, %v2913
  %v2934 = vsel %vm945, %v2915, %v2917
  %v2935 = vsel %vm945, %v2917, %v2919
  %v2936 = vsel %vm945, %v2921, %v2923
  %v2937 = vsel %vm945, %v2923, %v2925
  %v2938 = vsel %vm945, %v2927, %v2929
  %v2939 = vsel %vm945, %v2929, %v2931
  %2948 = vst [vmem:[#allocation4 + $0xc0] sm:$0xff] %v2932
  %2949 = vst [vmem:[#allocation4 + $0xc8] sm:$0xff] %v2933
  %2950 = vst [vmem:[#allocation4 + $0xd0] sm:$0xff] %v2934
  %2951 = vst [vmem:[#allocation4 + $0xd8] sm:$0xff] %v2935
  %2952 = vst [vmem:[#allocation4 + $0xe0] sm:$0xff] %v2936
  %2953 = vst [vmem:[#allocation4 + $0xe8] sm:$0xff] %v2937
  %2954 = vst [vmem:[#allocation4 + $0xf0] sm:$0xff] %v2938
  %2955 = vst [vmem:[#allocation4 + $0xf8] sm:$0xff] %v2939
  %v2956 = vld [vmem:[#allocation2 + $0x8] sm:$0xff]
  %v2957 = vld [vmem:[#allocation2 + $0x10] sm:$0xff]
  %v2958 = vld [vmem:[#allocation2 + $0x28] sm:$0xff]
  %v2959 = vld [vmem:[#allocation2 + $0x30] sm:$0xff]
  %v2960 = vld [vmem:[#allocation2 + $0x48] sm:$0xff]
  %v2961 = vld [vmem:[#allocation2 + $0x50] sm:$0xff]
  %v2962 = vld [vmem:[#allocation2 + $0x68] sm:$0xff]
  %v2963 = vld [vmem:[#allocation2 + $0x70] sm:$0xff]
  %v2964 = vld [vmem:[#allocation2 + $0x8] sm:$0xff]
  %v2965 = vld [vmem:[#allocation2 + $0x10] sm:$0xff]
  %v2966 = vld [vmem:[#allocation2 + $0x18] sm:$0xff]
  %v2967 = vld [vmem:[#allocation2 + $0x28] sm:$0xff]
  %v2968 = vld [vmem:[#allocation2 + $0x30] sm:$0xff]
  %v2969 = vld [vmem:[#allocation2 + $0x38] sm:$0xff]
  %v2970 = vld [vmem:[#allocation2 + $0x48] sm:$0xff]
  %v2971 = vld [vmem:[#allocation2 + $0x50] sm:$0xff]
  %v2972 = vld [vmem:[#allocation2 + $0x58] sm:$0xff]
  %v2973 = vld [vmem:[#allocation2 + $0x68] sm:$0xff]
  %v2974 = vld [vmem:[#allocation2 + $0x70] sm:$0xff]
  %v2975 = vld [vmem:[#allocation2 + $0x78] sm:$0xff]
  %v2976 = vmul.f32 %v2956, %v993
  %v2977 = vmul.f32 %v2957, %v997
  %v2978 = vmul.f32 %v2958, %v993
  %v2979 = vmul.f32 %v2959, %v997
  %v2980 = vmul.f32 %v2960, %v993
  %v2981 = vmul.f32 %v2961, %v997
  %v2982 = vmul.f32 %v2962, %v993
  %v2983 = vmul.f32 %v2963, %v997
  %v2984 = vmul.f32 %v2964, %v1017
  %v2985 = vmul.f32 %v2965, %v1021
  %v2986 = vmul.f32 %v2966, %v1019
  %v2987 = vmul.f32 %v2967, %v1017
  %v2988 = vmul.f32 %v2968, %v1021
  %v2989 = vmul.f32 %v2969, %v1019
  %v2990 = vmul.f32 %v2970, %v1017
  %v2991 = vmul.f32 %v2971, %v1021
  %v2992 = vmul.f32 %v2972, %v1019
  %v2993 = vmul.f32 %v2973, %v1017
  %v2994 = vmul.f32 %v2974, %v1021
  %v2995 = vmul.f32 %v2975, %v1019
  %3008 = vrot.lane.b32.xlu0 %v2984, 112
  %v3009 = vpop.permute.xlu0 %3008
  %3010 = vrot.lane.b32.xlu0 %v2985, 112
  %v3011 = vpop.permute.xlu0 %3010
  %3012 = vrot.lane.b32.xlu0 %v2986, 112
  %v3013 = vpop.permute.xlu0 %3012
  %3014 = vrot.lane.b32.xlu0 %v2987, 112
  %v3015 = vpop.permute.xlu0 %3014
  %3016 = vrot.lane.b32.xlu0 %v2988, 112
  %v3017 = vpop.permute.xlu0 %3016
  %3018 = vrot.lane.b32.xlu0 %v2989, 112
  %v3019 = vpop.permute.xlu0 %3018
  %3020 = vrot.lane.b32.xlu0 %v2990, 112
  %v3021 = vpop.permute.xlu0 %3020
  %3022 = vrot.lane.b32.xlu0 %v2991, 112
  %v3023 = vpop.permute.xlu0 %3022
  %3024 = vrot.lane.b32.xlu0 %v2992, 112
  %v3025 = vpop.permute.xlu0 %3024
  %3026 = vrot.lane.b32.xlu0 %v2993, 112
  %v3027 = vpop.permute.xlu0 %3026
  %3028 = vrot.lane.b32.xlu0 %v2994, 112
  %v3029 = vpop.permute.xlu0 %3028
  %3030 = vrot.lane.b32.xlu0 %v2995, 112
  %v3031 = vpop.permute.xlu0 %3030
  %v3032 = vsel %vm231, %v3009, %v3011
  %v3033 = vsel %vm231, %v3011, %v3013
  %v3034 = vsel %vm231, %v3015, %v3017
  %v3035 = vsel %vm231, %v3017, %v3019
  %v3036 = vsel %vm231, %v3021, %v3023
  %v3037 = vsel %vm231, %v3023, %v3025
  %v3038 = vsel %vm231, %v3027, %v3029
  %v3039 = vsel %vm231, %v3029, %v3031
  %v3048 = vadd.f32 %v2976, %v3032
  %v3049 = vadd.f32 %v2977, %v3033
  %v3050 = vadd.f32 %v2978, %v3034
  %v3051 = vadd.f32 %v2979, %v3035
  %v3052 = vadd.f32 %v2980, %v3036
  %v3053 = vadd.f32 %v2981, %v3037
  %v3054 = vadd.f32 %v2982, %v3038
  %v3055 = vadd.f32 %v2983, %v3039
  %3056 = vst [vmem:[#allocation4 + $0x100] sm:$0xff] %v3048
  %3057 = vst [vmem:[#allocation4 + $0x108] sm:$0xff] %v3049
  %3058 = vst [vmem:[#allocation4 + $0x110] sm:$0xff] %v3050
  %3059 = vst [vmem:[#allocation4 + $0x118] sm:$0xff] %v3051
  %3060 = vst [vmem:[#allocation4 + $0x120] sm:$0xff] %v3052
  %3061 = vst [vmem:[#allocation4 + $0x128] sm:$0xff] %v3053
  %3062 = vst [vmem:[#allocation4 + $0x130] sm:$0xff] %v3054
  %3063 = vst [vmem:[#allocation4 + $0x138] sm:$0xff] %v3055
  %v3064 = vld [vmem:[#allocation2 + $0x8] sm:$0xff]
  %v3065 = vld [vmem:[#allocation2 + $0x10] sm:$0xff]
  %v3066 = vld [vmem:[#allocation2 + $0x18] sm:$0xff]
  %v3067 = vld [vmem:[#allocation2 + $0x28] sm:$0xff]
  %v3068 = vld [vmem:[#allocation2 + $0x30] sm:$0xff]
  %v3069 = vld [vmem:[#allocation2 + $0x38] sm:$0xff]
  %v3070 = vld [vmem:[#allocation2 + $0x48] sm:$0xff]
  %v3071 = vld [vmem:[#allocation2 + $0x50] sm:$0xff]
  %v3072 = vld [vmem:[#allocation2 + $0x58] sm:$0xff]
  %v3073 = vld [vmem:[#allocation2 + $0x68] sm:$0xff]
  %v3074 = vld [vmem:[#allocation2 + $0x70] sm:$0xff]
  %v3075 = vld [vmem:[#allocation2 + $0x78] sm:$0xff]
  %v3076 = vmul.f32 %v3064, %v1128
  %v3077 = vmul.f32 %v3065, %v1131
  %v3078 = vmul.f32 %v3066, %v1130
  %v3079 = vmul.f32 %v3067, %v1128
  %v3080 = vmul.f32 %v3068, %v1131
  %v3081 = vmul.f32 %v3069, %v1130
  %v3082 = vmul.f32 %v3070, %v1128
  %v3083 = vmul.f32 %v3071, %v1131
  %v3084 = vmul.f32 %v3072, %v1130
  %v3085 = vmul.f32 %v3073, %v1128
  %v3086 = vmul.f32 %v3074, %v1131
  %v3087 = vmul.f32 %v3075, %v1130
  %v3088 = vmul.f32 %v3064, %v1158
  %v3089 = vmul.f32 %v3065, %v1162
  %v3090 = vmul.f32 %v3066, %v1160
  %v3091 = vmul.f32 %v3067, %v1158
  %v3092 = vmul.f32 %v3068, %v1162
  %v3093 = vmul.f32 %v3069, %v1160
  %v3094 = vmul.f32 %v3070, %v1158
  %v3095 = vmul.f32 %v3071, %v1162
  %v3096 = vmul.f32 %v3072, %v1160
  %v3097 = vmul.f32 %v3073, %v1158
  %v3098 = vmul.f32 %v3074, %v1162
  %v3099 = vmul.f32 %v3075, %v1160
  %3112 = vrot.lane.b32.xlu0 %v3088, 112
  %v3113 = vpop.permute.xlu0 %3112
  %3114 = vrot.lane.b32.xlu0 %v3089, 112
  %v3115 = vpop.permute.xlu0 %3114
  %3116 = vrot.lane.b32.xlu0 %v3090, 112
  %v3117 = vpop.permute.xlu0 %3116
  %3118 = vrot.lane.b32.xlu0 %v3091, 112
  %v3119 = vpop.permute.xlu0 %3118
  %3120 = vrot.lane.b32.xlu0 %v3092, 112
  %v3121 = vpop.permute.xlu0 %3120
  %3122 = vrot.lane.b32.xlu0 %v3093, 112
  %v3123 = vpop.permute.xlu0 %3122
  %3124 = vrot.lane.b32.xlu0 %v3094, 112
  %v3125 = vpop.permute.xlu0 %3124
  %3126 = vrot.lane.b32.xlu0 %v3095, 112
  %v3127 = vpop.permute.xlu0 %3126
  %3128 = vrot.lane.b32.xlu0 %v3096, 112
  %v3129 = vpop.permute.xlu0 %3128
  %3130 = vrot.lane.b32.xlu0 %v3097, 112
  %v3131 = vpop.permute.xlu0 %3130
  %3132 = vrot.lane.b32.xlu0 %v3098, 112
  %v3133 = vpop.permute.xlu0 %3132
  %3134 = vrot.lane.b32.xlu0 %v3099, 112
  %v3135 = vpop.permute.xlu0 %3134
  %v3136 = vsel %vm231, %v3113, %v3115
  %v3137 = vsel %vm231, %v3115, %v3117
  %v3138 = vsel %vm231, %v3119, %v3121
  %v3139 = vsel %vm231, %v3121, %v3123
  %v3140 = vsel %vm231, %v3125, %v3127
  %v3141 = vsel %vm231, %v3127, %v3129
  %v3142 = vsel %vm231, %v3131, %v3133
  %v3143 = vsel %vm231, %v3133, %v3135
  %v3156 = vadd.f32 %v3076, %v3136
  %v3157 = vadd.f32 %v3077, %v3137
  %v3158 = vadd.f32 %v3078, %v3117
  %v3159 = vadd.f32 %v3079, %v3138
  %v3160 = vadd.f32 %v3080, %v3139
  %v3161 = vadd.f32 %v3081, %v3123
  %v3162 = vadd.f32 %v3082, %v3140
  %v3163 = vadd.f32 %v3083, %v3141
  %v3164 = vadd.f32 %v3084, %v3129
  %v3165 = vadd.f32 %v3085, %v3142
  %v3166 = vadd.f32 %v3086, %v3143
  %v3167 = vadd.f32 %v3087, %v3135
  %3180 = vrot.lane.b32.xlu0 %v3156, 127
  %v3181 = vpop.permute.xlu0 %3180
  %3182 = vrot.lane.b32.xlu0 %v3157, 127
  %v3183 = vpop.permute.xlu0 %3182
  %3184 = vrot.lane.b32.xlu0 %v3158, 127
  %v3185 = vpop.permute.xlu0 %3184
  %3186 = vrot.lane.b32.xlu0 %v3159, 127
  %v3187 = vpop.permute.xlu0 %3186
  %3188 = vrot.lane.b32.xlu0 %v3160, 127
  %v3189 = vpop.permute.xlu0 %3188
  %3190 = vrot.lane.b32.xlu0 %v3161, 127
  %v3191 = vpop.permute.xlu0 %3190
  %3192 = vrot.lane.b32.xlu0 %v3162, 127
  %v3193 = vpop.permute.xlu0 %3192
  %3194 = vrot.lane.b32.xlu0 %v3163, 127
  %v3195 = vpop.permute.xlu0 %3194
  %3196 = vrot.lane.b32.xlu0 %v3164, 127
  %v3197 = vpop.permute.xlu0 %3196
  %3198 = vrot.lane.b32.xlu0 %v3165, 127
  %v3199 = vpop.permute.xlu0 %3198
  %3200 = vrot.lane.b32.xlu0 %v3166, 127
  %v3201 = vpop.permute.xlu0 %3200
  %3202 = vrot.lane.b32.xlu0 %v3167, 127
  %v3203 = vpop.permute.xlu0 %3202
  %v3204 = vsel %vm793, %v3181, %v3183
  %v3205 = vsel %vm793, %v3183, %v3185
  %v3206 = vsel %vm793, %v3187, %v3189
  %v3207 = vsel %vm793, %v3189, %v3191
  %v3208 = vsel %vm793, %v3193, %v3195
  %v3209 = vsel %vm793, %v3195, %v3197
  %v3210 = vsel %vm793, %v3199, %v3201
  %v3211 = vsel %vm793, %v3201, %v3203
  %3220 = vst [vmem:[#allocation4 + $0x140] sm:$0xff] %v3204
  %3221 = vst [vmem:[#allocation4 + $0x148] sm:$0xff] %v3205
  %3222 = vst [vmem:[#allocation4 + $0x150] sm:$0xff] %v3206
  %3223 = vst [vmem:[#allocation4 + $0x158] sm:$0xff] %v3207
  %3224 = vst [vmem:[#allocation4 + $0x160] sm:$0xff] %v3208
  %3225 = vst [vmem:[#allocation4 + $0x168] sm:$0xff] %v3209
  %3226 = vst [vmem:[#allocation4 + $0x170] sm:$0xff] %v3210
  %3227 = vst [vmem:[#allocation4 + $0x178] sm:$0xff] %v3211
  %v3228 = vld [vmem:[#allocation2 + $0x8] sm:$0xff]
  %v3229 = vld [vmem:[#allocation2 + $0x10] sm:$0xff]
  %v3230 = vld [vmem:[#allocation2 + $0x18] sm:$0xff]
  %v3231 = vld [vmem:[#allocation2 + $0x28] sm:$0xff]
  %v3232 = vld [vmem:[#allocation2 + $0x30] sm:$0xff]
  %v3233 = vld [vmem:[#allocation2 + $0x38] sm:$0xff]
  %v3234 = vld [vmem:[#allocation2 + $0x48] sm:$0xff]
  %v3235 = vld [vmem:[#allocation2 + $0x50] sm:$0xff]
  %v3236 = vld [vmem:[#allocation2 + $0x58] sm:$0xff]
  %v3237 = vld [vmem:[#allocation2 + $0x68] sm:$0xff]
  %v3238 = vld [vmem:[#allocation2 + $0x70] sm:$0xff]
  %v3239 = vld [vmem:[#allocation2 + $0x78] sm:$0xff]
  %v3240 = vmul.f32 %v3228, %v1329
  %v3241 = vmul.f32 %v3229, %v1332
  %v3242 = vmul.f32 %v3230, %v1331
  %v3243 = vmul.f32 %v3231, %v1329
  %v3244 = vmul.f32 %v3232, %v1332
  %v3245 = vmul.f32 %v3233, %v1331
  %v3246 = vmul.f32 %v3234, %v1329
  %v3247 = vmul.f32 %v3235, %v1332
  %v3248 = vmul.f32 %v3236, %v1331
  %v3249 = vmul.f32 %v3237, %v1329
  %v3250 = vmul.f32 %v3238, %v1332
  %v3251 = vmul.f32 %v3239, %v1331
  %v3252 = vmul.f32 %v3228, %v1359
  %v3253 = vmul.f32 %v3229, %v1363
  %v3254 = vmul.f32 %v3230, %v1361
  %v3255 = vmul.f32 %v3231, %v1359
  %v3256 = vmul.f32 %v3232, %v1363
  %v3257 = vmul.f32 %v3233, %v1361
  %v3258 = vmul.f32 %v3234, %v1359
  %v3259 = vmul.f32 %v3235, %v1363
  %v3260 = vmul.f32 %v3236, %v1361
  %v3261 = vmul.f32 %v3237, %v1359
  %v3262 = vmul.f32 %v3238, %v1363
  %v3263 = vmul.f32 %v3239, %v1361
  %3276 = vrot.lane.b32.xlu0 %v3252, 112
  %v3277 = vpop.permute.xlu0 %3276
  %3278 = vrot.lane.b32.xlu0 %v3253, 112
  %v3279 = vpop.permute.xlu0 %3278
  %3280 = vrot.lane.b32.xlu0 %v3254, 112
  %v3281 = vpop.permute.xlu0 %3280
  %3282 = vrot.lane.b32.xlu0 %v3255, 112
  %v3283 = vpop.permute.xlu0 %3282
  %3284 = vrot.lane.b32.xlu0 %v3256, 112
  %v3285 = vpop.permute.xlu0 %3284
  %3286 = vrot.lane.b32.xlu0 %v3257, 112
  %v3287 = vpop.permute.xlu0 %3286
  %3288 = vrot.lane.b32.xlu0 %v3258, 112
  %v3289 = vpop.permute.xlu0 %3288
  %3290 = vrot.lane.b32.xlu0 %v3259, 112
  %v3291 = vpop.permute.xlu0 %3290
  %3292 = vrot.lane.b32.xlu0 %v3260, 112
  %v3293 = vpop.permute.xlu0 %3292
  %3294 = vrot.lane.b32.xlu0 %v3261, 112
  %v3295 = vpop.permute.xlu0 %3294
  %3296 = vrot.lane.b32.xlu0 %v3262, 112
  %v3297 = vpop.permute.xlu0 %3296
  %3298 = vrot.lane.b32.xlu0 %v3263, 112
  %v3299 = vpop.permute.xlu0 %3298
  %v3300 = vsel %vm231, %v3277, %v3279
  %v3301 = vsel %vm231, %v3279, %v3281
  %v3302 = vsel %vm231, %v3283, %v3285
  %v3303 = vsel %vm231, %v3285, %v3287
  %v3304 = vsel %vm231, %v3289, %v3291
  %v3305 = vsel %vm231, %v3291, %v3293
  %v3306 = vsel %vm231, %v3295, %v3297
  %v3307 = vsel %vm231, %v3297, %v3299
  %v3320 = vadd.f32 %v3240, %v3300
  %v3321 = vadd.f32 %v3241, %v3301
  %v3322 = vadd.f32 %v3242, %v3281
  %v3323 = vadd.f32 %v3243, %v3302
  %v3324 = vadd.f32 %v3244, %v3303
  %v3325 = vadd.f32 %v3245, %v3287
  %v3326 = vadd.f32 %v3246, %v3304
  %v3327 = vadd.f32 %v3247, %v3305
  %v3328 = vadd.f32 %v3248, %v3293
  %v3329 = vadd.f32 %v3249, %v3306
  %v3330 = vadd.f32 %v3250, %v3307
  %v3331 = vadd.f32 %v3251, %v3299
  %3344 = vrot.lane.b32.xlu0 %v3320, 126
  %v3345 = vpop.permute.xlu0 %3344
  %3346 = vrot.lane.b32.xlu0 %v3321, 126
  %v3347 = vpop.permute.xlu0 %3346
  %3348 = vrot.lane.b32.xlu0 %v3322, 126
  %v3349 = vpop.permute.xlu0 %3348
  %3350 = vrot.lane.b32.xlu0 %v3323, 126
  %v3351 = vpop.permute.xlu0 %3350
  %3352 = vrot.lane.b32.xlu0 %v3324, 126
  %v3353 = vpop.permute.xlu0 %3352
  %3354 = vrot.lane.b32.xlu0 %v3325, 126
  %v3355 = vpop.permute.xlu0 %3354
  %3356 = vrot.lane.b32.xlu0 %v3326, 126
  %v3357 = vpop.permute.xlu0 %3356
  %3358 = vrot.lane.b32.xlu0 %v3327, 126
  %v3359 = vpop.permute.xlu0 %3358
  %3360 = vrot.lane.b32.xlu0 %v3328, 126
  %v3361 = vpop.permute.xlu0 %3360
  %3362 = vrot.lane.b32.xlu0 %v3329, 126
  %v3363 = vpop.permute.xlu0 %3362
  %3364 = vrot.lane.b32.xlu0 %v3330, 126
  %v3365 = vpop.permute.xlu0 %3364
  %3366 = vrot.lane.b32.xlu0 %v3331, 126
  %v3367 = vpop.permute.xlu0 %3366
  %v3368 = vsel %vm578, %v3345, %v3347
  %v3369 = vsel %vm578, %v3347, %v3349
  %v3370 = vsel %vm578, %v3351, %v3353
  %v3371 = vsel %vm578, %v3353, %v3355
  %v3372 = vsel %vm578, %v3357, %v3359
  %v3373 = vsel %vm578, %v3359, %v3361
  %v3374 = vsel %vm578, %v3363, %v3365
  %v3375 = vsel %vm578, %v3365, %v3367
  %3384 = vst [vmem:[#allocation4 + $0x180] sm:$0xff] %v3368
  %3385 = vst [vmem:[#allocation4 + $0x188] sm:$0xff] %v3369
  %3386 = vst [vmem:[#allocation4 + $0x190] sm:$0xff] %v3370
  %3387 = vst [vmem:[#allocation4 + $0x198] sm:$0xff] %v3371
  %3388 = vst [vmem:[#allocation4 + $0x1a0] sm:$0xff] %v3372
  %3389 = vst [vmem:[#allocation4 + $0x1a8] sm:$0xff] %v3373
  %3390 = vst [vmem:[#allocation4 + $0x1b0] sm:$0xff] %v3374
  %3391 = vst [vmem:[#allocation4 + $0x1b8] sm:$0xff] %v3375
  %v3392 = vld [vmem:[#allocation4] sm:$0xff]
  %v3393 = vld [vmem:[#allocation4 + $0x8] sm:$0xff]
  %v3394 = vld [vmem:[#allocation4 + $0x10] sm:$0xff]
  %v3395 = vld [vmem:[#allocation4 + $0x18] sm:$0xff]
  %v3396 = vld [vmem:[#allocation4 + $0x20] sm:$0xff]
  %v3397 = vld [vmem:[#allocation4 + $0x28] sm:$0xff]
  %v3398 = vld [vmem:[#allocation4 + $0x30] sm:$0xff]
  %v3399 = vld [vmem:[#allocation4 + $0x38] sm:$0xff]
  %v3400 = vld [vmem:[#allocation4 + $0x40] sm:$0xff]
  %v3401 = vld [vmem:[#allocation4 + $0x48] sm:$0xff]
  %v3402 = vld [vmem:[#allocation4 + $0x50] sm:$0xff]
  %v3403 = vld [vmem:[#allocation4 + $0x58] sm:$0xff]
  %v3404 = vld [vmem:[#allocation4 + $0x60] sm:$0xff]
  %v3405 = vld [vmem:[#allocation4 + $0x68] sm:$0xff]
  %v3406 = vld [vmem:[#allocation4 + $0x70] sm:$0xff]
  %v3407 = vld [vmem:[#allocation4 + $0x78] sm:$0xff]
  %v3408 = vld [vmem:[#allocation4 + $0x80] sm:$0xff]
  %v3409 = vld [vmem:[#allocation4 + $0x88] sm:$0xff]
  %v3410 = vld [vmem:[#allocation4 + $0x90] sm:$0xff]
  %v3411 = vld [vmem:[#allocation4 + $0x98] sm:$0xff]
  %v3412 = vld [vmem:[#allocation4 + $0xa0] sm:$0xff]
  %v3413 = vld [vmem:[#allocation4 + $0xa8] sm:$0xff]
  %v3414 = vld [vmem:[#allocation4 + $0xb0] sm:$0xff]
  %v3415 = vld [vmem:[#allocation4 + $0xb8] sm:$0xff]
  %v3416 = vld [vmem:[#allocation4 + $0xc0] sm:$0xff]
  %v3417 = vld [vmem:[#allocation4 + $0xc8] sm:$0xff]
  %v3418 = vld [vmem:[#allocation4 + $0xd0] sm:$0xff]
  %v3419 = vld [vmem:[#allocation4 + $0xd8] sm:$0xff]
  %v3420 = vld [vmem:[#allocation4 + $0xe0] sm:$0xff]
  %v3421 = vld [vmem:[#allocation4 + $0xe8] sm:$0xff]
  %v3422 = vld [vmem:[#allocation4 + $0xf0] sm:$0xff]
  %v3423 = vld [vmem:[#allocation4 + $0xf8] sm:$0xff]
  %v3424 = vld [vmem:[#allocation4 + $0x100] sm:$0xff]
  %v3425 = vld [vmem:[#allocation4 + $0x108] sm:$0xff]
  %v3426 = vld [vmem:[#allocation4 + $0x110] sm:$0xff]
  %v3427 = vld [vmem:[#allocation4 + $0x118] sm:$0xff]
  %v3428 = vld [vmem:[#allocation4 + $0x120] sm:$0xff]
  %v3429 = vld [vmem:[#allocation4 + $0x128] sm:$0xff]
  %v3430 = vld [vmem:[#allocation4 + $0x130] sm:$0xff]
  %v3431 = vld [vmem:[#allocation4 + $0x138] sm:$0xff]
  %v3432 = vld [vmem:[#allocation4 + $0x140] sm:$0xff]
  %v3433 = vld [vmem:[#allocation4 + $0x148] sm:$0xff]
  %v3434 = vld [vmem:[#allocation4 + $0x150] sm:$0xff]
  %v3435 = vld [vmem:[#allocation4 + $0x158] sm:$0xff]
  %v3436 = vld [vmem:[#allocation4 + $0x160] sm:$0xff]
  %v3437 = vld [vmem:[#allocation4 + $0x168] sm:$0xff]
  %v3438 = vld [vmem:[#allocation4 + $0x170] sm:$0xff]
  %v3439 = vld [vmem:[#allocation4 + $0x178] sm:$0xff]
  %v3440 = vld [vmem:[#allocation4 + $0x180] sm:$0xff]
  %v3441 = vld [vmem:[#allocation4 + $0x188] sm:$0xff]
  %v3442 = vld [vmem:[#allocation4 + $0x190] sm:$0xff]
  %v3443 = vld [vmem:[#allocation4 + $0x198] sm:$0xff]
  %v3444 = vld [vmem:[#allocation4 + $0x1a0] sm:$0xff]
  %v3445 = vld [vmem:[#allocation4 + $0x1a8] sm:$0xff]
  %v3446 = vld [vmem:[#allocation4 + $0x1b0] sm:$0xff]
  %v3447 = vld [vmem:[#allocation4 + $0x1b8] sm:$0xff]
  %3448 = vmatprep.subr.mxu0 %v3393
  %3449 = vmatpush1.msra.mxu0 %v3392
  %3450 = vmatprep.subr.mxu0 %v3395
  %3451 = vmatpush1.msra.mxu0 %v3394
  %3452 = vmatprep.subr.mxu0 %v3397
  %3453 = vmatpush1.msra.mxu0 %v3396
  %3454 = vmatprep.subr.mxu0 %v3399
  %3455 = vmatpush1.msra.mxu0 %v3398
  %3456 = vmatprep.subr.mxu0 %v3401
  %3457 = vmatpush1.msra.mxu0 %v3400
  %3458 = vmatprep.subr.mxu0 %v3403
  %3459 = vmatpush1.msra.mxu0 %v3402
  %3460 = vmatprep.subr.mxu0 %v3405
  %3461 = vmatpush1.msra.mxu0 %v3404
  %3462 = vmatprep.subr.mxu0 %v3407
  %3463 = vmatpush1.msra.mxu0 %v3406
  %3464 = vmatprep.subr.mxu0 %v3409
  %3465 = vmatpush1.msra.mxu0 %v3408
  %3466 = vmatprep.subr.mxu0 %v3411
  %3467 = vmatpush1.msra.mxu0 %v3410
  %3468 = vmatprep.subr.mxu0 %v3413
  %3469 = vmatpush1.msra.mxu0 %v3412
  %3470 = vmatprep.subr.mxu0 %v3415
  %3471 = vmatpush1.msra.mxu0 %v3414
  %3472 = vmatprep.subr.mxu0 %v3417
  %3473 = vmatpush1.msra.mxu0 %v3416
  %3474 = vmatprep.subr.mxu0 %v3419
  %3475 = vmatpush1.msra.mxu0 %v3418
  %3476 = vmatprep.subr.mxu0 %v3421
  %3477 = vmatpush1.msra.mxu0 %v3420
  %3478 = vmatprep.subr.mxu0 %v3423
  %3479 = vmatpush1.msra.mxu0 %v3422
  %3480 = vmatprep.subr.mxu0 %v3425
  %3481 = vmatpush1.msra.mxu0 %v3424
  %3482 = vmatprep.subr.mxu0 %v3427
  %3483 = vmatpush1.msra.mxu0 %v3426
  %3484 = vmatprep.subr.mxu0 %v3429
  %3485 = vmatpush1.msra.mxu0 %v3428
  %3486 = vmatprep.subr.mxu0 %v3431
  %3487 = vmatpush1.msra.mxu0 %v3430
  %3488 = vmatprep.subr.mxu0 %v3433
  %3489 = vmatpush1.msra.mxu0 %v3432
  %3490 = vmatprep.subr.mxu0 %v3435
  %3491 = vmatpush1.msra.mxu0 %v3434
  %3492 = vmatprep.subr.mxu0 %v3437
  %3493 = vmatpush1.msra.mxu0 %v3436
  %3494 = vmatprep.subr.mxu0 %v3439
  %3495 = vmatpush1.msra.mxu0 %v3438
  %3496 = vmatprep.subr.mxu0 %v3441
  %3497 = vmatpush1.msra.mxu0 %v3440
  %3498 = vmatprep.subr.mxu0 %v3443
  %3499 = vmatpush1.msra.mxu0 %v3442
  %3500 = vmatprep.subr.mxu0 %v3445
  %3501 = vmatpush1.msra.mxu0 %v3444
  %3502 = vmatprep.subr.mxu0 %v3447
  %3503 = vmatpush1.msra.mxu0 %v3446
  %3504 = vmatprep.subr.mxu0 0.0
  %3505 = vmatpush1.msra.mxu0 0.0
  %3506 = vmatprep.subr.mxu0 0.0
  %3507 = vmatpush1.msra.mxu0 0.0
  %3508 = vmatprep.subr.mxu0 0.0
  %3509 = vmatpush1.msra.mxu0 0.0
  %3510 = vmatprep.subr.mxu0 0.0
  %3511 = vmatpush1.msra.mxu0 0.0
  %3512 = vmatprep.mubr.f32.mxu0 %v1565
  %3513 = vmatmul.mubr.f32.gmra.mrb[0].mxu0 %v38
  %v3514 = vpop.f32.mrb[0].mxu0
  %v3515 = vadd.f32 0.0, %v3514
  %v3516 = vpop.f32.mrb[0].mxu0
  %v3517 = vadd.f32 0.0, %v3516
  %3518 = vmatprep.mubr.f32.mxu0 %v1568
  %3519 = vmatmul.mubr.f32.gmra.mrb[0].mxu0 %v40
  %v3520 = vpop.f32.mrb[0].mxu0
  %v3521 = vadd.f32 0.0, %v3520
  %v3522 = vpop.f32.mrb[0].mxu0
  %v3523 = vadd.f32 0.0, %v3522
  %3524 = vmatprep.mubr.f32.mxu0 %v1571
  %3525 = vmatmul.mubr.f32.gmra.mrb[0].mxu0 %v42
  %v3526 = vpop.f32.mrb[0].mxu0
  %v3527 = vadd.f32 0.0, %v3526
  %v3528 = vpop.f32.mrb[0].mxu0
  %v3529 = vadd.f32 0.0, %v3528
  %3530 = vdwg.mxu0
  %3531 = vst [vmem:[#allocation3 + $0x8] sm:$0xff] %v3515
  %3532 = vst [vmem:[#allocation3 + $0x10] sm:$0xff] %v3517
  %3533 = vst [vmem:[#allocation3 + $0x28] sm:$0xff] %v3521
  %3534 = vst [vmem:[#allocation3 + $0x30] sm:$0xff] %v3523
  %3535 = vst [vmem:[#allocation3 + $0x48] sm:$0xff] %v3527
  %3536 = vst [vmem:[#allocation3 + $0x50] sm:$0xff] %v3529
  %v3537 = vld [vmem:[#allocation3] sm:$0xff]
  %v3538 = vld [vmem:[#allocation3 + $0x8] sm:$0xff]
  %v3539 = vld [vmem:[#allocation3 + $0x10] sm:$0xff]
  %v3540 = vld [vmem:[#allocation3 + $0x20] sm:$0xff]
  %v3541 = vld [vmem:[#allocation3 + $0x28] sm:$0xff]
  %v3542 = vld [vmem:[#allocation3 + $0x30] sm:$0xff]
  %v3543 = vld [vmem:[#allocation3 + $0x40] sm:$0xff]
  %v3544 = vld [vmem:[#allocation3 + $0x48] sm:$0xff]
  %v3545 = vld [vmem:[#allocation3 + $0x50] sm:$0xff]
  %3555 = vrot.lane.b32.xlu0 %v3537, 16
  %v3556 = vpop.permute.xlu0 %3555
  %3557 = vrot.lane.b32.xlu0 %v3538, 16
  %v3558 = vpop.permute.xlu0 %3557
  %3559 = vrot.lane.b32.xlu0 %v3539, 16
  %v3560 = vpop.permute.xlu0 %3559
  %3561 = vrot.lane.b32.xlu0 %v3540, 16
  %v3562 = vpop.permute.xlu0 %3561
  %3563 = vrot.lane.b32.xlu0 %v3541, 16
  %v3564 = vpop.permute.xlu0 %3563
  %3565 = vrot.lane.b32.xlu0 %v3542, 16
  %v3566 = vpop.permute.xlu0 %3565
  %3567 = vrot.lane.b32.xlu0 %v3543, 16
  %v3568 = vpop.permute.xlu0 %3567
  %3569 = vrot.lane.b32.xlu0 %v3544, 16
  %v3570 = vpop.permute.xlu0 %3569
  %3571 = vrot.lane.b32.xlu0 %v3545, 16
  %v3572 = vpop.permute.xlu0 %3571
  %v3573 = vsel %vm1020, %v3556, %v3558
  %v3574 = vsel %vm1020, %v3558, %v3560
  %v3575 = vsel %vm1020, %v3562, %v3564
  %v3576 = vsel %vm1020, %v3564, %v3566
  %v3577 = vsel %vm1020, %v3568, %v3570
  %v3578 = vsel %vm1020, %v3570, %v3572
  %3585 = vst [vmem:[#allocation5] sm:$0xff] %v3573
  %3586 = vst [vmem:[#allocation5 + $0x8] sm:$0xff] %v3574
  %3587 = vst [vmem:[#allocation5 + $0x10] sm:$0xff] %v3575
  %3588 = vst [vmem:[#allocation5 + $0x18] sm:$0xff] %v3576
  %3589 = vst [vmem:[#allocation5 + $0x20] sm:$0xff] %v3577
  %3590 = vst [vmem:[#allocation5 + $0x28] sm:$0xff] %v3578
  %v3591 = vld [vmem:[#allocation3 + $0x8] sm:$0xff]
  %v3592 = vld [vmem:[#allocation3 + $0x10] sm:$0xff]
  %v3593 = vld [vmem:[#allocation3 + $0x28] sm:$0xff]
  %v3594 = vld [vmem:[#allocation3 + $0x30] sm:$0xff]
  %v3595 = vld [vmem:[#allocation3 + $0x48] sm:$0xff]
  %v3596 = vld [vmem:[#allocation3 + $0x50] sm:$0xff]
  %3597 = vst [vmem:[#allocation5 + $0x30] sm:$0xff] %v3591
  %3598 = vst [vmem:[#allocation5 + $0x38] sm:$0xff] %v3592
  %3599 = vst [vmem:[#allocation5 + $0x40] sm:$0xff] %v3593
  %3600 = vst [vmem:[#allocation5 + $0x48] sm:$0xff] %v3594
  %3601 = vst [vmem:[#allocation5 + $0x50] sm:$0xff] %v3595
  %3602 = vst [vmem:[#allocation5 + $0x58] sm:$0xff] %v3596
  %v3603 = vld [vmem:[#allocation3 + $0x8] sm:$0xff]
  %v3604 = vld [vmem:[#allocation3 + $0x10] sm:$0xff]
  %v3605 = vld [vmem:[#allocation3 + $0x18] sm:$0xff]
  %v3606 = vld [vmem:[#allocation3 + $0x28] sm:$0xff]
  %v3607 = vld [vmem:[#allocation3 + $0x30] sm:$0xff]
  %v3608 = vld [vmem:[#allocation3 + $0x38] sm:$0xff]
  %v3609 = vld [vmem:[#allocation3 + $0x48] sm:$0xff]
  %v3610 = vld [vmem:[#allocation3 + $0x50] sm:$0xff]
  %v3611 = vld [vmem:[#allocation3 + $0x58] sm:$0xff]
  %3621 = vrot.lane.b32.xlu0 %v3603, 112
  %v3622 = vpop.permute.xlu0 %3621
  %3623 = vrot.lane.b32.xlu0 %v3604, 112
  %v3624 = vpop.permute.xlu0 %3623
  %3625 = vrot.lane.b32.xlu0 %v3605, 112
  %v3626 = vpop.permute.xlu0 %3625
  %3627 = vrot.lane.b32.xlu0 %v3606, 112
  %v3628 = vpop.permute.xlu0 %3627
  %3629 = vrot.lane.b32.xlu0 %v3607, 112
  %v3630 = vpop.permute.xlu0 %3629
  %3631 = vrot.lane.b32.xlu0 %v3608, 112
  %v3632 = vpop.permute.xlu0 %3631
  %3633 = vrot.lane.b32.xlu0 %v3609, 112
  %v3634 = vpop.permute.xlu0 %3633
  %3635 = vrot.lane.b32.xlu0 %v3610, 112
  %v3636 = vpop.permute.xlu0 %3635
  %3637 = vrot.lane.b32.xlu0 %v3611, 112
  %v3638 = vpop.permute.xlu0 %3637
  %v3639 = vsel %vm231, %v3622, %v3624
  %v3640 = vsel %vm231, %v3624, %v3626
  %v3641 = vsel %vm231, %v3628, %v3630
  %v3642 = vsel %vm231, %v3630, %v3632
  %v3643 = vsel %vm231, %v3634, %v3636
  %v3644 = vsel %vm231, %v3636, %v3638
  %3651 = vst [vmem:[#allocation5 + $0x60] sm:$0xff] %v3639
  %3652 = vst [vmem:[#allocation5 + $0x68] sm:$0xff] %v3640
  %3653 = vst [vmem:[#allocation5 + $0x70] sm:$0xff] %v3641
  %3654 = vst [vmem:[#allocation5 + $0x78] sm:$0xff] %v3642
  %3655 = vst [vmem:[#allocation5 + $0x80] sm:$0xff] %v3643
  %3656 = vst [vmem:[#allocation5 + $0x88] sm:$0xff] %v3644
  %v3657 = vld [vmem:[#allocation5] sm:$0xff]
  %v3658 = vld [vmem:[#allocation5 + $0x8] sm:$0xff]
  %v3659 = vld [vmem:[#allocation5 + $0x10] sm:$0xff]
  %v3660 = vld [vmem:[#allocation5 + $0x18] sm:$0xff]
  %v3661 = vld [vmem:[#allocation5 + $0x20] sm:$0xff]
  %v3662 = vld [vmem:[#allocation5 + $0x28] sm:$0xff]
  %v3663 = vld [vmem:[#allocation5 + $0x30] sm:$0xff]
  %v3664 = vld [vmem:[#allocation5 + $0x38] sm:$0xff]
  %v3665 = vld [vmem:[#allocation5 + $0x40] sm:$0xff]
  %v3666 = vld [vmem:[#allocation5 + $0x48] sm:$0xff]
  %v3667 = vld [vmem:[#allocation5 + $0x50] sm:$0xff]
  %v3668 = vld [vmem:[#allocation5 + $0x58] sm:$0xff]
  %v3669 = vld [vmem:[#allocation5 + $0x60] sm:$0xff]
  %v3670 = vld [vmem:[#allocation5 + $0x68] sm:$0xff]
  %v3671 = vld [vmem:[#allocation5 + $0x70] sm:$0xff]
  %v3672 = vld [vmem:[#allocation5 + $0x78] sm:$0xff]
  %v3673 = vld [vmem:[#allocation5 + $0x80] sm:$0xff]
  %v3674 = vld [vmem:[#allocation5 + $0x88] sm:$0xff]
  %3675 = vmatprep.subr.mxu0 %v3658
  %3676 = vmatpush1.msra.mxu0 %v3657
  %3677 = vmatprep.subr.mxu0 %v3660
  %3678 = vmatpush1.msra.mxu0 %v3659
  %3679 = vmatprep.subr.mxu0 %v3662
  %3680 = vmatpush1.msra.mxu0 %v3661
  %3681 = vmatprep.subr.mxu0 %v3664
  %3682 = vmatpush1.msra.mxu0 %v3663
  %3683 = vmatprep.subr.mxu0 %v3666
  %3684 = vmatpush1.msra.mxu0 %v3665
  %3685 = vmatprep.subr.mxu0 %v3668
  %3686 = vmatpush1.msra.mxu0 %v3667
  %3687 = vmatprep.subr.mxu0 %v3670
  %3688 = vmatpush1.msra.mxu0 %v3669
  %3689 = vmatprep.subr.mxu0 %v3672
  %3690 = vmatpush1.msra.mxu0 %v3671
  %3691 = vmatprep.subr.mxu0 %v3674
  %3692 = vmatpush1.msra.mxu0 %v3673
  %3693 = vmatprep.subr.mxu0 0.0
  %3694 = vmatpush1.msra.mxu0 0.0
  %3695 = vmatprep.subr.mxu0 0.0
  %3696 = vmatpush1.msra.mxu0 0.0
  %3697 = vmatprep.subr.mxu0 0.0
  %3698 = vmatpush1.msra.mxu0 0.0
  %3699 = vmatprep.subr.mxu0 0.0
  %3700 = vmatpush1.msra.mxu0 0.0
  %3701 = vmatprep.subr.mxu0 0.0
  %3702 = vmatpush1.msra.mxu0 0.0
  %3703 = vmatprep.subr.mxu0 0.0
  %3704 = vmatpush1.msra.mxu0 0.0
  %3705 = vmatprep.subr.mxu0 0.0
  %3706 = vmatpush1.msra.mxu0 0.0
  %3707 = vmatprep.subr.mxu0 0.0
  %3708 = vmatpush1.msra.mxu0 0.0
  %3709 = vmatprep.subr.mxu0 0.0
  %3710 = vmatpush1.msra.mxu0 0.0
  %3711 = vmatprep.subr.mxu0 0.0
  %3712 = vmatpush1.msra.mxu0 0.0
  %3713 = vmatprep.subr.mxu0 0.0
  %3714 = vmatpush1.msra.mxu0 0.0
  %3715 = vmatprep.subr.mxu0 0.0
  %3716 = vmatpush1.msra.mxu0 0.0
  %3717 = vmatprep.subr.mxu0 0.0
  %3718 = vmatpush1.msra.mxu0 0.0
  %3719 = vmatprep.subr.mxu0 0.0
  %3720 = vmatpush1.msra.mxu0 0.0
  %3721 = vmatprep.subr.mxu0 0.0
  %3722 = vmatpush1.msra.mxu0 0.0
  %3723 = vmatprep.subr.mxu0 0.0
  %3724 = vmatpush1.msra.mxu0 0.0
  %3725 = vmatprep.subr.mxu0 0.0
  %3726 = vmatpush1.msra.mxu0 0.0
  %3727 = vmatprep.subr.mxu0 0.0
  %3728 = vmatpush1.msra.mxu0 0.0
  %3729 = vmatprep.subr.mxu0 0.0
  %3730 = vmatpush1.msra.mxu0 0.0
  %3731 = vmatprep.subr.mxu0 0.0
  %3732 = vmatpush1.msra.mxu0 0.0
  %3733 = vmatprep.subr.mxu0 0.0
  %3734 = vmatpush1.msra.mxu0 0.0
  %3735 = vmatprep.subr.mxu0 0.0
  %3736 = vmatpush1.msra.mxu0 0.0
  %3737 = vmatprep.subr.mxu0 0.0
  %3738 = vmatpush1.msra.mxu0 0.0
  %3739 = vmatprep.mubr.f32.mxu0 0.0
  %3740 = vmatmul.mubr.f32.gmra.mrb[0].mxu0 %v1802
  %v3741 = vpop.f32.mrb[0].mxu0
  %v3742 = vadd.f32 0.0, %v3741
  %v3743 = vpop.f32.mrb[0].mxu0
  %v3744 = vadd.f32 0.0, %v3743
  %3745 = vmatprep.mubr.f32.mxu0 0.0
  %3746 = vmatmul.mubr.f32.gmra.mrb[0].mxu0 %v1805
  %v3747 = vpop.f32.mrb[0].mxu0
  %v3748 = vadd.f32 0.0, %v3747
  %v3749 = vpop.f32.mrb[0].mxu0
  %v3750 = vadd.f32 0.0, %v3749
  %3751 = vmatprep.mubr.f32.mxu0 0.0
  %3752 = vmatmul.mubr.f32.gmra.mrb[0].mxu0 %v1808
  %v3753 = vpop.f32.mrb[0].mxu0
  %v3754 = vadd.f32 0.0, %v3753
  %v3755 = vpop.f32.mrb[0].mxu0
  %v3756 = vadd.f32 0.0, %v3755
  %3757 = vmatprep.mubr.f32.mxu0 0.0
  %3758 = vmatmul.mubr.f32.gmra.mrb[0].mxu0 %v1811
  %v3759 = vpop.f32.mrb[0].mxu0
  %v3760 = vadd.f32 0.0, %v3759
  %v3761 = vpop.f32.mrb[0].mxu0
  %v3762 = vadd.f32 0.0, %v3761
  %3763 = vmatprep.mubr.f32.mxu0 0.0
  %3764 = vmatmul.mubr.f32.gmra.mrb[0].mxu0 %v1814
  %v3765 = vpop.f32.mrb[0].mxu0
  %v3766 = vadd.f32 0.0, %v3765
  %v3767 = vpop.f32.mrb[0].mxu0
  %v3768 = vadd.f32 0.0, %v3767
  %3769 = vmatprep.mubr.f32.mxu0 0.0
  %3770 = vmatmul.mubr.f32.gmra.mrb[0].mxu0 %v1817
  %v3771 = vpop.f32.mrb[0].mxu0
  %v3772 = vadd.f32 0.0, %v3771
  %v3773 = vpop.f32.mrb[0].mxu0
  %v3774 = vadd.f32 0.0, %v3773
  %3775 = vmatprep.mubr.f32.mxu0 0.0
  %3776 = vmatmul.mubr.f32.gmra.mrb[0].mxu0 %v1820
  %v3777 = vpop.f32.mrb[0].mxu0
  %v3778 = vadd.f32 0.0, %v3777
  %v3779 = vpop.f32.mrb[0].mxu0
  %v3780 = vadd.f32 0.0, %v3779
  %3781 = vmatprep.mubr.f32.mxu0 0.0
  %3782 = vmatmul.mubr.f32.gmra.mrb[0].mxu0 %v1823
  %v3783 = vpop.f32.mrb[0].mxu0
  %v3784 = vadd.f32 0.0, %v3783
  %v3785 = vpop.f32.mrb[0].mxu0
  %v3786 = vadd.f32 0.0, %v3785
  %3787 = vmatprep.mubr.f32.mxu0 0.0
  %3788 = vmatmul.mubr.f32.gmra.mrb[0].mxu0 %v1826
  %v3789 = vpop.f32.mrb[0].mxu0
  %v3790 = vadd.f32 0.0, %v3789
  %v3791 = vpop.f32.mrb[0].mxu0
  %v3792 = vadd.f32 0.0, %v3791
  %3793 = vmatprep.mubr.f32.mxu0 0.0
  %3794 = vmatmul.mubr.f32.gmra.mrb[0].mxu0 %v1829
  %v3795 = vpop.f32.mrb[0].mxu0
  %v3796 = vadd.f32 0.0, %v3795
  %v3797 = vpop.f32.mrb[0].mxu0
  %v3798 = vadd.f32 0.0, %v3797
  %3799 = vmatprep.mubr.f32.mxu0 0.0
  %3800 = vmatmul.mubr.f32.gmra.mrb[0].mxu0 %v1832
  %v3801 = vpop.f32.mrb[0].mxu0
  %v3802 = vadd.f32 0.0, %v3801
  %v3803 = vpop.f32.mrb[0].mxu0
  %v3804 = vadd.f32 0.0, %v3803
  %3805 = vmatprep.mubr.f32.mxu0 0.0
  %3806 = vmatmul.mubr.f32.gmra.mrb[0].mxu0 %v1835
  %v3807 = vpop.f32.mrb[0].mxu0
  %v3808 = vadd.f32 0.0, %v3807
  %v3809 = vpop.f32.mrb[0].mxu0
  %v3810 = vadd.f32 0.0, %v3809
  %3811 = vmatprep.mubr.f32.mxu0 0.0
  %3812 = vmatmul.mubr.f32.gmra.mrb[0].mxu0 %v1838
  %v3813 = vpop.f32.mrb[0].mxu0
  %v3814 = vadd.f32 0.0, %v3813
  %v3815 = vpop.f32.mrb[0].mxu0
  %v3816 = vadd.f32 0.0, %v3815
  %3817 = vmatprep.mubr.f32.mxu0 0.0
  %3818 = vmatmul.mubr.f32.gmra.mrb[0].mxu0 %v1841
  %v3819 = vpop.f32.mrb[0].mxu0
  %v3820 = vadd.f32 0.0, %v3819
  %v3821 = vpop.f32.mrb[0].mxu0
  %v3822 = vadd.f32 0.0, %v3821
  %3823 = vmatprep.mubr.f32.mxu0 0.0
  %3824 = vmatmul.mubr.f32.gmra.mrb[0].mxu0 %v1844
  %v3825 = vpop.f32.mrb[0].mxu0
  %v3826 = vadd.f32 0.0, %v3825
  %v3827 = vpop.f32.mrb[0].mxu0
  %v3828 = vadd.f32 0.0, %v3827
  %3829 = vmatprep.mubr.f32.mxu0 0.0
  %3830 = vmatmul.mubr.f32.gmra.mrb[0].mxu0 %v1847
  %v3831 = vpop.f32.mrb[0].mxu0
  %v3832 = vadd.f32 0.0, %v3831
  %v3833 = vpop.f32.mrb[0].mxu0
  %v3834 = vadd.f32 0.0, %v3833
  %3835 = vmatprep.mubr.f32.mxu0 0.0
  %3836 = vmatmul.mubr.f32.gmra.mrb[0].mxu0 %v1850
  %v3837 = vpop.f32.mrb[0].mxu0
  %v3838 = vadd.f32 0.0, %v3837
  %v3839 = vpop.f32.mrb[0].mxu0
  %v3840 = vadd.f32 0.0, %v3839
  %3841 = vmatprep.mubr.f32.mxu0 0.0
  %3842 = vmatmul.mubr.f32.gmra.mrb[0].mxu0 %v1853
  %v3843 = vpop.f32.mrb[0].mxu0
  %v3844 = vadd.f32 0.0, %v3843
  %v3845 = vpop.f32.mrb[0].mxu0
  %v3846 = vadd.f32 0.0, %v3845
  %3847 = vmatprep.mubr.f32.mxu0 0.0
  %3848 = vmatmul.mubr.f32.gmra.mrb[0].mxu0 %v1856
  %v3849 = vpop.f32.mrb[0].mxu0
  %v3850 = vadd.f32 0.0, %v3849
  %v3851 = vpop.f32.mrb[0].mxu0
  %v3852 = vadd.f32 0.0, %v3851
  %3853 = vmatprep.mubr.f32.mxu0 0.0
  %3854 = vmatmul.mubr.f32.gmra.mrb[0].mxu0 %v1859
  %v3855 = vpop.f32.mrb[0].mxu0
  %v3856 = vadd.f32 0.0, %v3855
  %v3857 = vpop.f32.mrb[0].mxu0
  %v3858 = vadd.f32 0.0, %v3857
  %3859 = vmatprep.mubr.f32.mxu0 0.0
  %3860 = vmatmul.mubr.f32.gmra.mrb[0].mxu0 %v1862
  %v3861 = vpop.f32.mrb[0].mxu0
  %v3862 = vadd.f32 0.0, %v3861
  %v3863 = vpop.f32.mrb[0].mxu0
  %v3864 = vadd.f32 0.0, %v3863
  %3865 = vmatprep.mubr.f32.mxu0 0.0
  %3866 = vmatmul.mubr.f32.gmra.mrb[0].mxu0 %v1865
  %v3867 = vpop.f32.mrb[0].mxu0
  %v3868 = vadd.f32 0.0, %v3867
  %v3869 = vpop.f32.mrb[0].mxu0
  %v3870 = vadd.f32 0.0, %v3869
  %3871 = vmatprep.mubr.f32.mxu0 0.0
  %3872 = vmatmul.mubr.f32.gmra.mrb[0].mxu0 %v1868
  %v3873 = vpop.f32.mrb[0].mxu0
  %v3874 = vadd.f32 0.0, %v3873
  %v3875 = vpop.f32.mrb[0].mxu0
  %v3876 = vadd.f32 0.0, %v3875
  %3877 = vmatprep.mubr.f32.mxu0 0.0
  %3878 = vmatmul.mubr.f32.gmra.mrb[0].mxu0 %v1871
  %v3879 = vpop.f32.mrb[0].mxu0
  %v3880 = vadd.f32 0.0, %v3879
  %v3881 = vpop.f32.mrb[0].mxu0
  %v3882 = vadd.f32 0.0, %v3881
  %3883 = vmatprep.mubr.f32.mxu0 0.0
  %3884 = vmatmul.mubr.f32.gmra.mrb[0].mxu0 %v1874
  %v3885 = vpop.f32.mrb[0].mxu0
  %v3886 = vadd.f32 0.0, %v3885
  %v3887 = vpop.f32.mrb[0].mxu0
  %v3888 = vadd.f32 0.0, %v3887
  %3889 = vmatprep.mubr.f32.mxu0 0.0
  %3890 = vmatmul.mubr.f32.gmra.mrb[0].mxu0 %v1877
  %v3891 = vpop.f32.mrb[0].mxu0
  %v3892 = vadd.f32 0.0, %v3891
  %v3893 = vpop.f32.mrb[0].mxu0
  %v3894 = vadd.f32 0.0, %v3893
  %3895 = vmatprep.mubr.f32.mxu0 0.0
  %3896 = vmatmul.mubr.f32.gmra.mrb[0].mxu0 %v1880
  %v3897 = vpop.f32.mrb[0].mxu0
  %v3898 = vadd.f32 0.0, %v3897
  %v3899 = vpop.f32.mrb[0].mxu0
  %v3900 = vadd.f32 0.0, %v3899
  %3901 = vmatprep.mubr.f32.mxu0 0.0
  %3902 = vmatmul.mubr.f32.gmra.mrb[0].mxu0 %v1883
  %v3903 = vpop.f32.mrb[0].mxu0
  %v3904 = vadd.f32 0.0, %v3903
  %v3905 = vpop.f32.mrb[0].mxu0
  %v3906 = vadd.f32 0.0, %v3905
  %3907 = vmatprep.mubr.f32.mxu0 0.0
  %3908 = vmatmul.mubr.f32.gmra.mrb[0].mxu0 %v1886
  %v3909 = vpop.f32.mrb[0].mxu0
  %v3910 = vadd.f32 0.0, %v3909
  %v3911 = vpop.f32.mrb[0].mxu0
  %v3912 = vadd.f32 0.0, %v3911
  %3913 = vmatprep.mubr.f32.mxu0 0.0
  %3914 = vmatmul.mubr.f32.gmra.mrb[0].mxu0 %v1889
  %v3915 = vpop.f32.mrb[0].mxu0
  %v3916 = vadd.f32 0.0, %v3915
  %v3917 = vpop.f32.mrb[0].mxu0
  %v3918 = vadd.f32 0.0, %v3917
  %3919 = vmatprep.mubr.f32.mxu0 0.0
  %3920 = vmatmul.mubr.f32.gmra.mrb[0].mxu0 %v1892
  %v3921 = vpop.f32.mrb[0].mxu0
  %v3922 = vadd.f32 0.0, %v3921
  %v3923 = vpop.f32.mrb[0].mxu0
  %v3924 = vadd.f32 0.0, %v3923
  %3925 = vmatprep.mubr.f32.mxu0 0.0
  %3926 = vmatmul.mubr.f32.gmra.mrb[0].mxu0 %v1895
  %v3927 = vpop.f32.mrb[0].mxu0
  %v3928 = vadd.f32 0.0, %v3927
  %v3929 = vpop.f32.mrb[0].mxu0
  %v3930 = vadd.f32 0.0, %v3929
  %3931 = vdwg.mxu0
  %s3932 = scalar_lea.vmem %s5, 512
  %3933 = vst [vmem:[%s3932] sm:$0xff] %v3742
  %3934 = vst [vmem:[%s3932 + $0x8] sm:$0xff] %v3744
  %3935 = vst [vmem:[%s3932 + $0x10] sm:$0xff] %v3748
  %3936 = vst [vmem:[%s3932 + $0x18] sm:$0xff] %v3750
  %3937 = vst [vmem:[%s3932 + $0x20] sm:$0xff] %v3754
  %3938 = vst [vmem:[%s3932 + $0x28] sm:$0xff] %v3756
  %3939 = vst [vmem:[%s3932 + $0x30] sm:$0xff] %v3760
  %3940 = vst [vmem:[%s3932 + $0x38] sm:$0xff] %v3762
  %3941 = vst [vmem:[%s3932 + $0x40] sm:$0xff] %v3766
  %3942 = vst [vmem:[%s3932 + $0x48] sm:$0xff] %v3768
  %3943 = vst [vmem:[%s3932 + $0x50] sm:$0xff] %v3772
  %3944 = vst [vmem:[%s3932 + $0x58] sm:$0xff] %v3774
  %3945 = vst [vmem:[%s3932 + $0x60] sm:$0xff] %v3778
  %3946 = vst [vmem:[%s3932 + $0x68] sm:$0xff] %v3780
  %3947 = vst [vmem:[%s3932 + $0x70] sm:$0xff] %v3784
  %3948 = vst [vmem:[%s3932 + $0x78] sm:$0xff] %v3786
  %3949 = vst [vmem:[%s3932 + $0x80] sm:$0xff] %v3790
  %3950 = vst [vmem:[%s3932 + $0x88] sm:$0xff] %v3792
  %3951 = vst [vmem:[%s3932 + $0x90] sm:$0xff] %v3796
  %3952 = vst [vmem:[%s3932 + $0x98] sm:$0xff] %v3798
  %3953 = vst [vmem:[%s3932 + $0xa0] sm:$0xff] %v3802
  %3954 = vst [vmem:[%s3932 + $0xa8] sm:$0xff] %v3804
  %3955 = vst [vmem:[%s3932 + $0xb0] sm:$0xff] %v3808
  %3956 = vst [vmem:[%s3932 + $0xb8] sm:$0xff] %v3810
  %3957 = vst [vmem:[%s3932 + $0xc0] sm:$0xff] %v3814
  %3958 = vst [vmem:[%s3932 + $0xc8] sm:$0xff] %v3816
  %3959 = vst [vmem:[%s3932 + $0xd0] sm:$0xff] %v3820
  %3960 = vst [vmem:[%s3932 + $0xd8] sm:$0xff] %v3822
  %3961 = vst [vmem:[%s3932 + $0xe0] sm:$0xff] %v3826
  %3962 = vst [vmem:[%s3932 + $0xe8] sm:$0xff] %v3828
  %3963 = vst [vmem:[%s3932 + $0xf0] sm:$0xff] %v3832
  %3964 = vst [vmem:[%s3932 + $0xf8] sm:$0xff] %v3834
  %3965 = vst [vmem:[%s3932 + $0x100] sm:$0xff] %v3838
  %3966 = vst [vmem:[%s3932 + $0x108] sm:$0xff] %v3840
  %3967 = vst [vmem:[%s3932 + $0x110] sm:$0xff] %v3844
  %3968 = vst [vmem:[%s3932 + $0x118] sm:$0xff] %v3846
  %3969 = vst [vmem:[%s3932 + $0x120] sm:$0xff] %v3850
  %3970 = vst [vmem:[%s3932 + $0x128] sm:$0xff] %v3852
  %3971 = vst [vmem:[%s3932 + $0x130] sm:$0xff] %v3856
  %3972 = vst [vmem:[%s3932 + $0x138] sm:$0xff] %v3858
  %3973 = vst [vmem:[%s3932 + $0x140] sm:$0xff] %v3862
  %3974 = vst [vmem:[%s3932 + $0x148] sm:$0xff] %v3864
  %3975 = vst [vmem:[%s3932 + $0x150] sm:$0xff] %v3868
  %3976 = vst [vmem:[%s3932 + $0x158] sm:$0xff] %v3870
  %3977 = vst [vmem:[%s3932 + $0x160] sm:$0xff] %v3874
  %3978 = vst [vmem:[%s3932 + $0x168] sm:$0xff] %v3876
  %3979 = vst [vmem:[%s3932 + $0x170] sm:$0xff] %v3880
  %3980 = vst [vmem:[%s3932 + $0x178] sm:$0xff] %v3882
  %3981 = vst [vmem:[%s3932 + $0x180] sm:$0xff] %v3886
  %3982 = vst [vmem:[%s3932 + $0x188] sm:$0xff] %v3888
  %3983 = vst [vmem:[%s3932 + $0x190] sm:$0xff] %v3892
  %3984 = vst [vmem:[%s3932 + $0x198] sm:$0xff] %v3894
  %3985 = vst [vmem:[%s3932 + $0x1a0] sm:$0xff] %v3898
  %3986 = vst [vmem:[%s3932 + $0x1a8] sm:$0xff] %v3900
  %3987 = vst [vmem:[%s3932 + $0x1b0] sm:$0xff] %v3904
  %3988 = vst [vmem:[%s3932 + $0x1b8] sm:$0xff] %v3906
  %3989 = vst [vmem:[%s3932 + $0x1c0] sm:$0xff] %v3910
  %3990 = vst [vmem:[%s3932 + $0x1c8] sm:$0xff] %v3912
  %3991 = vst [vmem:[%s3932 + $0x1d0] sm:$0xff] %v3916
  %3992 = vst [vmem:[%s3932 + $0x1d8] sm:$0xff] %v3918
  %3993 = vst [vmem:[%s3932 + $0x1e0] sm:$0xff] %v3922
  %3994 = vst [vmem:[%s3932 + $0x1e8] sm:$0xff] %v3924
  %3995 = vst [vmem:[%s3932 + $0x1f0] sm:$0xff] %v3928
  %3996 = vst [vmem:[%s3932 + $0x1f8] sm:$0xff] %v3930
  // Predicated region
  $region22: #{forward.1} parent=0 // pred_check
    _
  $region23: #{forward.1} parent=0 // pred_check_branch
    %3998 = sbr.rel (0) target = $region25
  $region24: #{forward.1} parent=0 // pred_region
    _
  $region25: #{forward.1} parent=0 // pred_fallthru
    _
  // Predicated region
  $region26: #{forward.1} parent=0 // pred_check
    _
  $region27: #{forward.1} parent=0 // pred_check_branch
    %4000 = sbr.rel (0) target = $region29
  $region28: #{forward.1} parent=0 // pred_region
    _
  $region29: #{forward.1} parent=0 // pred_fallthru
    _

</llo_original>
